<compile_context>
chip_gen: v6e
topology: v6e:2x2x1
jax: 0.10.0
libtpu: 0.0.40
codegen_flags: <defaults>
</compile_context>

<pallas_src>
import functools

import jax
import jax.numpy as jnp
from jax import lax
from jax.experimental import pallas as pl
from jax.experimental.pallas import tpu as pltpu

EPS = 1e-5
NEG_SLOPE = 0.01  # PyTorch nn.LeakyReLU default negative_slope


def _round_up(x, m):
    return (x + m - 1) // m * m


def _leaky(z):
    return jnp.where(z >= 0, z, NEG_SLOPE * z)


# ---------------------------------------------------------------------------
# Pass 1: 1x1 conv (matmul) + per-tile BN1 statistics of the raw conv output.
# ---------------------------------------------------------------------------
def _k1_conv1x1_stats(x_ref, w_ref, y_ref, sum_ref, sq_ref):
    # x_ref: (TM, Cin_p) cdt, w_ref: (Cin_p, Cr_p) cdt
    # y_ref: (TM, Cr_p) cdt, sum_ref/sq_ref: (1, 8, Cr_p) f32 (row 0 carries data)
    x = x_ref[...].astype(w_ref.dtype)
    y = jnp.dot(x, w_ref[...], preferred_element_type=jnp.float32)
    y_ref[...] = y.astype(y_ref.dtype)
    crp = y.shape[1]
    ssum = jnp.sum(y, axis=0, keepdims=True)            # (1, Cr_p) f32
    ssq = jnp.sum(y * y, axis=0, keepdims=True)
    sum_ref[...] = jnp.broadcast_to(ssum[None], (1, 8, crp))
    sq_ref[...] = jnp.broadcast_to(ssq[None], (1, 8, crp))


# ---------------------------------------------------------------------------
# Pass 2: fused BN1(scale/shift)+LeakyReLU, 3x3 conv as 3 fused-K matmuls over
# an in-VMEM [left|center|right]-shifted slab (halo rows zeroed in VMEM), and
# per-image BN2 partial statistics.  One image per grid step.
# ---------------------------------------------------------------------------
def _k3_conv3x3_stats(y1_ref, w2_ref, s1_ref, h1_ref,
                      y2_ref, sum_ref, sq_ref, b_scr, acc_scr, *, H, W):
    # y1_ref: (1, HW, Cr_p) cdt un-padded raw conv1 output for this image.
    # w2_ref: (3, 3*Cr_p, Cin_p) cdt -- w2_ref[kh, kw*Cr_p + i, o] = w2[o,i,kh,kw].
    # s1_ref/h1_ref: (1, Cr_p) f32 BN1 scale / shift.
    # y2_ref: (1, HW, Cin_p) cdt raw conv2 output; sum_ref/sq_ref: (1, 8, Cin_p).
    # b_scr: VMEM ((H+2)*W, 3*Cr_p) cdt shifted slab (1-row halo top + bottom).
    # acc_scr: VMEM (HW, Cin_p) f32 conv accumulator.
    HW, cinp = acc_scr.shape
    crp = y1_ref.shape[2]
    ktot = b_scr.shape[1]                     # 3 * Cr_p
    cdt = b_scr.dtype

    # Zero the 1-row halo bands (top + bottom) of the shifted-slab buffer.
    # Re-done every step: cheap (2*W rows) and correct even if the image grid
    # axis is split across TensorCores.
    zrow = jnp.zeros((W, ktot), cdt)
    b_scr[pl.ds(0, W), :] = zrow
    b_scr[pl.ds(W + HW, W), :] = zrow

    # BN1 + LeakyReLU fused here; the normalized activation never touches HBM.
    z = y1_ref[0].astype(jnp.float32) * s1_ref[...] + h1_ref[...]
    act = _leaky(z).astype(cdt)
    b_scr[pl.ds(W, HW), pl.ds(crp, crp)] = act          # center (kw=1) group

    # Column index of each output pixel (only needed for the left/right edge
    # zeros that emulate the conv's zero padding along W).  Integer-only when W
    # is a power of two; float-reciprocal fallback otherwise (exact for small
    # per-image HW).
    idx = lax.broadcasted_iota(jnp.int32, (HW, 1), 0)
    if (W & (W - 1)) == 0:
        w_pos = jnp.bitwise_and(idx, W - 1)
    else:
        hq = jnp.floor((idx.astype(jnp.float32) + 0.5) * (1.0 / W)).astype(jnp.int32)
        w_pos = idx - hq * W

    # Left (kw=0) and right (kw=2) shifted copies built from the in-VMEM center
    # group: 2 masked selects total instead of one per tap.
    zero = jnp.zeros((), cdt)
    left = jnp.where(w_pos >= 1,
                     b_scr[pl.ds(W - 1, HW), pl.ds(crp, crp)], zero)
    b_scr[pl.ds(W, HW), pl.ds(0, crp)] = left
    right = jnp.where(w_pos <= W - 2,
                      b_scr[pl.ds(W + 1, HW), pl.ds(crp, crp)], zero)
    b_scr[pl.ds(W, HW), pl.ds(2 * crp, crp)] = right

    # 3 fused-K matmuls (K = 3*Cr_p), one per kernel row, accumulated in f32.
    for dh in range(3):
        lhs = b_scr[pl.ds(dh * W, HW), :]
        contrib = jnp.dot(lhs, w2_ref[dh], preferred_element_type=jnp.float32)
        if dh == 0:
            acc_scr[...] = contrib
        else:
            acc_scr[...] += contrib

    acc = acc_scr[...]
    y2_ref[...] = acc[None].astype(y2_ref.dtype)
    ssum = jnp.sum(acc, axis=0, keepdims=True)
    ssq = jnp.sum(acc * acc, axis=0, keepdims=True)
    sum_ref[...] = jnp.broadcast_to(ssum[None], (1, 8, cinp))
    sq_ref[...] = jnp.broadcast_to(ssq[None], (1, 8, cinp))


# ---------------------------------------------------------------------------
# Pass 3: BN2 (scale/shift) + LeakyReLU + residual add.
# ---------------------------------------------------------------------------
def _k4_bn2_leaky_residual(y2_ref, x_ref, s2_ref, h2_ref, o_ref):
    z = y2_ref[...].astype(jnp.float32) * s2_ref[...] + h2_ref[...]
    o_ref[...] = (_leaky(z) + x_ref[...].astype(jnp.float32)).astype(o_ref.dtype)


def dark_residual_block(x_nchw, w1, g1, b1, w2, g2, b2,
                        *, compute_dtype=jnp.bfloat16):
    """Forward pass of DarkResidualBlock. x_nchw: (N, C, H, W) float32."""
    N, Cin, H, W = x_nchw.shape
    Cr = w1.shape[0]
    M = N * H * W
    HW = H * W
    cdt = compute_dtype
    f32 = jnp.float32
    cdt_b = jnp.dtype(cdt).itemsize

    # Lane-dense channel padding (multiple of 128).
    Cin_p = _round_up(Cin, 128)
    Cr_p = _round_up(Cr, 128)

    # Row-tile sizing for the M-tiled passes: as large as a ~12 MiB
    # double-buffered working set allows (amortizes per-grid-step overhead),
    # capped so it still leaves headroom on v7x's smaller VMEM.
    row_bytes = 2 * (Cin_p * cdt_b + Cr_p * cdt_b + Cin_p * 4)
    TM = max(512, min(4096, (12 * 2**20 // row_bytes) // 8 * 8))
    TM = min(TM, _round_up(M, 8))
    M_pad = _round_up(M, TM)
    MT = M_pad // TM

    # ---- layout glue (plain JAX): NCHW -> channels-last (M, C) in bf16 ----
    # TODO(synk): if the surrounding model is NHWC end-to-end these transposes
    # (full HBM passes each) disappear entirely.
    x2d = jnp.transpose(x_nchw, (0, 2, 3, 1)).reshape(M, Cin).astype(cdt)
    x2d = jnp.pad(x2d, ((0, M_pad - M), (0, Cin_p - Cin)))

    w1m = jnp.pad(jnp.transpose(w1.reshape(Cr, Cin), (1, 0)),
                  ((0, Cin_p - Cin), (0, Cr_p - Cr))).astype(cdt)
    g1p = jnp.pad(g1.astype(f32), (0, Cr_p - Cr))
    b1p = jnp.pad(b1.astype(f32), (0, Cr_p - Cr))
    g2p = jnp.pad(g2.astype(f32), (0, Cin_p - Cin))
    b2p = jnp.pad(b2.astype(f32), (0, Cin_p - Cin))

    def _vlim(est_bytes):
        # generous scoped-VMEM limit (v5e default is only 16 MiB), capped so it
        # stays sane on the 64 MiB-per-core parts for these shapes.
        return int(min(100 * 2**20, max(32 * 2**20, 2 * est_bytes)))

    p13_est = 2 * TM * (2 * Cin_p * cdt_b + Cr_p * cdt_b + Cin_p * 4)

    # ---- pass 1: tiled, double-buffered 1x1 conv + BN1 partial stats ----
    y1, s1sum, s1sq = pl.pallas_call(
        _k1_conv1x1_stats,
        out_shape=(jax.ShapeDtypeStruct((M_pad, Cr_p), cdt),
                   jax.ShapeDtypeStruct((MT, 8, Cr_p), f32),
                   jax.ShapeDtypeStruct((MT, 8, Cr_p), f32)),
        grid=(MT,),
        in_specs=[pl.BlockSpec((TM, Cin_p), lambda i: (i, 0)),
                  pl.BlockSpec((Cin_p, Cr_p), lambda i: (0, 0))],
        out_specs=(pl.BlockSpec((TM, Cr_p), lambda i: (i, 0)),
                   pl.BlockSpec((1, 8, Cr_p), lambda i: (i, 0, 0)),
                   pl.BlockSpec((1, 8, Cr_p), lambda i: (i, 0, 0))),
        compiler_params=pltpu.CompilerParams(
            dimension_semantics=("parallel",),
            vmem_limit_bytes=_vlim(p13_est)),
    )(x2d, w1m)

    # Global BN1 statistics from the per-tile partials (tiny (MT, C) reduction;
    # keeps the M grid axis fully parallel / megacore-shardable).
    sum1 = jnp.sum(s1sum[:, 0, :], axis=0)
    sumsq1 = jnp.sum(s1sq[:, 0, :], axis=0)
    mean1 = sum1 / M
    var1 = jnp.maximum(sumsq1 / M - mean1 * mean1, 0.0)
    scale1 = g1p * lax.rsqrt(var1 + EPS)
    shift1 = b1p - mean1 * scale1

    # Un-padded per-image view of y1 (halo lives in VMEM, no host-side pad).
    y1_img = (y1 if M_pad == M else y1[:M]).reshape(N, HW, Cr_p)

    # Weights rearranged for the fused-K contraction:
    # w2r[kh, kw*Cr_p + i, o] = w2[o, i, kh, kw].
    w2r = jnp.transpose(w2, (2, 3, 1, 0))                       # (3, 3, Cr, Cin)
    w2r = jnp.pad(w2r, ((0, 0), (0, 0), (0, Cr_p - Cr), (0, Cin_p - Cin)))
    w2r = w2r.reshape(3, 3 * Cr_p, Cin_p).astype(cdt)

    p2_est = (2 * HW * (Cr_p + Cin_p) * cdt_b
              + (H + 2) * W * 3 * Cr_p * cdt_b
              + HW * Cin_p * 4 + 9 * Cr_p * Cin_p * cdt_b)

    # ---- pass 2: BN1-apply + LeakyReLU + 3x3 conv + BN2 partial stats ----
    # TODO(synk): for very large per-image spatial sizes (early Darknet layers
    # on v7x's 64 MiB VMEM) this pass needs a spatial grid axis with a 1-row
    # halo per band instead of one image per step.
    y2, s2sum, s2sq = pl.pallas_call(
        functools.partial(_k3_conv3x3_stats, H=H, W=W),
        out_shape=(jax.ShapeDtypeStruct((N, HW, Cin_p), cdt),
                   jax.ShapeDtypeStruct((N, 8, Cin_p), f32),
                   jax.ShapeDtypeStruct((N, 8, Cin_p), f32)),
        grid=(N,),
        in_specs=[pl.BlockSpec((1, HW, Cr_p), lambda n: (n, 0, 0)),
                  pl.BlockSpec((3, 3 * Cr_p, Cin_p), lambda n: (0, 0, 0)),
                  pl.BlockSpec((1, Cr_p), lambda n: (0, 0)),
                  pl.BlockSpec((1, Cr_p), lambda n: (0, 0))],
        out_specs=(pl.BlockSpec((1, HW, Cin_p), lambda n: (n, 0, 0)),
                   pl.BlockSpec((1, 8, Cin_p), lambda n: (n, 0, 0)),
                   pl.BlockSpec((1, 8, Cin_p), lambda n: (n, 0, 0))),
        scratch_shapes=[pltpu.VMEM(((H + 2) * W, 3 * Cr_p), cdt),
                        pltpu.VMEM((HW, Cin_p), f32)],
        compiler_params=pltpu.CompilerParams(
            dimension_semantics=("parallel",),
            vmem_limit_bytes=_vlim(p2_est)),
    )(y1_img, w2r, scale1.reshape(1, Cr_p), shift1.reshape(1, Cr_p))

    # Global BN2 statistics.
    sum2 = jnp.sum(s2sum[:, 0, :], axis=0)
    sumsq2 = jnp.sum(s2sq[:, 0, :], axis=0)
    mean2 = sum2 / M
    var2 = jnp.maximum(sumsq2 / M - mean2 * mean2, 0.0)
    scale2 = g2p * lax.rsqrt(var2 + EPS)
    shift2 = b2p - mean2 * scale2

    # ---- pass 3: tiled BN2-apply + LeakyReLU + residual add ----
    y2f = y2.reshape(M, Cin_p)
    if M_pad != M:
        y2f = jnp.pad(y2f, ((0, M_pad - M), (0, 0)))
    out2d = pl.pallas_call(
        _k4_bn2_leaky_residual,
        out_shape=jax.ShapeDtypeStruct((M_pad, Cin_p), f32),
        grid=(MT,),
        in_specs=[pl.BlockSpec((TM, Cin_p), lambda i: (i, 0)),
                  pl.BlockSpec((TM, Cin_p), lambda i: (i, 0)),
                  pl.BlockSpec((1, Cin_p), lambda i: (0, 0)),
                  pl.BlockSpec((1, Cin_p), lambda i: (0, 0))],
        out_specs=pl.BlockSpec((TM, Cin_p), lambda i: (i, 0)),
        compiler_params=pltpu.CompilerParams(
            dimension_semantics=("parallel",),
            vmem_limit_bytes=_vlim(p13_est)),
    )(y2f, x2d, scale2.reshape(1, Cin_p), shift2.reshape(1, Cin_p))

    out = out2d[:M, :Cin].reshape(N, H, W, Cin)
    return jnp.transpose(out, (0, 3, 1, 2))                    # back to NCHW


def _reference(x_nchw, w1, g1, b1, w2, g2, b2):
    """Pure-JAX reference using lax.conv_general_dilated (NHWC/HWIO)."""
    x = jnp.transpose(x_nchw, (0, 2, 3, 1))

    def bn_leaky(y, g, b):
        mean = y.mean(axis=(0, 1, 2), keepdims=True)
        var = ((y - mean) ** 2).mean(axis=(0, 1, 2), keepdims=True)
        yn = (y - mean) * lax.rsqrt(var + EPS) * g + b
        return jnp.where(yn >= 0, yn, NEG_SLOPE * yn)

    y1 = lax.conv_general_dilated(
        x, jnp.transpose(w1, (2, 3, 1, 0)), (1, 1), "SAME",
        dimension_numbers=("NHWC", "HWIO", "NHWC"))
    y1 = bn_leaky(y1, g1, b1)
    y2 = lax.conv_general_dilated(
        y1, jnp.transpose(w2, (2, 3, 1, 0)), (1, 1), "SAME",
        dimension_numbers=("NHWC", "HWIO", "NHWC"))
    y2 = bn_leaky(y2, g2, b2)
    return jnp.transpose(y2 + x, (0, 3, 1, 2))


if __name__ == "__main__":
    key = jax.random.PRNGKey(0)
    N, C, H, W = 2, 4, 16, 16
    Cr = C // 2
    ks = jax.random.split(key, 7)

    x = jax.random.normal(ks[0], (N, C, H, W), jnp.float32)
    # conv1: (reduced, in, 1, 1) no bias; conv2: (in, reduced, 3, 3) no bias
    w1 = 0.5 * jax.random.normal(ks[1], (Cr, C, 1, 1), jnp.float32)
    w2 = 0.2 * jax.random.normal(ks[2], (C, Cr, 3, 3), jnp.float32)
    # BatchNorm affine params (deterministic, non-trivial)
    g1 = 1.0 + 0.1 * jax.random.normal(ks[3], (Cr,), jnp.float32)
    b1 = 0.1 * jax.random.normal(ks[4], (Cr,), jnp.float32)
    g2 = 1.0 + 0.1 * jax.random.normal(ks[5], (C,), jnp.float32)
    b2 = 0.1 * jax.random.normal(ks[6], (C,), jnp.float32)

    ref = _reference(x, w1, g1, b1, w2, g2, b2)

    # Exact-semantics check (f32 compute path).
    fwd_f32 = jax.jit(functools.partial(dark_residual_block,
                                        compute_dtype=jnp.float32))
    out_f32 = jax.block_until_ready(fwd_f32(x, w1, g1, b1, w2, g2, b2))
    assert out_f32.shape == (N, C, H, W) and out_f32.dtype == jnp.float32
    assert jnp.allclose(out_f32, ref, atol=1e-3, rtol=1e-3), "f32 mismatch vs reference"

    # Default fast path: bf16 matmul operands / intermediates, f32 accum + BN stats.
    fwd = jax.jit(dark_residual_block)
    out = jax.block_until_ready(fwd(x, w1, g1, b1, w2, g2, b2))
    assert out.shape == (N, C, H, W) and out.dtype == jnp.float32
    assert jnp.allclose(out, ref, atol=0.15, rtol=0.05), "bf16 mismatch vs reference"

    print("KERNEL_OK")
</pallas_src>

<mosaic_0001>
module attributes {stable_mosaic.version = 11 : i64} {
  func.func @_k1_conv1x1_stats(%arg0: i32, %arg1: memref<512x128xf32, #tpu.memory_space<vmem>>, %arg2: memref<128x128xf32, #tpu.memory_space<vmem>>, %arg3: memref<512x128xf32, #tpu.memory_space<vmem>>, %arg4: memref<1x8x128xf32, #tpu.memory_space<vmem>>, %arg5: memref<1x8x128xf32, #tpu.memory_space<vmem>>) attributes {dimension_semantics = [#tpu.dimension_semantics<parallel>], iteration_bounds = array<i64: 1>, scalar_prefetch = 0 : i64, scratch_operands = 0 : i64, tpu.core_type = #tpu.core_type<tc>, window_params = [{transform_indices = @transform_0, window_bounds = array<i64: 512, 128>}, {pipeline_mode = #tpu.pipeline_mode<synchronous>, transform_indices = @transform_1, window_bounds = array<i64: 128, 128>}, {transform_indices = @transform_2, window_bounds = array<i64: 512, 128>}, {transform_indices = @transform_3, window_bounds = array<i64: 1, 8, 128>}, {transform_indices = @transform_4, window_bounds = array<i64: 1, 8, 128>}]} {
    %c0 = arith.constant 0 : index
    %c0_0 = arith.constant 0 : index
    %0 = vector.load %arg1[%c0, %c0_0] : memref<512x128xf32, #tpu.memory_space<vmem>>, vector<512x128xf32>
    %c0_1 = arith.constant 0 : index
    %c0_2 = arith.constant 0 : index
    %1 = vector.load %arg2[%c0_1, %c0_2] : memref<128x128xf32, #tpu.memory_space<vmem>>, vector<128x128xf32>
    %cst = arith.constant dense<0.000000e+00> : vector<512x128xf32>
    %2 = tpu.matmul %0, %1, %cst {dimension_numbers = #tpu.dot_dimension_numbers<[1], [0], [0], [1], [0, 0, 1, 1], [], []>} : vector<512x128xf32>, vector<128x128xf32>, vector<512x128xf32> -> vector<512x128xf32>
    %c0_3 = arith.constant 0 : index
    %c0_4 = arith.constant 0 : index
    %3 = vector.load %arg3[%c0_3, %c0_4] : memref<512x128xf32, #tpu.memory_space<vmem>>, vector<512x128xf32>
    tpu.vector_store %arg3[%c0_3, %c0_4], %2 {strides = array<i32>} : memref<512x128xf32, #tpu.memory_space<vmem>>, vector<512x128xf32>,
    %cst_5 = arith.constant dense<0.000000e+00> : vector<128xf32>
    %4 = vector.multi_reduction <add>, %2, %cst_5 [0] : vector<512x128xf32> to vector<128xf32>
    %5 = vector.shape_cast %4 : vector<128xf32> to vector<1x128xf32>
    %6 = arith.mulf %2, %2 : vector<512x128xf32>
    %cst_6 = arith.constant dense<0.000000e+00> : vector<128xf32>
    %7 = vector.multi_reduction <add>, %6, %cst_6 [0] : vector<512x128xf32> to vector<128xf32>
    %8 = vector.shape_cast %7 : vector<128xf32> to vector<1x128xf32>
    %9 = vector.shape_cast %5 : vector<1x128xf32> to vector<1x1x128xf32>
    %10 = vector.shape_cast %9 : vector<1x1x128xf32> to vector<1x1x128xf32>
    %11 = vector.broadcast %10 : vector<1x1x128xf32> to vector<1x8x128xf32>
    %c0_7 = arith.constant 0 : index
    %c0_8 = arith.constant 0 : index
    %c0_9 = arith.constant 0 : index
    %12 = vector.load %arg4[%c0_7, %c0_8, %c0_9] : memref<1x8x128xf32, #tpu.memory_space<vmem>>, vector<1x8x128xf32>
    tpu.vector_store %arg4[%c0_7, %c0_8, %c0_9], %11 {strides = array<i32>} : memref<1x8x128xf32, #tpu.memory_space<vmem>>, vector<1x8x128xf32>,
    %13 = vector.shape_cast %8 : vector<1x128xf32> to vector<1x1x128xf32>
    %14 = vector.shape_cast %13 : vector<1x1x128xf32> to vector<1x1x128xf32>
    %15 = vector.broadcast %14 : vector<1x1x128xf32> to vector<1x8x128xf32>
    %c0_10 = arith.constant 0 : index
    %c0_11 = arith.constant 0 : index
    %c0_12 = arith.constant 0 : index
    %16 = vector.load %arg5[%c0_10, %c0_11, %c0_12] : memref<1x8x128xf32, #tpu.memory_space<vmem>>, vector<1x8x128xf32>
    tpu.vector_store %arg5[%c0_10, %c0_11, %c0_12], %15 {strides = array<i32>} : memref<1x8x128xf32, #tpu.memory_space<vmem>>, vector<1x8x128xf32>,
    return
  }
  func.func @transform_0(%arg0: i32) -> (i32, i32) {
    %c0_i32 = arith.constant 0 : i32
    %c0_i32_0 = arith.constant 0 : i32
    return %arg0, %c0_i32 : i32, i32
  }
  func.func @transform_1(%arg0: i32) -> (i32, i32) {
    %c0_i32 = arith.constant 0 : i32
    %c0_i32_0 = arith.constant 0 : i32
    %c0_i32_1 = arith.constant 0 : i32
    return %c0_i32, %c0_i32_0 : i32, i32
  }
  func.func @transform_2(%arg0: i32) -> (i32, i32) {
    %c0_i32 = arith.constant 0 : i32
    %c0_i32_0 = arith.constant 0 : i32
    return %arg0, %c0_i32 : i32, i32
  }
  func.func @transform_3(%arg0: i32) -> (i32, i32, i32) {
    %c0_i32 = arith.constant 0 : i32
    %c0_i32_0 = arith.constant 0 : i32
    %c0_i32_1 = arith.constant 0 : i32
    return %arg0, %c0_i32, %c0_i32_0 : i32, i32, i32
  }
  func.func @transform_4(%arg0: i32) -> (i32, i32, i32) {
    %c0_i32 = arith.constant 0 : i32
    %c0_i32_0 = arith.constant 0 : i32
    %c0_i32_1 = arith.constant 0 : i32
    return %arg0, %c0_i32, %c0_i32_0 : i32, i32, i32
  }
}

module attributes {stable_mosaic.version = 11 : i64} {
  func.func @_k3_conv3x3_stats(%arg0: i32, %arg1: memref<1x256x128xf32, #tpu.memory_space<vmem>>, %arg2: memref<3x384x128xf32, #tpu.memory_space<vmem>>, %arg3: memref<1x128xf32, #tpu.memory_space<vmem>>, %arg4: memref<1x128xf32, #tpu.memory_space<vmem>>, %arg5: memref<1x256x128xf32, #tpu.memory_space<vmem>>, %arg6: memref<1x8x128xf32, #tpu.memory_space<vmem>>, %arg7: memref<1x8x128xf32, #tpu.memory_space<vmem>>, %arg8: memref<288x384xf32, #tpu.memory_space<vmem>>, %arg9: memref<256x128xf32, #tpu.memory_space<vmem>>) attributes {dimension_semantics = [#tpu.dimension_semantics<parallel>], iteration_bounds = array<i64: 2>, scalar_prefetch = 0 : i64, scratch_operands = 2 : i64, tpu.core_type = #tpu.core_type<tc>, window_params = [{transform_indices = @transform_0, window_bounds = array<i64: 1, 256, 128>}, {pipeline_mode = #tpu.pipeline_mode<synchronous>, transform_indices = @transform_1, window_bounds = array<i64: 3, 384, 128>}, {pipeline_mode = #tpu.pipeline_mode<synchronous>, transform_indices = @transform_2, window_bounds = array<i64: 1, 128>}, {pipeline_mode = #tpu.pipeline_mode<synchronous>, transform_indices = @transform_3, window_bounds = array<i64: 1, 128>}, {transform_indices = @transform_4, window_bounds = array<i64: 1, 256, 128>}, {transform_indices = @transform_5, window_bounds = array<i64: 1, 8, 128>}, {transform_indices = @transform_6, window_bounds = array<i64: 1, 8, 128>}]} {
    %cst = arith.constant 0.000000e+00 : f32
    %0 = vector.broadcast %cst : f32 to vector<16x384xf32>
    %c0 = arith.constant 0 : index
    %c0_0 = arith.constant 0 : index
    %1 = vector.load %arg8[%c0, %c0_0] : memref<288x384xf32, #tpu.memory_space<vmem>>, vector<16x384xf32>
    tpu.vector_store %arg8[%c0, %c0_0], %0 {strides = array<i32>} : memref<288x384xf32, #tpu.memory_space<vmem>>, vector<16x384xf32>,
    %c272 = arith.constant 272 : index
    %c0_1 = arith.constant 0 : index
    %2 = vector.load %arg8[%c272, %c0_1] : memref<288x384xf32, #tpu.memory_space<vmem>>, vector<16x384xf32>
    tpu.vector_store %arg8[%c272, %c0_1], %0 {strides = array<i32>} : memref<288x384xf32, #tpu.memory_space<vmem>>, vector<16x384xf32>,
    %c0_2 = arith.constant 0 : index
    %c0_3 = arith.constant 0 : index
    %c0_4 = arith.constant 0 : index
    %3 = vector.load %arg1[%c0_2, %c0_3, %c0_4] : memref<1x256x128xf32, #tpu.memory_space<vmem>>, vector<1x256x128xf32>
    %4 = vector.shape_cast %3 : vector<1x256x128xf32> to vector<256x128xf32>
    %c0_5 = arith.constant 0 : index
    %c0_6 = arith.constant 0 : index
    %5 = vector.load %arg3[%c0_5, %c0_6] : memref<1x128xf32, #tpu.memory_space<vmem>>, vector<1x128xf32>
    %6 = vector.broadcast %5 : vector<1x128xf32> to vector<256x128xf32>
    %7 = arith.mulf %4, %6 : vector<256x128xf32>
    %c0_7 = arith.constant 0 : index
    %c0_8 = arith.constant 0 : index
    %8 = vector.load %arg4[%c0_7, %c0_8] : memref<1x128xf32, #tpu.memory_space<vmem>>, vector<1x128xf32>
    %9 = vector.broadcast %8 : vector<1x128xf32> to vector<256x128xf32>
    %10 = arith.addf %7, %9 : vector<256x128xf32>
    %cst_9 = arith.constant 0.000000e+00 : f32
    %11 = vector.broadcast %cst_9 : f32 to vector<256x128xf32>
    %12 = arith.cmpf oge, %10, %11 : vector<256x128xf32>
    %cst_10 = arith.constant 0.00999999977 : f32
    %13 = vector.broadcast %cst_10 : f32 to vector<256x128xf32>
    %14 = arith.mulf %13, %10 : vector<256x128xf32>
    %15 = arith.select %12, %10, %14 : vector<256x128xi1>, vector<256x128xf32>
    %c16 = arith.constant 16 : index
    %c128 = arith.constant 128 : index
    %16 = vector.load %arg8[%c16, %c128] : memref<288x384xf32, #tpu.memory_space<vmem>>, vector<256x128xf32>
    tpu.vector_store %arg8[%c16, %c128], %15 {strides = array<i32>} : memref<288x384xf32, #tpu.memory_space<vmem>>, vector<256x128xf32>,
    %17 = tpu.iota {dimensions = array<i32: 0>} : vector<256x1xi32>
    %c15_i32 = arith.constant 15 : i32
    %18 = vector.broadcast %c15_i32 : i32 to vector<256x1xi32>
    %19 = arith.andi %17, %18 : vector<256x1xi32>
    %c1_i32 = arith.constant 1 : i32
    %20 = vector.broadcast %c1_i32 : i32 to vector<256x1xi32>
    %21 = arith.cmpi sge, %19, %20 : vector<256x1xi32>
    %c15 = arith.constant 15 : index
    %c128_11 = arith.constant 128 : index
    %22 = vector.load %arg8[%c15, %c128_11] : memref<288x384xf32, #tpu.memory_space<vmem>>, vector<256x128xf32>
    %cst_12 = arith.constant 0.000000e+00 : f32
    %23 = vector.shape_cast %21 : vector<256x1xi1> to vector<256x1xi1>
    %24 = vector.broadcast %23 : vector<256x1xi1> to vector<256x128xi1>
    %25 = vector.broadcast %cst_12 : f32 to vector<256x128xf32>
    %26 = arith.select %24, %22, %25 : vector<256x128xi1>, vector<256x128xf32>
    %c16_13 = arith.constant 16 : index
    %c0_14 = arith.constant 0 : index
    %27 = vector.load %arg8[%c16_13, %c0_14] : memref<288x384xf32, #tpu.memory_space<vmem>>, vector<256x128xf32>
    tpu.vector_store %arg8[%c16_13, %c0_14], %26 {strides = array<i32>} : memref<288x384xf32, #tpu.memory_space<vmem>>, vector<256x128xf32>,
    %c14_i32 = arith.constant 14 : i32
    %28 = vector.broadcast %c14_i32 : i32 to vector<256x1xi32>
    %29 = arith.cmpi sle, %19, %28 : vector<256x1xi32>
    %c17 = arith.constant 17 : index
    %c128_15 = arith.constant 128 : index
    %30 = vector.load %arg8[%c17, %c128_15] : memref<288x384xf32, #tpu.memory_space<vmem>>, vector<256x128xf32>
    %cst_16 = arith.constant 0.000000e+00 : f32
    %31 = vector.shape_cast %29 : vector<256x1xi1> to vector<256x1xi1>
    %32 = vector.broadcast %31 : vector<256x1xi1> to vector<256x128xi1>
    %33 = vector.broadcast %cst_16 : f32 to vector<256x128xf32>
    %34 = arith.select %32, %30, %33 : vector<256x128xi1>, vector<256x128xf32>
    %c16_17 = arith.constant 16 : index
    %c256 = arith.constant 256 : index
    %35 = vector.load %arg8[%c16_17, %c256] : memref<288x384xf32, #tpu.memory_space<vmem>>, vector<256x128xf32>
    tpu.vector_store %arg8[%c16_17, %c256], %34 {strides = array<i32>} : memref<288x384xf32, #tpu.memory_space<vmem>>, vector<256x128xf32>,
    %c0_18 = arith.constant 0 : index
    %c0_19 = arith.constant 0 : index
    %36 = vector.load %arg8[%c0_18, %c0_19] : memref<288x384xf32, #tpu.memory_space<vmem>>, vector<256x384xf32>
    %c0_20 = arith.constant 0 : index
    %c0_21 = arith.constant 0 : index
    %c0_22 = arith.constant 0 : index
    %37 = vector.load %arg2[%c0_20, %c0_21, %c0_22] : memref<3x384x128xf32, #tpu.memory_space<vmem>>, vector<1x384x128xf32>
    %38 = vector.shape_cast %37 : vector<1x384x128xf32> to vector<384x128xf32>
    %cst_23 = arith.constant dense<0.000000e+00> : vector<256x128xf32>
    %39 = tpu.matmul %36, %38, %cst_23 {dimension_numbers = #tpu.dot_dimension_numbers<[1], [0], [0], [1], [0, 0, 1, 1], [], []>} : vector<256x384xf32>, vector<384x128xf32>, vector<256x128xf32> -> vector<256x128xf32>
    %c0_24 = arith.constant 0 : index
    %c0_25 = arith.constant 0 : index
    %40 = vector.load %arg9[%c0_24, %c0_25] : memref<256x128xf32, #tpu.memory_space<vmem>>, vector<256x128xf32>
    tpu.vector_store %arg9[%c0_24, %c0_25], %39 {strides = array<i32>} : memref<256x128xf32, #tpu.memory_space<vmem>>, vector<256x128xf32>,
    %c16_26 = arith.constant 16 : index
    %c0_27 = arith.constant 0 : index
    %41 = vector.load %arg8[%c16_26, %c0_27] : memref<288x384xf32, #tpu.memory_space<vmem>>, vector<256x384xf32>
    %c1 = arith.constant 1 : index
    %c0_28 = arith.constant 0 : index
    %c0_29 = arith.constant 0 : index
    %42 = vector.load %arg2[%c1, %c0_28, %c0_29] : memref<3x384x128xf32, #tpu.memory_space<vmem>>, vector<1x384x128xf32>
    %43 = vector.shape_cast %42 : vector<1x384x128xf32> to vector<384x128xf32>
    %cst_30 = arith.constant dense<0.000000e+00> : vector<256x128xf32>
    %44 = tpu.matmul %41, %43, %cst_30 {dimension_numbers = #tpu.dot_dimension_numbers<[1], [0], [0], [1], [0, 0, 1, 1], [], []>} : vector<256x384xf32>, vector<384x128xf32>, vector<256x128xf32> -> vector<256x128xf32>
    %c0_31 = arith.constant 0 : index
    %c0_32 = arith.constant 0 : index
    %45 = vector.load %arg9[%c0_31, %c0_32] : memref<256x128xf32, #tpu.memory_space<vmem>>, vector<256x128xf32>
    %46 = arith.addf %45, %44 : vector<256x128xf32>
    %c0_33 = arith.constant 0 : index
    %c0_34 = arith.constant 0 : index
    %47 = vector.load %arg9[%c0_33, %c0_34] : memref<256x128xf32, #tpu.memory_space<vmem>>, vector<256x128xf32>
    tpu.vector_store %arg9[%c0_33, %c0_34], %46 {strides = array<i32>} : memref<256x128xf32, #tpu.memory_space<vmem>>, vector<256x128xf32>,
    %c32 = arith.constant 32 : index
    %c0_35 = arith.constant 0 : index
    %48 = vector.load %arg8[%c32, %c0_35] : memref<288x384xf32, #tpu.memory_space<vmem>>, vector<256x384xf32>
    %c2 = arith.constant 2 : index
    %c0_36 = arith.constant 0 : index
    %c0_37 = arith.constant 0 : index
    %49 = vector.load %arg2[%c2, %c0_36, %c0_37] : memref<3x384x128xf32, #tpu.memory_space<vmem>>, vector<1x384x128xf32>
    %50 = vector.shape_cast %49 : vector<1x384x128xf32> to vector<384x128xf32>
    %cst_38 = arith.constant dense<0.000000e+00> : vector<256x128xf32>
    %51 = tpu.matmul %48, %50, %cst_38 {dimension_numbers = #tpu.dot_dimension_numbers<[1], [0], [0], [1], [0, 0, 1, 1], [], []>} : vector<256x384xf32>, vector<384x128xf32>, vector<256x128xf32> -> vector<256x128xf32>
    %c0_39 = arith.constant 0 : index
    %c0_40 = arith.constant 0 : index
    %52 = vector.load %arg9[%c0_39, %c0_40] : memref<256x128xf32, #tpu.memory_space<vmem>>, vector<256x128xf32>
    %53 = arith.addf %52, %51 : vector<256x128xf32>
    %c0_41 = arith.constant 0 : index
    %c0_42 = arith.constant 0 : index
    %54 = vector.load %arg9[%c0_41, %c0_42] : memref<256x128xf32, #tpu.memory_space<vmem>>, vector<256x128xf32>
    tpu.vector_store %arg9[%c0_41, %c0_42], %53 {strides = array<i32>} : memref<256x128xf32, #tpu.memory_space<vmem>>, vector<256x128xf32>,
    %c0_43 = arith.constant 0 : index
    %c0_44 = arith.constant 0 : index
    %55 = vector.load %arg9[%c0_43, %c0_44] : memref<256x128xf32, #tpu.memory_space<vmem>>, vector<256x128xf32>
    %56 = vector.shape_cast %55 : vector<256x128xf32> to vector<1x256x128xf32>
    %c0_45 = arith.constant 0 : index
    %c0_46 = arith.constant 0 : index
    %c0_47 = arith.constant 0 : index
    %57 = vector.load %arg5[%c0_45, %c0_46, %c0_47] : memref<1x256x128xf32, #tpu.memory_space<vmem>>, vector<1x256x128xf32>
    tpu.vector_store %arg5[%c0_45, %c0_46, %c0_47], %56 {strides = array<i32>} : memref<1x256x128xf32, #tpu.memory_space<vmem>>, vector<1x256x128xf32>,
    %cst_48 = arith.constant dense<0.000000e+00> : vector<128xf32>
    %58 = vector.multi_reduction <add>, %55, %cst_48 [0] : vector<256x128xf32> to vector<128xf32>
    %59 = vector.shape_cast %58 : vector<128xf32> to vector<1x128xf32>
    %60 = arith.mulf %55, %55 : vector<256x128xf32>
    %cst_49 = arith.constant dense<0.000000e+00> : vector<128xf32>
    %61 = vector.multi_reduction <add>, %60, %cst_49 [0] : vector<256x128xf32> to vector<128xf32>
    %62 = vector.shape_cast %61 : vector<128xf32> to vector<1x128xf32>
    %63 = vector.shape_cast %59 : vector<1x128xf32> to vector<1x1x128xf32>
    %64 = vector.shape_cast %63 : vector<1x1x128xf32> to vector<1x1x128xf32>
    %65 = vector.broadcast %64 : vector<1x1x128xf32> to vector<1x8x128xf32>
    %c0_50 = arith.constant 0 : index
    %c0_51 = arith.constant 0 : index
    %c0_52 = arith.constant 0 : index
    %66 = vector.load %arg6[%c0_50, %c0_51, %c0_52] : memref<1x8x128xf32, #tpu.memory_space<vmem>>, vector<1x8x128xf32>
    tpu.vector_store %arg6[%c0_50, %c0_51, %c0_52], %65 {strides = array<i32>} : memref<1x8x128xf32, #tpu.memory_space<vmem>>, vector<1x8x128xf32>,
    %67 = vector.shape_cast %62 : vector<1x128xf32> to vector<1x1x128xf32>
    %68 = vector.shape_cast %67 : vector<1x1x128xf32> to vector<1x1x128xf32>
    %69 = vector.broadcast %68 : vector<1x1x128xf32> to vector<1x8x128xf32>
    %c0_53 = arith.constant 0 : index
    %c0_54 = arith.constant 0 : index
    %c0_55 = arith.constant 0 : index
    %70 = vector.load %arg7[%c0_53, %c0_54, %c0_55] : memref<1x8x128xf32, #tpu.memory_space<vmem>>, vector<1x8x128xf32>
    tpu.vector_store %arg7[%c0_53, %c0_54, %c0_55], %69 {strides = array<i32>} : memref<1x8x128xf32, #tpu.memory_space<vmem>>, vector<1x8x128xf32>,
    return
  }
  func.func @transform_0(%arg0: i32) -> (i32, i32, i32) {
    %c0_i32 = arith.constant 0 : i32
    %c0_i32_0 = arith.constant 0 : i32
    %c0_i32_1 = arith.constant 0 : i32
    return %arg0, %c0_i32, %c0_i32_0 : i32, i32, i32
  }
  func.func @transform_1(%arg0: i32) -> (i32, i32, i32) {
    %c0_i32 = arith.constant 0 : i32
    %c0_i32_0 = arith.constant 0 : i32
    %c0_i32_1 = arith.constant 0 : i32
    %c0_i32_2 = arith.constant 0 : i32
    return %c0_i32, %c0_i32_0, %c0_i32_1 : i32, i32, i32
  }
  func.func @transform_2(%arg0: i32) -> (i32, i32) {
    %c0_i32 = arith.constant 0 : i32
    %c0_i32_0 = arith.constant 0 : i32
    %c0_i32_1 = arith.constant 0 : i32
    return %c0_i32, %c0_i32_0 : i32, i32
  }
  func.func @transform_3(%arg0: i32) -> (i32, i32) {
    %c0_i32 = arith.constant 0 : i32
    %c0_i32_0 = arith.constant 0 : i32
    %c0_i32_1 = arith.constant 0 : i32
    return %c0_i32, %c0_i32_0 : i32, i32
  }
  func.func @transform_4(%arg0: i32) -> (i32, i32, i32) {
    %c0_i32 = arith.constant 0 : i32
    %c0_i32_0 = arith.constant 0 : i32
    %c0_i32_1 = arith.constant 0 : i32
    return %arg0, %c0_i32, %c0_i32_0 : i32, i32, i32
  }
  func.func @transform_5(%arg0: i32) -> (i32, i32, i32) {
    %c0_i32 = arith.constant 0 : i32
    %c0_i32_0 = arith.constant 0 : i32
    %c0_i32_1 = arith.constant 0 : i32
    return %arg0, %c0_i32, %c0_i32_0 : i32, i32, i32
  }
  func.func @transform_6(%arg0: i32) -> (i32, i32, i32) {
    %c0_i32 = arith.constant 0 : i32
    %c0_i32_0 = arith.constant 0 : i32
    %c0_i32_1 = arith.constant 0 : i32
    return %arg0, %c0_i32, %c0_i32_0 : i32, i32, i32
  }
}

module attributes {stable_mosaic.version = 11 : i64} {
  func.func @_k4_bn2_leaky_residual(%arg0: i32, %arg1: memref<512x128xf32, #tpu.memory_space<vmem>>, %arg2: memref<512x128xf32, #tpu.memory_space<vmem>>, %arg3: memref<1x128xf32, #tpu.memory_space<vmem>>, %arg4: memref<1x128xf32, #tpu.memory_space<vmem>>, %arg5: memref<512x128xf32, #tpu.memory_space<vmem>>) attributes {dimension_semantics = [#tpu.dimension_semantics<parallel>], iteration_bounds = array<i64: 1>, scalar_prefetch = 0 : i64, scratch_operands = 0 : i64, tpu.core_type = #tpu.core_type<tc>, window_params = [{transform_indices = @transform_0, window_bounds = array<i64: 512, 128>}, {transform_indices = @transform_1, window_bounds = array<i64: 512, 128>}, {pipeline_mode = #tpu.pipeline_mode<synchronous>, transform_indices = @transform_2, window_bounds = array<i64: 1, 128>}, {pipeline_mode = #tpu.pipeline_mode<synchronous>, transform_indices = @transform_3, window_bounds = array<i64: 1, 128>}, {transform_indices = @transform_4, window_bounds = array<i64: 512, 128>}]} {
    %c0 = arith.constant 0 : index
    %c0_0 = arith.constant 0 : index
    %0 = vector.load %arg1[%c0, %c0_0] : memref<512x128xf32, #tpu.memory_space<vmem>>, vector<512x128xf32>
    %c0_1 = arith.constant 0 : index
    %c0_2 = arith.constant 0 : index
    %1 = vector.load %arg3[%c0_1, %c0_2] : memref<1x128xf32, #tpu.memory_space<vmem>>, vector<1x128xf32>
    %2 = vector.broadcast %1 : vector<1x128xf32> to vector<512x128xf32>
    %3 = arith.mulf %0, %2 : vector<512x128xf32>
    %c0_3 = arith.constant 0 : index
    %c0_4 = arith.constant 0 : index
    %4 = vector.load %arg4[%c0_3, %c0_4] : memref<1x128xf32, #tpu.memory_space<vmem>>, vector<1x128xf32>
    %5 = vector.broadcast %4 : vector<1x128xf32> to vector<512x128xf32>
    %6 = arith.addf %3, %5 : vector<512x128xf32>
    %cst = arith.constant 0.000000e+00 : f32
    %7 = vector.broadcast %cst : f32 to vector<512x128xf32>
    %8 = arith.cmpf oge, %6, %7 : vector<512x128xf32>
    %cst_5 = arith.constant 0.00999999977 : f32
    %9 = vector.broadcast %cst_5 : f32 to vector<512x128xf32>
    %10 = arith.mulf %9, %6 : vector<512x128xf32>
    %11 = arith.select %8, %6, %10 : vector<512x128xi1>, vector<512x128xf32>
    %c0_6 = arith.constant 0 : index
    %c0_7 = arith.constant 0 : index
    %12 = vector.load %arg2[%c0_6, %c0_7] : memref<512x128xf32, #tpu.memory_space<vmem>>, vector<512x128xf32>
    %13 = arith.addf %11, %12 : vector<512x128xf32>
    %c0_8 = arith.constant 0 : index
    %c0_9 = arith.constant 0 : index
    %14 = vector.load %arg5[%c0_8, %c0_9] : memref<512x128xf32, #tpu.memory_space<vmem>>, vector<512x128xf32>
    tpu.vector_store %arg5[%c0_8, %c0_9], %13 {strides = array<i32>} : memref<512x128xf32, #tpu.memory_space<vmem>>, vector<512x128xf32>,
    return
  }
  func.func @transform_0(%arg0: i32) -> (i32, i32) {
    %c0_i32 = arith.constant 0 : i32
    %c0_i32_0 = arith.constant 0 : i32
    return %arg0, %c0_i32 : i32, i32
  }
  func.func @transform_1(%arg0: i32) -> (i32, i32) {
    %c0_i32 = arith.constant 0 : i32
    %c0_i32_0 = arith.constant 0 : i32
    return %arg0, %c0_i32 : i32, i32
  }
  func.func @transform_2(%arg0: i32) -> (i32, i32) {
    %c0_i32 = arith.constant 0 : i32
    %c0_i32_0 = arith.constant 0 : i32
    %c0_i32_1 = arith.constant 0 : i32
    return %c0_i32, %c0_i32_0 : i32, i32
  }
  func.func @transform_3(%arg0: i32) -> (i32, i32) {
    %c0_i32 = arith.constant 0 : i32
    %c0_i32_0 = arith.constant 0 : i32
    %c0_i32_1 = arith.constant 0 : i32
    return %c0_i32, %c0_i32_0 : i32, i32
  }
  func.func @transform_4(%arg0: i32) -> (i32, i32) {
    %c0_i32 = arith.constant 0 : i32
    %c0_i32_0 = arith.constant 0 : i32
    return %arg0, %c0_i32 : i32, i32
  }
}

</mosaic_0001>

<llo_original>
// kernel: dark_residual_block.3
$region0: #{dark_residual_block.3}
  #allocation0 [shape = 'u32[]', space=smem, size = 0x4, offset = 0x4, fixed_abs, tag = 'smem constant byte address 0x4 - core index']
  #allocation1 [shape = 'u32[144,128]{1,0:T(1,128)}', space=vmem, size = 0x12000, scoped, tag = 'internal scratch']
  %s0 = inlined_call_operand.vmem [shape: f32[512,128], index: 0, kind: input, shape index: {}]
  %s1 = inlined_call_operand.vmem [shape: f32[128,128], index: 1, kind: input, shape index: {}]
  %s2 = inlined_call_operand.vmem [shape: f32[512,128], index: 2, kind: output, shape index: {0}]
  %s3 = inlined_call_operand.vmem [shape: f32[1,8,128], index: 3, kind: output, shape index: {1}]
  %s4 = inlined_call_operand.vmem [shape: f32[1,8,128], index: 4, kind: output, shape index: {2}]
  %5 = xla_tuple %s2, %s3, %s4
  %s6 = sld [smem:[#allocation0]]
  $region34: #{dark_residual_block.3} parent=0
    _
  %s8 = ssub.s32 1, %s6
  %s9 = scalar_select 0, %s8, %s6
  // Predicated region
  $region2: #{dark_residual_block.3} parent=0 // pred_check
    _
  $region3: #{dark_residual_block.3} parent=0 // pred_check_branch
    %11 = sbr.rel (0) target = $region5
  $region4: #{dark_residual_block.3} parent=0 // pred_region
    _
  $region5: #{dark_residual_block.3} parent=0 // pred_fallthru
    _
  // Predicated region
  $region6: #{dark_residual_block.3} parent=0 // pred_check
    _
  $region7: #{dark_residual_block.3} parent=0 // pred_check_branch
    %13 = sbr.rel (0) target = $region9
  $region8: #{dark_residual_block.3} parent=0 // pred_region
    _
  $region9: #{dark_residual_block.3} parent=0 // pred_fallthru
    _
  %v14 = vld [vmem:[%s0] sm:$0xff]
  %v15 = vld [vmem:[%s0 + $0x8] sm:$0xff]
  %v16 = vld [vmem:[%s0 + $0x10] sm:$0xff]
  %v17 = vld [vmem:[%s0 + $0x18] sm:$0xff]
  %v18 = vld [vmem:[%s0 + $0x20] sm:$0xff]
  %v19 = vld [vmem:[%s0 + $0x28] sm:$0xff]
  %v20 = vld [vmem:[%s0 + $0x30] sm:$0xff]
  %v21 = vld [vmem:[%s0 + $0x38] sm:$0xff]
  %v22 = vld [vmem:[%s0 + $0x40] sm:$0xff]
  %v23 = vld [vmem:[%s0 + $0x48] sm:$0xff]
  %v24 = vld [vmem:[%s0 + $0x50] sm:$0xff]
  %v25 = vld [vmem:[%s0 + $0x58] sm:$0xff]
  %v26 = vld [vmem:[%s0 + $0x60] sm:$0xff]
  %v27 = vld [vmem:[%s0 + $0x68] sm:$0xff]
  %v28 = vld [vmem:[%s0 + $0x70] sm:$0xff]
  %v29 = vld [vmem:[%s0 + $0x78] sm:$0xff]
  %v30 = vld [vmem:[%s0 + $0x80] sm:$0xff]
  %v31 = vld [vmem:[%s0 + $0x88] sm:$0xff]
  %v32 = vld [vmem:[%s0 + $0x90] sm:$0xff]
  %v33 = vld [vmem:[%s0 + $0x98] sm:$0xff]
  %v34 = vld [vmem:[%s0 + $0xa0] sm:$0xff]
  %v35 = vld [vmem:[%s0 + $0xa8] sm:$0xff]
  %v36 = vld [vmem:[%s0 + $0xb0] sm:$0xff]
  %v37 = vld [vmem:[%s0 + $0xb8] sm:$0xff]
  %v38 = vld [vmem:[%s0 + $0xc0] sm:$0xff]
  %v39 = vld [vmem:[%s0 + $0xc8] sm:$0xff]
  %v40 = vld [vmem:[%s0 + $0xd0] sm:$0xff]
  %v41 = vld [vmem:[%s0 + $0xd8] sm:$0xff]
  %v42 = vld [vmem:[%s0 + $0xe0] sm:$0xff]
  %v43 = vld [vmem:[%s0 + $0xe8] sm:$0xff]
  %v44 = vld [vmem:[%s0 + $0xf0] sm:$0xff]
  %v45 = vld [vmem:[%s0 + $0xf8] sm:$0xff]
  %v46 = vld [vmem:[%s0 + $0x100] sm:$0xff]
  %v47 = vld [vmem:[%s0 + $0x108] sm:$0xff]
  %v48 = vld [vmem:[%s0 + $0x110] sm:$0xff]
  %v49 = vld [vmem:[%s0 + $0x118] sm:$0xff]
  %v50 = vld [vmem:[%s0 + $0x120] sm:$0xff]
  %v51 = vld [vmem:[%s0 + $0x128] sm:$0xff]
  %v52 = vld [vmem:[%s0 + $0x130] sm:$0xff]
  %v53 = vld [vmem:[%s0 + $0x138] sm:$0xff]
  %v54 = vld [vmem:[%s0 + $0x140] sm:$0xff]
  %v55 = vld [vmem:[%s0 + $0x148] sm:$0xff]
  %v56 = vld [vmem:[%s0 + $0x150] sm:$0xff]
  %v57 = vld [vmem:[%s0 + $0x158] sm:$0xff]
  %v58 = vld [vmem:[%s0 + $0x160] sm:$0xff]
  %v59 = vld [vmem:[%s0 + $0x168] sm:$0xff]
  %v60 = vld [vmem:[%s0 + $0x170] sm:$0xff]
  %v61 = vld [vmem:[%s0 + $0x178] sm:$0xff]
  %v62 = vld [vmem:[%s0 + $0x180] sm:$0xff]
  %v63 = vld [vmem:[%s0 + $0x188] sm:$0xff]
  %v64 = vld [vmem:[%s0 + $0x190] sm:$0xff]
  %v65 = vld [vmem:[%s0 + $0x198] sm:$0xff]
  %v66 = vld [vmem:[%s0 + $0x1a0] sm:$0xff]
  %v67 = vld [vmem:[%s0 + $0x1a8] sm:$0xff]
  %v68 = vld [vmem:[%s0 + $0x1b0] sm:$0xff]
  %v69 = vld [vmem:[%s0 + $0x1b8] sm:$0xff]
  %v70 = vld [vmem:[%s0 + $0x1c0] sm:$0xff]
  %v71 = vld [vmem:[%s0 + $0x1c8] sm:$0xff]
  %v72 = vld [vmem:[%s0 + $0x1d0] sm:$0xff]
  %v73 = vld [vmem:[%s0 + $0x1d8] sm:$0xff]
  %v74 = vld [vmem:[%s0 + $0x1e0] sm:$0xff]
  %v75 = vld [vmem:[%s0 + $0x1e8] sm:$0xff]
  %v76 = vld [vmem:[%s0 + $0x1f0] sm:$0xff]
  %v77 = vld [vmem:[%s0 + $0x1f8] sm:$0xff]
  %v78 = vld [vmem:[%s1] sm:$0xff]
  %v79 = vld [vmem:[%s1 + $0x8] sm:$0xff]
  %v80 = vld [vmem:[%s1 + $0x10] sm:$0xff]
  %v81 = vld [vmem:[%s1 + $0x18] sm:$0xff]
  %v82 = vld [vmem:[%s1 + $0x20] sm:$0xff]
  %v83 = vld [vmem:[%s1 + $0x28] sm:$0xff]
  %v84 = vld [vmem:[%s1 + $0x30] sm:$0xff]
  %v85 = vld [vmem:[%s1 + $0x38] sm:$0xff]
  %v86 = vld [vmem:[%s1 + $0x40] sm:$0xff]
  %v87 = vld [vmem:[%s1 + $0x48] sm:$0xff]
  %v88 = vld [vmem:[%s1 + $0x50] sm:$0xff]
  %v89 = vld [vmem:[%s1 + $0x58] sm:$0xff]
  %v90 = vld [vmem:[%s1 + $0x60] sm:$0xff]
  %v91 = vld [vmem:[%s1 + $0x68] sm:$0xff]
  %v92 = vld [vmem:[%s1 + $0x70] sm:$0xff]
  %v93 = vld [vmem:[%s1 + $0x78] sm:$0xff]
  %94 = vmatprep.subr.mxu0 0.0
  %95 = vmatpush1.msra.mxu0 %v93
  %96 = vmatprep.subr.mxu0 0.0
  %97 = vmatpush1.msra.mxu0 %v92
  %98 = vmatprep.subr.mxu0 0.0
  %99 = vmatpush1.msra.mxu0 %v91
  %100 = vmatprep.subr.mxu0 0.0
  %101 = vmatpush1.msra.mxu0 %v90
  %102 = vmatprep.subr.mxu0 0.0
  %103 = vmatpush1.msra.mxu0 %v89
  %104 = vmatprep.subr.mxu0 0.0
  %105 = vmatpush1.msra.mxu0 %v88
  %106 = vmatprep.subr.mxu0 0.0
  %107 = vmatpush1.msra.mxu0 %v87
  %108 = vmatprep.subr.mxu0 0.0
  %109 = vmatpush1.msra.mxu0 %v86
  %110 = vmatprep.subr.mxu0 0.0
  %111 = vmatpush1.msra.mxu0 %v85
  %112 = vmatprep.subr.mxu0 0.0
  %113 = vmatpush1.msra.mxu0 %v84
  %114 = vmatprep.subr.mxu0 0.0
  %115 = vmatpush1.msra.mxu0 %v83
  %116 = vmatprep.subr.mxu0 0.0
  %117 = vmatpush1.msra.mxu0 %v82
  %118 = vmatprep.subr.mxu0 0.0
  %119 = vmatpush1.msra.mxu0 %v81
  %120 = vmatprep.subr.mxu0 0.0
  %121 = vmatpush1.msra.mxu0 %v80
  %122 = vmatprep.subr.mxu0 0.0
  %123 = vmatpush1.msra.mxu0 %v79
  %124 = vmatprep.subr.mxu0 0.0
  %125 = vmatpush1.msra.mxu0 %v78
  %126 = vmatprep.subr.mxu0 0.0
  %127 = vmatpush2.msra.mxu0 0.0
  %128 = vmatprep.subr.mxu0 0.0
  %129 = vmatpush2.msra.mxu0 0.0
  %130 = vmatprep.subr.mxu0 0.0
  %131 = vmatpush2.msra.mxu0 0.0
  %132 = vmatprep.subr.mxu0 0.0
  %133 = vmatpush2.msra.mxu0 0.0
  %134 = vmatprep.subr.mxu0 0.0
  %135 = vmatpush2.msra.mxu0 0.0
  %136 = vmatprep.subr.mxu0 0.0
  %137 = vmatpush2.msra.mxu0 0.0
  %138 = vmatprep.subr.mxu0 0.0
  %139 = vmatpush2.msra.mxu0 0.0
  %140 = vmatprep.subr.mxu0 0.0
  %141 = vmatpush2.msra.mxu0 0.0
  %142 = vmatprep.subr.mxu0 0.0
  %143 = vmatpush2.msra.mxu0 0.0
  %144 = vmatprep.subr.mxu0 0.0
  %145 = vmatpush2.msra.mxu0 0.0
  %146 = vmatprep.subr.mxu0 0.0
  %147 = vmatpush2.msra.mxu0 0.0
  %148 = vmatprep.subr.mxu0 0.0
  %149 = vmatpush2.msra.mxu0 0.0
  %150 = vmatprep.subr.mxu0 0.0
  %151 = vmatpush2.msra.mxu0 0.0
  %152 = vmatprep.subr.mxu0 0.0
  %153 = vmatpush2.msra.mxu0 0.0
  %154 = vmatprep.subr.mxu0 0.0
  %155 = vmatpush2.msra.mxu0 0.0
  %156 = vmatprep.subr.mxu0 0.0
  %157 = vmatpush2.msra.mxu0 0.0
  %158 = vmatprep.mubr.f32.mxu0 0.0
  %159 = vmatmul.mubr.f32.gmra.mxu0 %v14
  %v160 = vpop.f32.mrf.mxu0
  %v161 = vadd.f32 0.0, %v160
  %v162 = vpop.f32.mrf.mxu0
  %163 = vmatprep.mubr.f32.mxu0 0.0
  %164 = vmatmul.mubr.f32.gmra.mxu0 %v15
  %v165 = vpop.f32.mrf.mxu0
  %v166 = vadd.f32 0.0, %v165
  %v167 = vpop.f32.mrf.mxu0
  %168 = vmatprep.mubr.f32.mxu0 0.0
  %169 = vmatmul.mubr.f32.gmra.mxu0 %v16
  %v170 = vpop.f32.mrf.mxu0
  %v171 = vadd.f32 0.0, %v170
  %v172 = vpop.f32.mrf.mxu0
  %173 = vmatprep.mubr.f32.mxu0 0.0
  %174 = vmatmul.mubr.f32.gmra.mxu0 %v17
  %v175 = vpop.f32.mrf.mxu0
  %v176 = vadd.f32 0.0, %v175
  %v177 = vpop.f32.mrf.mxu0
  %178 = vmatprep.mubr.f32.mxu0 0.0
  %179 = vmatmul.mubr.f32.gmra.mxu0 %v18
  %v180 = vpop.f32.mrf.mxu0
  %v181 = vadd.f32 0.0, %v180
  %v182 = vpop.f32.mrf.mxu0
  %183 = vmatprep.mubr.f32.mxu0 0.0
  %184 = vmatmul.mubr.f32.gmra.mxu0 %v19
  %v185 = vpop.f32.mrf.mxu0
  %v186 = vadd.f32 0.0, %v185
  %v187 = vpop.f32.mrf.mxu0
  %188 = vmatprep.mubr.f32.mxu0 0.0
  %189 = vmatmul.mubr.f32.gmra.mxu0 %v20
  %v190 = vpop.f32.mrf.mxu0
  %v191 = vadd.f32 0.0, %v190
  %v192 = vpop.f32.mrf.mxu0
  %193 = vmatprep.mubr.f32.mxu0 0.0
  %194 = vmatmul.mubr.f32.gmra.mxu0 %v21
  %v195 = vpop.f32.mrf.mxu0
  %v196 = vadd.f32 0.0, %v195
  %v197 = vpop.f32.mrf.mxu0
  %198 = vmatprep.mubr.f32.mxu0 0.0
  %199 = vmatmul.mubr.f32.gmra.mxu0 %v22
  %v200 = vpop.f32.mrf.mxu0
  %v201 = vadd.f32 0.0, %v200
  %v202 = vpop.f32.mrf.mxu0
  %203 = vmatprep.mubr.f32.mxu0 0.0
  %204 = vmatmul.mubr.f32.gmra.mxu0 %v23
  %v205 = vpop.f32.mrf.mxu0
  %v206 = vadd.f32 0.0, %v205
  %v207 = vpop.f32.mrf.mxu0
  %208 = vmatprep.mubr.f32.mxu0 0.0
  %209 = vmatmul.mubr.f32.gmra.mxu0 %v24
  %v210 = vpop.f32.mrf.mxu0
  %v211 = vadd.f32 0.0, %v210
  %v212 = vpop.f32.mrf.mxu0
  %213 = vmatprep.mubr.f32.mxu0 0.0
  %214 = vmatmul.mubr.f32.gmra.mxu0 %v25
  %v215 = vpop.f32.mrf.mxu0
  %v216 = vadd.f32 0.0, %v215
  %v217 = vpop.f32.mrf.mxu0
  %218 = vmatprep.mubr.f32.mxu0 0.0
  %219 = vmatmul.mubr.f32.gmra.mxu0 %v26
  %v220 = vpop.f32.mrf.mxu0
  %v221 = vadd.f32 0.0, %v220
  %v222 = vpop.f32.mrf.mxu0
  %223 = vmatprep.mubr.f32.mxu0 0.0
  %224 = vmatmul.mubr.f32.gmra.mxu0 %v27
  %v225 = vpop.f32.mrf.mxu0
  %v226 = vadd.f32 0.0, %v225
  %v227 = vpop.f32.mrf.mxu0
  %228 = vmatprep.mubr.f32.mxu0 0.0
  %229 = vmatmul.mubr.f32.gmra.mxu0 %v28
  %v230 = vpop.f32.mrf.mxu0
  %v231 = vadd.f32 0.0, %v230
  %v232 = vpop.f32.mrf.mxu0
  %233 = vmatprep.mubr.f32.mxu0 0.0
  %234 = vmatmul.mubr.f32.gmra.mxu0 %v29
  %v235 = vpop.f32.mrf.mxu0
  %v236 = vadd.f32 0.0, %v235
  %v237 = vpop.f32.mrf.mxu0
  %238 = vmatprep.mubr.f32.mxu0 0.0
  %239 = vmatmul.mubr.f32.gmra.mxu0 %v30
  %v240 = vpop.f32.mrf.mxu0
  %v241 = vadd.f32 0.0, %v240
  %v242 = vpop.f32.mrf.mxu0
  %243 = vmatprep.mubr.f32.mxu0 0.0
  %244 = vmatmul.mubr.f32.gmra.mxu0 %v31
  %v245 = vpop.f32.mrf.mxu0
  %v246 = vadd.f32 0.0, %v245
  %v247 = vpop.f32.mrf.mxu0
  %248 = vmatprep.mubr.f32.mxu0 0.0
  %249 = vmatmul.mubr.f32.gmra.mxu0 %v32
  %v250 = vpop.f32.mrf.mxu0
  %v251 = vadd.f32 0.0, %v250
  %v252 = vpop.f32.mrf.mxu0
  %253 = vmatprep.mubr.f32.mxu0 0.0
  %254 = vmatmul.mubr.f32.gmra.mxu0 %v33
  %v255 = vpop.f32.mrf.mxu0
  %v256 = vadd.f32 0.0, %v255
  %v257 = vpop.f32.mrf.mxu0
  %258 = vmatprep.mubr.f32.mxu0 0.0
  %259 = vmatmul.mubr.f32.gmra.mxu0 %v34
  %v260 = vpop.f32.mrf.mxu0
  %v261 = vadd.f32 0.0, %v260
  %v262 = vpop.f32.mrf.mxu0
  %263 = vmatprep.mubr.f32.mxu0 0.0
  %264 = vmatmul.mubr.f32.gmra.mxu0 %v35
  %v265 = vpop.f32.mrf.mxu0
  %v266 = vadd.f32 0.0, %v265
  %v267 = vpop.f32.mrf.mxu0
  %268 = vmatprep.mubr.f32.mxu0 0.0
  %269 = vmatmul.mubr.f32.gmra.mxu0 %v36
  %v270 = vpop.f32.mrf.mxu0
  %v271 = vadd.f32 0.0, %v270
  %v272 = vpop.f32.mrf.mxu0
  %273 = vmatprep.mubr.f32.mxu0 0.0
  %274 = vmatmul.mubr.f32.gmra.mxu0 %v37
  %v275 = vpop.f32.mrf.mxu0
  %v276 = vadd.f32 0.0, %v275
  %v277 = vpop.f32.mrf.mxu0
  %278 = vmatprep.mubr.f32.mxu0 0.0
  %279 = vmatmul.mubr.f32.gmra.mxu0 %v38
  %v280 = vpop.f32.mrf.mxu0
  %v281 = vadd.f32 0.0, %v280
  %v282 = vpop.f32.mrf.mxu0
  %283 = vmatprep.mubr.f32.mxu0 0.0
  %284 = vmatmul.mubr.f32.gmra.mxu0 %v39
  %v285 = vpop.f32.mrf.mxu0
  %v286 = vadd.f32 0.0, %v285
  %v287 = vpop.f32.mrf.mxu0
  %288 = vmatprep.mubr.f32.mxu0 0.0
  %289 = vmatmul.mubr.f32.gmra.mxu0 %v40
  %v290 = vpop.f32.mrf.mxu0
  %v291 = vadd.f32 0.0, %v290
  %v292 = vpop.f32.mrf.mxu0
  %293 = vmatprep.mubr.f32.mxu0 0.0
  %294 = vmatmul.mubr.f32.gmra.mxu0 %v41
  %v295 = vpop.f32.mrf.mxu0
  %v296 = vadd.f32 0.0, %v295
  %v297 = vpop.f32.mrf.mxu0
  %298 = vmatprep.mubr.f32.mxu0 0.0
  %299 = vmatmul.mubr.f32.gmra.mxu0 %v42
  %v300 = vpop.f32.mrf.mxu0
  %v301 = vadd.f32 0.0, %v300
  %v302 = vpop.f32.mrf.mxu0
  %303 = vmatprep.mubr.f32.mxu0 0.0
  %304 = vmatmul.mubr.f32.gmra.mxu0 %v43
  %v305 = vpop.f32.mrf.mxu0
  %v306 = vadd.f32 0.0, %v305
  %v307 = vpop.f32.mrf.mxu0
  %308 = vmatprep.mubr.f32.mxu0 0.0
  %309 = vmatmul.mubr.f32.gmra.mxu0 %v44
  %v310 = vpop.f32.mrf.mxu0
  %v311 = vadd.f32 0.0, %v310
  %v312 = vpop.f32.mrf.mxu0
  %313 = vmatprep.mubr.f32.mxu0 0.0
  %314 = vmatmul.mubr.f32.gmra.mxu0 %v45
  %v315 = vpop.f32.mrf.mxu0
  %v316 = vadd.f32 0.0, %v315
  %v317 = vpop.f32.mrf.mxu0
  %318 = vmatprep.mubr.f32.mxu0 0.0
  %319 = vmatmul.mubr.f32.gmra.mxu0 %v46
  %v320 = vpop.f32.mrf.mxu0
  %v321 = vadd.f32 0.0, %v320
  %v322 = vpop.f32.mrf.mxu0
  %323 = vmatprep.mubr.f32.mxu0 0.0
  %324 = vmatmul.mubr.f32.gmra.mxu0 %v47
  %v325 = vpop.f32.mrf.mxu0
  %v326 = vadd.f32 0.0, %v325
  %v327 = vpop.f32.mrf.mxu0
  %328 = vmatprep.mubr.f32.mxu0 0.0
  %329 = vmatmul.mubr.f32.gmra.mxu0 %v48
  %v330 = vpop.f32.mrf.mxu0
  %v331 = vadd.f32 0.0, %v330
  %v332 = vpop.f32.mrf.mxu0
  %333 = vmatprep.mubr.f32.mxu0 0.0
  %334 = vmatmul.mubr.f32.gmra.mxu0 %v49
  %v335 = vpop.f32.mrf.mxu0
  %v336 = vadd.f32 0.0, %v335
  %v337 = vpop.f32.mrf.mxu0
  %338 = vmatprep.mubr.f32.mxu0 0.0
  %339 = vmatmul.mubr.f32.gmra.mxu0 %v50
  %v340 = vpop.f32.mrf.mxu0
  %v341 = vadd.f32 0.0, %v340
  %v342 = vpop.f32.mrf.mxu0
  %343 = vmatprep.mubr.f32.mxu0 0.0
  %344 = vmatmul.mubr.f32.gmra.mxu0 %v51
  %v345 = vpop.f32.mrf.mxu0
  %v346 = vadd.f32 0.0, %v345
  %v347 = vpop.f32.mrf.mxu0
  %348 = vmatprep.mubr.f32.mxu0 0.0
  %349 = vmatmul.mubr.f32.gmra.mxu0 %v52
  %v350 = vpop.f32.mrf.mxu0
  %v351 = vadd.f32 0.0, %v350
  %v352 = vpop.f32.mrf.mxu0
  %353 = vmatprep.mubr.f32.mxu0 0.0
  %354 = vmatmul.mubr.f32.gmra.mxu0 %v53
  %v355 = vpop.f32.mrf.mxu0
  %v356 = vadd.f32 0.0, %v355
  %v357 = vpop.f32.mrf.mxu0
  %358 = vmatprep.mubr.f32.mxu0 0.0
  %359 = vmatmul.mubr.f32.gmra.mxu0 %v54
  %v360 = vpop.f32.mrf.mxu0
  %v361 = vadd.f32 0.0, %v360
  %v362 = vpop.f32.mrf.mxu0
  %363 = vmatprep.mubr.f32.mxu0 0.0
  %364 = vmatmul.mubr.f32.gmra.mxu0 %v55
  %v365 = vpop.f32.mrf.mxu0
  %v366 = vadd.f32 0.0, %v365
  %v367 = vpop.f32.mrf.mxu0
  %368 = vmatprep.mubr.f32.mxu0 0.0
  %369 = vmatmul.mubr.f32.gmra.mxu0 %v56
  %v370 = vpop.f32.mrf.mxu0
  %v371 = vadd.f32 0.0, %v370
  %v372 = vpop.f32.mrf.mxu0
  %373 = vmatprep.mubr.f32.mxu0 0.0
  %374 = vmatmul.mubr.f32.gmra.mxu0 %v57
  %v375 = vpop.f32.mrf.mxu0
  %v376 = vadd.f32 0.0, %v375
  %v377 = vpop.f32.mrf.mxu0
  %378 = vmatprep.mubr.f32.mxu0 0.0
  %379 = vmatmul.mubr.f32.gmra.mxu0 %v58
  %v380 = vpop.f32.mrf.mxu0
  %v381 = vadd.f32 0.0, %v380
  %v382 = vpop.f32.mrf.mxu0
  %383 = vmatprep.mubr.f32.mxu0 0.0
  %384 = vmatmul.mubr.f32.gmra.mxu0 %v59
  %v385 = vpop.f32.mrf.mxu0
  %v386 = vadd.f32 0.0, %v385
  %v387 = vpop.f32.mrf.mxu0
  %388 = vmatprep.mubr.f32.mxu0 0.0
  %389 = vmatmul.mubr.f32.gmra.mxu0 %v60
  %v390 = vpop.f32.mrf.mxu0
  %v391 = vadd.f32 0.0, %v390
  %v392 = vpop.f32.mrf.mxu0
  %393 = vmatprep.mubr.f32.mxu0 0.0
  %394 = vmatmul.mubr.f32.gmra.mxu0 %v61
  %v395 = vpop.f32.mrf.mxu0
  %v396 = vadd.f32 0.0, %v395
  %v397 = vpop.f32.mrf.mxu0
  %398 = vmatprep.mubr.f32.mxu0 0.0
  %399 = vmatmul.mubr.f32.gmra.mxu0 %v62
  %v400 = vpop.f32.mrf.mxu0
  %v401 = vadd.f32 0.0, %v400
  %v402 = vpop.f32.mrf.mxu0
  %403 = vmatprep.mubr.f32.mxu0 0.0
  %404 = vmatmul.mubr.f32.gmra.mxu0 %v63
  %v405 = vpop.f32.mrf.mxu0
  %v406 = vadd.f32 0.0, %v405
  %v407 = vpop.f32.mrf.mxu0
  %408 = vmatprep.mubr.f32.mxu0 0.0
  %409 = vmatmul.mubr.f32.gmra.mxu0 %v64
  %v410 = vpop.f32.mrf.mxu0
  %v411 = vadd.f32 0.0, %v410
  %v412 = vpop.f32.mrf.mxu0
  %413 = vmatprep.mubr.f32.mxu0 0.0
  %414 = vmatmul.mubr.f32.gmra.mxu0 %v65
  %v415 = vpop.f32.mrf.mxu0
  %v416 = vadd.f32 0.0, %v415
  %v417 = vpop.f32.mrf.mxu0
  %418 = vmatprep.mubr.f32.mxu0 0.0
  %419 = vmatmul.mubr.f32.gmra.mxu0 %v66
  %v420 = vpop.f32.mrf.mxu0
  %v421 = vadd.f32 0.0, %v420
  %v422 = vpop.f32.mrf.mxu0
  %423 = vmatprep.mubr.f32.mxu0 0.0
  %424 = vmatmul.mubr.f32.gmra.mxu0 %v67
  %v425 = vpop.f32.mrf.mxu0
  %v426 = vadd.f32 0.0, %v425
  %v427 = vpop.f32.mrf.mxu0
  %428 = vmatprep.mubr.f32.mxu0 0.0
  %429 = vmatmul.mubr.f32.gmra.mxu0 %v68
  %v430 = vpop.f32.mrf.mxu0
  %v431 = vadd.f32 0.0, %v430
  %v432 = vpop.f32.mrf.mxu0
  %433 = vmatprep.mubr.f32.mxu0 0.0
  %434 = vmatmul.mubr.f32.gmra.mxu0 %v69
  %v435 = vpop.f32.mrf.mxu0
  %v436 = vadd.f32 0.0, %v435
  %v437 = vpop.f32.mrf.mxu0
  %438 = vmatprep.mubr.f32.mxu0 0.0
  %439 = vmatmul.mubr.f32.gmra.mxu0 %v70
  %v440 = vpop.f32.mrf.mxu0
  %v441 = vadd.f32 0.0, %v440
  %v442 = vpop.f32.mrf.mxu0
  %443 = vmatprep.mubr.f32.mxu0 0.0
  %444 = vmatmul.mubr.f32.gmra.mxu0 %v71
  %v445 = vpop.f32.mrf.mxu0
  %v446 = vadd.f32 0.0, %v445
  %v447 = vpop.f32.mrf.mxu0
  %448 = vmatprep.mubr.f32.mxu0 0.0
  %449 = vmatmul.mubr.f32.gmra.mxu0 %v72
  %v450 = vpop.f32.mrf.mxu0
  %v451 = vadd.f32 0.0, %v450
  %v452 = vpop.f32.mrf.mxu0
  %453 = vmatprep.mubr.f32.mxu0 0.0
  %454 = vmatmul.mubr.f32.gmra.mxu0 %v73
  %v455 = vpop.f32.mrf.mxu0
  %v456 = vadd.f32 0.0, %v455
  %v457 = vpop.f32.mrf.mxu0
  %458 = vmatprep.mubr.f32.mxu0 0.0
  %459 = vmatmul.mubr.f32.gmra.mxu0 %v74
  %v460 = vpop.f32.mrf.mxu0
  %v461 = vadd.f32 0.0, %v460
  %v462 = vpop.f32.mrf.mxu0
  %463 = vmatprep.mubr.f32.mxu0 0.0
  %464 = vmatmul.mubr.f32.gmra.mxu0 %v75
  %v465 = vpop.f32.mrf.mxu0
  %v466 = vadd.f32 0.0, %v465
  %v467 = vpop.f32.mrf.mxu0
  %468 = vmatprep.mubr.f32.mxu0 0.0
  %469 = vmatmul.mubr.f32.gmra.mxu0 %v76
  %v470 = vpop.f32.mrf.mxu0
  %v471 = vadd.f32 0.0, %v470
  %v472 = vpop.f32.mrf.mxu0
  %473 = vmatprep.mubr.f32.mxu0 0.0
  %474 = vmatmul.mubr.f32.gmra.mxu0 %v77
  %v475 = vpop.f32.mrf.mxu0
  %v476 = vadd.f32 0.0, %v475
  %v477 = vpop.f32.mrf.mxu0
  %478 = vdwg.mxu0
  %479 = vst [vmem:[%s2] sm:$0xff] %v161
  %480 = vst [vmem:[%s2 + $0x8] sm:$0xff] %v166
  %481 = vst [vmem:[%s2 + $0x10] sm:$0xff] %v171
  %482 = vst [vmem:[%s2 + $0x18] sm:$0xff] %v176
  %483 = vst [vmem:[%s2 + $0x20] sm:$0xff] %v181
  %484 = vst [vmem:[%s2 + $0x28] sm:$0xff] %v186
  %485 = vst [vmem:[%s2 + $0x30] sm:$0xff] %v191
  %486 = vst [vmem:[%s2 + $0x38] sm:$0xff] %v196
  %487 = vst [vmem:[%s2 + $0x40] sm:$0xff] %v201
  %488 = vst [vmem:[%s2 + $0x48] sm:$0xff] %v206
  %489 = vst [vmem:[%s2 + $0x50] sm:$0xff] %v211
  %490 = vst [vmem:[%s2 + $0x58] sm:$0xff] %v216
  %491 = vst [vmem:[%s2 + $0x60] sm:$0xff] %v221
  %492 = vst [vmem:[%s2 + $0x68] sm:$0xff] %v226
  %493 = vst [vmem:[%s2 + $0x70] sm:$0xff] %v231
  %494 = vst [vmem:[%s2 + $0x78] sm:$0xff] %v236
  %495 = vst [vmem:[%s2 + $0x80] sm:$0xff] %v241
  %496 = vst [vmem:[%s2 + $0x88] sm:$0xff] %v246
  %497 = vst [vmem:[%s2 + $0x90] sm:$0xff] %v251
  %498 = vst [vmem:[%s2 + $0x98] sm:$0xff] %v256
  %499 = vst [vmem:[%s2 + $0xa0] sm:$0xff] %v261
  %500 = vst [vmem:[%s2 + $0xa8] sm:$0xff] %v266
  %501 = vst [vmem:[%s2 + $0xb0] sm:$0xff] %v271
  %502 = vst [vmem:[%s2 + $0xb8] sm:$0xff] %v276
  %503 = vst [vmem:[%s2 + $0xc0] sm:$0xff] %v281
  %504 = vst [vmem:[%s2 + $0xc8] sm:$0xff] %v286
  %505 = vst [vmem:[%s2 + $0xd0] sm:$0xff] %v291
  %506 = vst [vmem:[%s2 + $0xd8] sm:$0xff] %v296
  %507 = vst [vmem:[%s2 + $0xe0] sm:$0xff] %v301
  %508 = vst [vmem:[%s2 + $0xe8] sm:$0xff] %v306
  %509 = vst [vmem:[%s2 + $0xf0] sm:$0xff] %v311
  %510 = vst [vmem:[%s2 + $0xf8] sm:$0xff] %v316
  %511 = vst [vmem:[%s2 + $0x100] sm:$0xff] %v321
  %512 = vst [vmem:[%s2 + $0x108] sm:$0xff] %v326
  %513 = vst [vmem:[%s2 + $0x110] sm:$0xff] %v331
  %514 = vst [vmem:[%s2 + $0x118] sm:$0xff] %v336
  %515 = vst [vmem:[%s2 + $0x120] sm:$0xff] %v341
  %516 = vst [vmem:[%s2 + $0x128] sm:$0xff] %v346
  %517 = vst [vmem:[%s2 + $0x130] sm:$0xff] %v351
  %518 = vst [vmem:[%s2 + $0x138] sm:$0xff] %v356
  %519 = vst [vmem:[%s2 + $0x140] sm:$0xff] %v361
  %520 = vst [vmem:[%s2 + $0x148] sm:$0xff] %v366
  %521 = vst [vmem:[%s2 + $0x150] sm:$0xff] %v371
  %522 = vst [vmem:[%s2 + $0x158] sm:$0xff] %v376
  %523 = vst [vmem:[%s2 + $0x160] sm:$0xff] %v381
  %524 = vst [vmem:[%s2 + $0x168] sm:$0xff] %v386
  %525 = vst [vmem:[%s2 + $0x170] sm:$0xff] %v391
  %526 = vst [vmem:[%s2 + $0x178] sm:$0xff] %v396
  %527 = vst [vmem:[%s2 + $0x180] sm:$0xff] %v401
  %528 = vst [vmem:[%s2 + $0x188] sm:$0xff] %v406
  %529 = vst [vmem:[%s2 + $0x190] sm:$0xff] %v411
  %530 = vst [vmem:[%s2 + $0x198] sm:$0xff] %v416
  %531 = vst [vmem:[%s2 + $0x1a0] sm:$0xff] %v421
  %532 = vst [vmem:[%s2 + $0x1a8] sm:$0xff] %v426
  %533 = vst [vmem:[%s2 + $0x1b0] sm:$0xff] %v431
  %534 = vst [vmem:[%s2 + $0x1b8] sm:$0xff] %v436
  %535 = vst [vmem:[%s2 + $0x1c0] sm:$0xff] %v441
  %536 = vst [vmem:[%s2 + $0x1c8] sm:$0xff] %v446
  %537 = vst [vmem:[%s2 + $0x1d0] sm:$0xff] %v451
  %538 = vst [vmem:[%s2 + $0x1d8] sm:$0xff] %v456
  %539 = vst [vmem:[%s2 + $0x1e0] sm:$0xff] %v461
  %540 = vst [vmem:[%s2 + $0x1e8] sm:$0xff] %v466
  %541 = vst [vmem:[%s2 + $0x1f0] sm:$0xff] %v471
  %542 = vst [vmem:[%s2 + $0x1f8] sm:$0xff] %v476
  %v543 = vadd.f32 %v161, %v166
  %v544 = vadd.f32 %v543, %v171
  %v545 = vadd.f32 %v544, %v176
  %v546 = vadd.f32 %v545, %v181
  %v547 = vadd.f32 %v546, %v186
  %v548 = vadd.f32 %v547, %v191
  %v549 = vadd.f32 %v548, %v196
  %v550 = vadd.f32 %v549, %v201
  %v551 = vadd.f32 %v550, %v206
  %v552 = vadd.f32 %v551, %v211
  %v553 = vadd.f32 %v552, %v216
  %v554 = vadd.f32 %v553, %v221
  %v555 = vadd.f32 %v554, %v226
  %v556 = vadd.f32 %v555, %v231
  %v557 = vadd.f32 %v556, %v236
  %v558 = vadd.f32 %v557, %v241
  %v559 = vadd.f32 %v558, %v246
  %v560 = vadd.f32 %v559, %v251
  %v561 = vadd.f32 %v560, %v256
  %v562 = vadd.f32 %v561, %v261
  %v563 = vadd.f32 %v562, %v266
  %v564 = vadd.f32 %v563, %v271
  %v565 = vadd.f32 %v564, %v276
  %v566 = vadd.f32 %v565, %v281
  %v567 = vadd.f32 %v566, %v286
  %v568 = vadd.f32 %v567, %v291
  %v569 = vadd.f32 %v568, %v296
  %v570 = vadd.f32 %v569, %v301
  %v571 = vadd.f32 %v570, %v306
  %v572 = vadd.f32 %v571, %v311
  %v573 = vadd.f32 %v572, %v316
  %v574 = vadd.f32 %v573, %v321
  %v575 = vadd.f32 %v574, %v326
  %v576 = vadd.f32 %v575, %v331
  %v577 = vadd.f32 %v576, %v336
  %v578 = vadd.f32 %v577, %v341
  %v579 = vadd.f32 %v578, %v346
  %v580 = vadd.f32 %v579, %v351
  %v581 = vadd.f32 %v580, %v356
  %v582 = vadd.f32 %v581, %v361
  %v583 = vadd.f32 %v582, %v366
  %v584 = vadd.f32 %v583, %v371
  %v585 = vadd.f32 %v584, %v376
  %v586 = vadd.f32 %v585, %v381
  %v587 = vadd.f32 %v586, %v386
  %v588 = vadd.f32 %v587, %v391
  %v589 = vadd.f32 %v588, %v396
  %v590 = vadd.f32 %v589, %v401
  %v591 = vadd.f32 %v590, %v406
  %v592 = vadd.f32 %v591, %v411
  %v593 = vadd.f32 %v592, %v416
  %v594 = vadd.f32 %v593, %v421
  %v595 = vadd.f32 %v594, %v426
  %v596 = vadd.f32 %v595, %v431
  %v597 = vadd.f32 %v596, %v436
  %v598 = vadd.f32 %v597, %v441
  %v599 = vadd.f32 %v598, %v446
  %v600 = vadd.f32 %v599, %v451
  %v601 = vadd.f32 %v600, %v456
  %v602 = vadd.f32 %v601, %v461
  %v603 = vadd.f32 %v602, %v466
  %v604 = vadd.f32 %v603, %v471
  %v605 = vadd.f32 %v604, %v476
  %v606 = vrot.slane %v605, 4
  %v607 = vadd.f32 %v605, %v606
  %v608 = vrot.slane %v607, 2
  %v609 = vadd.f32 %v607, %v608
  %v610 = vrot.slane %v609, 1
  %v611 = vadd.f32 %v609, %v610
  %v612 = vmul.f32 %v161, %v161
  %v613 = vmul.f32 %v166, %v166
  %v614 = vmul.f32 %v171, %v171
  %v615 = vmul.f32 %v176, %v176
  %v616 = vmul.f32 %v181, %v181
  %v617 = vmul.f32 %v186, %v186
  %v618 = vmul.f32 %v191, %v191
  %v619 = vmul.f32 %v196, %v196
  %v620 = vmul.f32 %v201, %v201
  %v621 = vmul.f32 %v206, %v206
  %v622 = vmul.f32 %v211, %v211
  %v623 = vmul.f32 %v216, %v216
  %v624 = vmul.f32 %v221, %v221
  %v625 = vmul.f32 %v226, %v226
  %v626 = vmul.f32 %v231, %v231
  %v627 = vmul.f32 %v236, %v236
  %v628 = vmul.f32 %v241, %v241
  %v629 = vmul.f32 %v246, %v246
  %v630 = vmul.f32 %v251, %v251
  %v631 = vmul.f32 %v256, %v256
  %v632 = vmul.f32 %v261, %v261
  %v633 = vmul.f32 %v266, %v266
  %v634 = vmul.f32 %v271, %v271
  %v635 = vmul.f32 %v276, %v276
  %v636 = vmul.f32 %v281, %v281
  %v637 = vmul.f32 %v286, %v286
  %v638 = vmul.f32 %v291, %v291
  %v639 = vmul.f32 %v296, %v296
  %v640 = vmul.f32 %v301, %v301
  %v641 = vmul.f32 %v306, %v306
  %v642 = vmul.f32 %v311, %v311
  %v643 = vmul.f32 %v316, %v316
  %v644 = vmul.f32 %v321, %v321
  %v645 = vmul.f32 %v326, %v326
  %v646 = vmul.f32 %v331, %v331
  %v647 = vmul.f32 %v336, %v336
  %v648 = vmul.f32 %v341, %v341
  %v649 = vmul.f32 %v346, %v346
  %v650 = vmul.f32 %v351, %v351
  %v651 = vmul.f32 %v356, %v356
  %v652 = vmul.f32 %v361, %v361
  %v653 = vmul.f32 %v366, %v366
  %v654 = vmul.f32 %v371, %v371
  %v655 = vmul.f32 %v376, %v376
  %v656 = vmul.f32 %v381, %v381
  %v657 = vmul.f32 %v386, %v386
  %v658 = vmul.f32 %v391, %v391
  %v659 = vmul.f32 %v396, %v396
  %v660 = vmul.f32 %v401, %v401
  %v661 = vmul.f32 %v406, %v406
  %v662 = vmul.f32 %v411, %v411
  %v663 = vmul.f32 %v416, %v416
  %v664 = vmul.f32 %v421, %v421
  %v665 = vmul.f32 %v426, %v426
  %v666 = vmul.f32 %v431, %v431
  %v667 = vmul.f32 %v436, %v436
  %v668 = vmul.f32 %v441, %v441
  %v669 = vmul.f32 %v446, %v446
  %v670 = vmul.f32 %v451, %v451
  %v671 = vmul.f32 %v456, %v456
  %v672 = vmul.f32 %v461, %v461
  %v673 = vmul.f32 %v466, %v466
  %v674 = vmul.f32 %v471, %v471
  %v675 = vmul.f32 %v476, %v476
  %v676 = vadd.f32 %v612, %v613
  %v677 = vadd.f32 %v676, %v614
  %v678 = vadd.f32 %v677, %v615
  %v679 = vadd.f32 %v678, %v616
  %v680 = vadd.f32 %v679, %v617
  %v681 = vadd.f32 %v680, %v618
  %v682 = vadd.f32 %v681, %v619
  %v683 = vadd.f32 %v682, %v620
  %v684 = vadd.f32 %v683, %v621
  %v685 = vadd.f32 %v684, %v622
  %v686 = vadd.f32 %v685, %v623
  %v687 = vadd.f32 %v686, %v624
  %v688 = vadd.f32 %v687, %v625
  %v689 = vadd.f32 %v688, %v626
  %v690 = vadd.f32 %v689, %v627
  %v691 = vadd.f32 %v690, %v628
  %v692 = vadd.f32 %v691, %v629
  %v693 = vadd.f32 %v692, %v630
  %v694 = vadd.f32 %v693, %v631
  %v695 = vadd.f32 %v694, %v632
  %v696 = vadd.f32 %v695, %v633
  %v697 = vadd.f32 %v696, %v634
  %v698 = vadd.f32 %v697, %v635
  %v699 = vadd.f32 %v698, %v636
  %v700 = vadd.f32 %v699, %v637
  %v701 = vadd.f32 %v700, %v638
  %v702 = vadd.f32 %v701, %v639
  %v703 = vadd.f32 %v702, %v640
  %v704 = vadd.f32 %v703, %v641
  %v705 = vadd.f32 %v704, %v642
  %v706 = vadd.f32 %v705, %v643
  %v707 = vadd.f32 %v706, %v644
  %v708 = vadd.f32 %v707, %v645
  %v709 = vadd.f32 %v708, %v646
  %v710 = vadd.f32 %v709, %v647
  %v711 = vadd.f32 %v710, %v648
  %v712 = vadd.f32 %v711, %v649
  %v713 = vadd.f32 %v712, %v650
  %v714 = vadd.f32 %v713, %v651
  %v715 = vadd.f32 %v714, %v652
  %v716 = vadd.f32 %v715, %v653
  %v717 = vadd.f32 %v716, %v654
  %v718 = vadd.f32 %v717, %v655
  %v719 = vadd.f32 %v718, %v656
  %v720 = vadd.f32 %v719, %v657
  %v721 = vadd.f32 %v720, %v658
  %v722 = vadd.f32 %v721, %v659
  %v723 = vadd.f32 %v722, %v660
  %v724 = vadd.f32 %v723, %v661
  %v725 = vadd.f32 %v724, %v662
  %v726 = vadd.f32 %v725, %v663
  %v727 = vadd.f32 %v726, %v664
  %v728 = vadd.f32 %v727, %v665
  %v729 = vadd.f32 %v728, %v666
  %v730 = vadd.f32 %v729, %v667
  %v731 = vadd.f32 %v730, %v668
  %v732 = vadd.f32 %v731, %v669
  %v733 = vadd.f32 %v732, %v670
  %v734 = vadd.f32 %v733, %v671
  %v735 = vadd.f32 %v734, %v672
  %v736 = vadd.f32 %v735, %v673
  %v737 = vadd.f32 %v736, %v674
  %v738 = vadd.f32 %v737, %v675
  %v739 = vrot.slane %v738, 4
  %v740 = vadd.f32 %v738, %v739
  %v741 = vrot.slane %v740, 2
  %v742 = vadd.f32 %v740, %v741
  %v743 = vrot.slane %v742, 1
  %v744 = vadd.f32 %v742, %v743
  %745 = vst [vmem:[%s3] sm:$0xff] %v611
  %746 = vst [vmem:[%s4] sm:$0xff] %v744
  // Predicated region
  $region10: #{dark_residual_block.3} parent=0 // pred_check
    _
  $region11: #{dark_residual_block.3} parent=0 // pred_check_branch
    %748 = sbr.rel (0) target = $region13
  $region12: #{dark_residual_block.3} parent=0 // pred_region
    _
  $region13: #{dark_residual_block.3} parent=0 // pred_fallthru
    _
  // Predicated region
  $region14: #{dark_residual_block.3} parent=0 // pred_check
    _
  $region15: #{dark_residual_block.3} parent=0 // pred_check_branch
    %750 = sbr.rel (0) target = $region17
  $region16: #{dark_residual_block.3} parent=0 // pred_region
    _
  $region17: #{dark_residual_block.3} parent=0 // pred_fallthru
    _
  // Predicated region
  $region18: #{dark_residual_block.3} parent=0 // pred_check
    _
  $region19: #{dark_residual_block.3} parent=0 // pred_check_branch
    %752 = sbr.rel (0) target = $region21
  $region20: #{dark_residual_block.3} parent=0 // pred_region
    _
  $region21: #{dark_residual_block.3} parent=0 // pred_fallthru
    _
  // Predicated region
  $region22: #{dark_residual_block.3} parent=0 // pred_check
    _
  $region23: #{dark_residual_block.3} parent=0 // pred_check_branch
    %754 = sbr.rel (0) target = $region25
  $region24: #{dark_residual_block.3} parent=0 // pred_region
    _
  $region25: #{dark_residual_block.3} parent=0 // pred_fallthru
    _
  // Predicated region
  $region26: #{dark_residual_block.3} parent=0 // pred_check
    _
  $region27: #{dark_residual_block.3} parent=0 // pred_check_branch
    %756 = sbr.rel (0) target = $region29
  $region28: #{dark_residual_block.3} parent=0 // pred_region
    _
  $region29: #{dark_residual_block.3} parent=0 // pred_fallthru
    _
  // Predicated region
  $region30: #{dark_residual_block.3} parent=0 // pred_check
    _
  $region31: #{dark_residual_block.3} parent=0 // pred_check_branch
    %758 = sbr.rel (0) target = $region33
  $region32: #{dark_residual_block.3} parent=0 // pred_region
    _
  $region33: #{dark_residual_block.3} parent=0 // pred_fallthru
    _

// kernel: dark_residual_block.5
$region0: #{dark_residual_block.5}
  #allocation0 [shape = 'u32[]', space=smem, size = 0x4, offset = 0x4, fixed_abs, tag = 'smem constant byte address 0x4 - core index']
  #allocation1 [shape = 'u32[144,128]{1,0:T(1,128)}', space=vmem, size = 0x12000, scoped, tag = 'internal scratch']
  %s0 = inlined_call_operand.vmem [shape: f32[512,128], index: 0, kind: input, shape index: {}]
  %s1 = inlined_call_operand.vmem [shape: f32[512,128], index: 1, kind: input, shape index: {}]
  %s2 = inlined_call_operand.vmem [shape: f32[1,128], index: 2, kind: input, shape index: {}]
  %s3 = inlined_call_operand.vmem [shape: f32[1,128], index: 3, kind: input, shape index: {}]
  %s4 = inlined_call_operand.vmem [shape: f32[512,128], index: 4, kind: output, shape index: {}]
  %s5 = sld [smem:[#allocation0]]
  $region26: #{dark_residual_block.5} parent=0
    _
  %s7 = ssub.s32 1, %s5
  %s8 = scalar_select 0, %s7, %s5
  // Predicated region
  $region2: #{dark_residual_block.5} parent=0 // pred_check
    _
  $region3: #{dark_residual_block.5} parent=0 // pred_check_branch
    %10 = sbr.rel (0) target = $region5
  $region4: #{dark_residual_block.5} parent=0 // pred_region
    _
  $region5: #{dark_residual_block.5} parent=0 // pred_fallthru
    _
  // Predicated region
  $region6: #{dark_residual_block.5} parent=0 // pred_check
    _
  $region7: #{dark_residual_block.5} parent=0 // pred_check_branch
    %12 = sbr.rel (0) target = $region9
  $region8: #{dark_residual_block.5} parent=0 // pred_region
    _
  $region9: #{dark_residual_block.5} parent=0 // pred_fallthru
    _
  // Predicated region
  $region10: #{dark_residual_block.5} parent=0 // pred_check
    _
  $region11: #{dark_residual_block.5} parent=0 // pred_check_branch
    %14 = sbr.rel (0) target = $region13
  $region12: #{dark_residual_block.5} parent=0 // pred_region
    _
  $region13: #{dark_residual_block.5} parent=0 // pred_fallthru
    _
  // Predicated region
  $region14: #{dark_residual_block.5} parent=0 // pred_check
    _
  $region15: #{dark_residual_block.5} parent=0 // pred_check_branch
    %16 = sbr.rel (0) target = $region17
  $region16: #{dark_residual_block.5} parent=0 // pred_region
    _
  $region17: #{dark_residual_block.5} parent=0 // pred_fallthru
    _
  %v17 = vld [vmem:[%s0] sm:$0xff]
  %v18 = vld [vmem:[%s0 + $0x8] sm:$0xff]
  %v19 = vld [vmem:[%s0 + $0x10] sm:$0xff]
  %v20 = vld [vmem:[%s0 + $0x18] sm:$0xff]
  %v21 = vld [vmem:[%s0 + $0x20] sm:$0xff]
  %v22 = vld [vmem:[%s0 + $0x28] sm:$0xff]
  %v23 = vld [vmem:[%s0 + $0x30] sm:$0xff]
  %v24 = vld [vmem:[%s0 + $0x38] sm:$0xff]
  %v25 = vld [vmem:[%s0 + $0x40] sm:$0xff]
  %v26 = vld [vmem:[%s0 + $0x48] sm:$0xff]
  %v27 = vld [vmem:[%s0 + $0x50] sm:$0xff]
  %v28 = vld [vmem:[%s0 + $0x58] sm:$0xff]
  %v29 = vld [vmem:[%s0 + $0x60] sm:$0xff]
  %v30 = vld [vmem:[%s0 + $0x68] sm:$0xff]
  %v31 = vld [vmem:[%s0 + $0x70] sm:$0xff]
  %v32 = vld [vmem:[%s0 + $0x78] sm:$0xff]
  %v33 = vld [vmem:[%s0 + $0x80] sm:$0xff]
  %v34 = vld [vmem:[%s0 + $0x88] sm:$0xff]
  %v35 = vld [vmem:[%s0 + $0x90] sm:$0xff]
  %v36 = vld [vmem:[%s0 + $0x98] sm:$0xff]
  %v37 = vld [vmem:[%s0 + $0xa0] sm:$0xff]
  %v38 = vld [vmem:[%s0 + $0xa8] sm:$0xff]
  %v39 = vld [vmem:[%s0 + $0xb0] sm:$0xff]
  %v40 = vld [vmem:[%s0 + $0xb8] sm:$0xff]
  %v41 = vld [vmem:[%s0 + $0xc0] sm:$0xff]
  %v42 = vld [vmem:[%s0 + $0xc8] sm:$0xff]
  %v43 = vld [vmem:[%s0 + $0xd0] sm:$0xff]
  %v44 = vld [vmem:[%s0 + $0xd8] sm:$0xff]
  %v45 = vld [vmem:[%s0 + $0xe0] sm:$0xff]
  %v46 = vld [vmem:[%s0 + $0xe8] sm:$0xff]
  %v47 = vld [vmem:[%s0 + $0xf0] sm:$0xff]
  %v48 = vld [vmem:[%s0 + $0xf8] sm:$0xff]
  %v49 = vld [vmem:[%s0 + $0x100] sm:$0xff]
  %v50 = vld [vmem:[%s0 + $0x108] sm:$0xff]
  %v51 = vld [vmem:[%s0 + $0x110] sm:$0xff]
  %v52 = vld [vmem:[%s0 + $0x118] sm:$0xff]
  %v53 = vld [vmem:[%s0 + $0x120] sm:$0xff]
  %v54 = vld [vmem:[%s0 + $0x128] sm:$0xff]
  %v55 = vld [vmem:[%s0 + $0x130] sm:$0xff]
  %v56 = vld [vmem:[%s0 + $0x138] sm:$0xff]
  %v57 = vld [vmem:[%s0 + $0x140] sm:$0xff]
  %v58 = vld [vmem:[%s0 + $0x148] sm:$0xff]
  %v59 = vld [vmem:[%s0 + $0x150] sm:$0xff]
  %v60 = vld [vmem:[%s0 + $0x158] sm:$0xff]
  %v61 = vld [vmem:[%s0 + $0x160] sm:$0xff]
  %v62 = vld [vmem:[%s0 + $0x168] sm:$0xff]
  %v63 = vld [vmem:[%s0 + $0x170] sm:$0xff]
  %v64 = vld [vmem:[%s0 + $0x178] sm:$0xff]
  %v65 = vld [vmem:[%s0 + $0x180] sm:$0xff]
  %v66 = vld [vmem:[%s0 + $0x188] sm:$0xff]
  %v67 = vld [vmem:[%s0 + $0x190] sm:$0xff]
  %v68 = vld [vmem:[%s0 + $0x198] sm:$0xff]
  %v69 = vld [vmem:[%s0 + $0x1a0] sm:$0xff]
  %v70 = vld [vmem:[%s0 + $0x1a8] sm:$0xff]
  %v71 = vld [vmem:[%s0 + $0x1b0] sm:$0xff]
  %v72 = vld [vmem:[%s0 + $0x1b8] sm:$0xff]
  %v73 = vld [vmem:[%s0 + $0x1c0] sm:$0xff]
  %v74 = vld [vmem:[%s0 + $0x1c8] sm:$0xff]
  %v75 = vld [vmem:[%s0 + $0x1d0] sm:$0xff]
  %v76 = vld [vmem:[%s0 + $0x1d8] sm:$0xff]
  %v77 = vld [vmem:[%s0 + $0x1e0] sm:$0xff]
  %v78 = vld [vmem:[%s0 + $0x1e8] sm:$0xff]
  %v79 = vld [vmem:[%s0 + $0x1f0] sm:$0xff]
  %v80 = vld [vmem:[%s0 + $0x1f8] sm:$0xff]
  %v81 = vld [vmem:[%s2] sm:$0x1]
  %v83 = vlaneseq
  %v84 = vshrl.u32 %v83, 7
  %v85 = vsub.s32 0, %v84
  %v86 = vrot.slane %v81, %v85
  %v88 = vmul.f32 %v17, %v86
  %v89 = vmul.f32 %v18, %v86
  %v90 = vmul.f32 %v19, %v86
  %v91 = vmul.f32 %v20, %v86
  %v92 = vmul.f32 %v21, %v86
  %v93 = vmul.f32 %v22, %v86
  %v94 = vmul.f32 %v23, %v86
  %v95 = vmul.f32 %v24, %v86
  %v96 = vmul.f32 %v25, %v86
  %v97 = vmul.f32 %v26, %v86
  %v98 = vmul.f32 %v27, %v86
  %v99 = vmul.f32 %v28, %v86
  %v100 = vmul.f32 %v29, %v86
  %v101 = vmul.f32 %v30, %v86
  %v102 = vmul.f32 %v31, %v86
  %v103 = vmul.f32 %v32, %v86
  %v104 = vmul.f32 %v33, %v86
  %v105 = vmul.f32 %v34, %v86
  %v106 = vmul.f32 %v35, %v86
  %v107 = vmul.f32 %v36, %v86
  %v108 = vmul.f32 %v37, %v86
  %v109 = vmul.f32 %v38, %v86
  %v110 = vmul.f32 %v39, %v86
  %v111 = vmul.f32 %v40, %v86
  %v112 = vmul.f32 %v41, %v86
  %v113 = vmul.f32 %v42, %v86
  %v114 = vmul.f32 %v43, %v86
  %v115 = vmul.f32 %v44, %v86
  %v116 = vmul.f32 %v45, %v86
  %v117 = vmul.f32 %v46, %v86
  %v118 = vmul.f32 %v47, %v86
  %v119 = vmul.f32 %v48, %v86
  %v120 = vmul.f32 %v49, %v86
  %v121 = vmul.f32 %v50, %v86
  %v122 = vmul.f32 %v51, %v86
  %v123 = vmul.f32 %v52, %v86
  %v124 = vmul.f32 %v53, %v86
  %v125 = vmul.f32 %v54, %v86
  %v126 = vmul.f32 %v55, %v86
  %v127 = vmul.f32 %v56, %v86
  %v128 = vmul.f32 %v57, %v86
  %v129 = vmul.f32 %v58, %v86
  %v130 = vmul.f32 %v59, %v86
  %v131 = vmul.f32 %v60, %v86
  %v132 = vmul.f32 %v61, %v86
  %v133 = vmul.f32 %v62, %v86
  %v134 = vmul.f32 %v63, %v86
  %v135 = vmul.f32 %v64, %v86
  %v136 = vmul.f32 %v65, %v86
  %v137 = vmul.f32 %v66, %v86
  %v138 = vmul.f32 %v67, %v86
  %v139 = vmul.f32 %v68, %v86
  %v140 = vmul.f32 %v69, %v86
  %v141 = vmul.f32 %v70, %v86
  %v142 = vmul.f32 %v71, %v86
  %v143 = vmul.f32 %v72, %v86
  %v144 = vmul.f32 %v73, %v86
  %v145 = vmul.f32 %v74, %v86
  %v146 = vmul.f32 %v75, %v86
  %v147 = vmul.f32 %v76, %v86
  %v148 = vmul.f32 %v77, %v86
  %v149 = vmul.f32 %v78, %v86
  %v150 = vmul.f32 %v79, %v86
  %v151 = vmul.f32 %v80, %v86
  %v152 = vld [vmem:[%s3] sm:$0x1]
  %v154 = vlaneseq
  %v155 = vshrl.u32 %v154, 7
  %v156 = vsub.s32 0, %v155
  %v157 = vrot.slane %v152, %v156
  %v159 = vadd.f32 %v88, %v157
  %v160 = vadd.f32 %v89, %v157
  %v161 = vadd.f32 %v90, %v157
  %v162 = vadd.f32 %v91, %v157
  %v163 = vadd.f32 %v92, %v157
  %v164 = vadd.f32 %v93, %v157
  %v165 = vadd.f32 %v94, %v157
  %v166 = vadd.f32 %v95, %v157
  %v167 = vadd.f32 %v96, %v157
  %v168 = vadd.f32 %v97, %v157
  %v169 = vadd.f32 %v98, %v157
  %v170 = vadd.f32 %v99, %v157
  %v171 = vadd.f32 %v100, %v157
  %v172 = vadd.f32 %v101, %v157
  %v173 = vadd.f32 %v102, %v157
  %v174 = vadd.f32 %v103, %v157
  %v175 = vadd.f32 %v104, %v157
  %v176 = vadd.f32 %v105, %v157
  %v177 = vadd.f32 %v106, %v157
  %v178 = vadd.f32 %v107, %v157
  %v179 = vadd.f32 %v108, %v157
  %v180 = vadd.f32 %v109, %v157
  %v181 = vadd.f32 %v110, %v157
  %v182 = vadd.f32 %v111, %v157
  %v183 = vadd.f32 %v112, %v157
  %v184 = vadd.f32 %v113, %v157
  %v185 = vadd.f32 %v114, %v157
  %v186 = vadd.f32 %v115, %v157
  %v187 = vadd.f32 %v116, %v157
  %v188 = vadd.f32 %v117, %v157
  %v189 = vadd.f32 %v118, %v157
  %v190 = vadd.f32 %v119, %v157
  %v191 = vadd.f32 %v120, %v157
  %v192 = vadd.f32 %v121, %v157
  %v193 = vadd.f32 %v122, %v157
  %v194 = vadd.f32 %v123, %v157
  %v195 = vadd.f32 %v124, %v157
  %v196 = vadd.f32 %v125, %v157
  %v197 = vadd.f32 %v126, %v157
  %v198 = vadd.f32 %v127, %v157
  %v199 = vadd.f32 %v128, %v157
  %v200 = vadd.f32 %v129, %v157
  %v201 = vadd.f32 %v130, %v157
  %v202 = vadd.f32 %v131, %v157
  %v203 = vadd.f32 %v132, %v157
  %v204 = vadd.f32 %v133, %v157
  %v205 = vadd.f32 %v134, %v157
  %v206 = vadd.f32 %v135, %v157
  %v207 = vadd.f32 %v136, %v157
  %v208 = vadd.f32 %v137, %v157
  %v209 = vadd.f32 %v138, %v157
  %v210 = vadd.f32 %v139, %v157
  %v211 = vadd.f32 %v140, %v157
  %v212 = vadd.f32 %v141, %v157
  %v213 = vadd.f32 %v142, %v157
  %v214 = vadd.f32 %v143, %v157
  %v215 = vadd.f32 %v144, %v157
  %v216 = vadd.f32 %v145, %v157
  %v217 = vadd.f32 %v146, %v157
  %v218 = vadd.f32 %v147, %v157
  %v219 = vadd.f32 %v148, %v157
  %v220 = vadd.f32 %v149, %v157
  %v221 = vadd.f32 %v150, %v157
  %v222 = vadd.f32 %v151, %v157
  %vm223 = vcmp.ge.f32.partialorder %v159, 0.0
  %vm224 = vcmp.ge.f32.partialorder %v160, 0.0
  %vm225 = vcmp.ge.f32.partialorder %v161, 0.0
  %vm226 = vcmp.ge.f32.partialorder %v162, 0.0
  %vm227 = vcmp.ge.f32.partialorder %v163, 0.0
  %vm228 = vcmp.ge.f32.partialorder %v164, 0.0
  %vm229 = vcmp.ge.f32.partialorder %v165, 0.0
  %vm230 = vcmp.ge.f32.partialorder %v166, 0.0
  %vm231 = vcmp.ge.f32.partialorder %v167, 0.0
  %vm232 = vcmp.ge.f32.partialorder %v168, 0.0
  %vm233 = vcmp.ge.f32.partialorder %v169, 0.0
  %vm234 = vcmp.ge.f32.partialorder %v170, 0.0
  %vm235 = vcmp.ge.f32.partialorder %v171, 0.0
  %vm236 = vcmp.ge.f32.partialorder %v172, 0.0
  %vm237 = vcmp.ge.f32.partialorder %v173, 0.0
  %vm238 = vcmp.ge.f32.partialorder %v174, 0.0
  %vm239 = vcmp.ge.f32.partialorder %v175, 0.0
  %vm240 = vcmp.ge.f32.partialorder %v176, 0.0
  %vm241 = vcmp.ge.f32.partialorder %v177, 0.0
  %vm242 = vcmp.ge.f32.partialorder %v178, 0.0
  %vm243 = vcmp.ge.f32.partialorder %v179, 0.0
  %vm244 = vcmp.ge.f32.partialorder %v180, 0.0
  %vm245 = vcmp.ge.f32.partialorder %v181, 0.0
  %vm246 = vcmp.ge.f32.partialorder %v182, 0.0
  %vm247 = vcmp.ge.f32.partialorder %v183, 0.0
  %vm248 = vcmp.ge.f32.partialorder %v184, 0.0
  %vm249 = vcmp.ge.f32.partialorder %v185, 0.0
  %vm250 = vcmp.ge.f32.partialorder %v186, 0.0
  %vm251 = vcmp.ge.f32.partialorder %v187, 0.0
  %vm252 = vcmp.ge.f32.partialorder %v188, 0.0
  %vm253 = vcmp.ge.f32.partialorder %v189, 0.0
  %vm254 = vcmp.ge.f32.partialorder %v190, 0.0
  %vm255 = vcmp.ge.f32.partialorder %v191, 0.0
  %vm256 = vcmp.ge.f32.partialorder %v192, 0.0
  %vm257 = vcmp.ge.f32.partialorder %v193, 0.0
  %vm258 = vcmp.ge.f32.partialorder %v194, 0.0
  %vm259 = vcmp.ge.f32.partialorder %v195, 0.0
  %vm260 = vcmp.ge.f32.partialorder %v196, 0.0
  %vm261 = vcmp.ge.f32.partialorder %v197, 0.0
  %vm262 = vcmp.ge.f32.partialorder %v198, 0.0
  %vm263 = vcmp.ge.f32.partialorder %v199, 0.0
  %vm264 = vcmp.ge.f32.partialorder %v200, 0.0
  %vm265 = vcmp.ge.f32.partialorder %v201, 0.0
  %vm266 = vcmp.ge.f32.partialorder %v202, 0.0
  %vm267 = vcmp.ge.f32.partialorder %v203, 0.0
  %vm268 = vcmp.ge.f32.partialorder %v204, 0.0
  %vm269 = vcmp.ge.f32.partialorder %v205, 0.0
  %vm270 = vcmp.ge.f32.partialorder %v206, 0.0
  %vm271 = vcmp.ge.f32.partialorder %v207, 0.0
  %vm272 = vcmp.ge.f32.partialorder %v208, 0.0
  %vm273 = vcmp.ge.f32.partialorder %v209, 0.0
  %vm274 = vcmp.ge.f32.partialorder %v210, 0.0
  %vm275 = vcmp.ge.f32.partialorder %v211, 0.0
  %vm276 = vcmp.ge.f32.partialorder %v212, 0.0
  %vm277 = vcmp.ge.f32.partialorder %v213, 0.0
  %vm278 = vcmp.ge.f32.partialorder %v214, 0.0
  %vm279 = vcmp.ge.f32.partialorder %v215, 0.0
  %vm280 = vcmp.ge.f32.partialorder %v216, 0.0
  %vm281 = vcmp.ge.f32.partialorder %v217, 0.0
  %vm282 = vcmp.ge.f32.partialorder %v218, 0.0
  %vm283 = vcmp.ge.f32.partialorder %v219, 0.0
  %vm284 = vcmp.ge.f32.partialorder %v220, 0.0
  %vm285 = vcmp.ge.f32.partialorder %v221, 0.0
  %vm286 = vcmp.ge.f32.partialorder %v222, 0.0
  %v287 = vmul.f32 %v159, 0.01
  %v288 = vmul.f32 %v160, 0.01
  %v289 = vmul.f32 %v161, 0.01
  %v290 = vmul.f32 %v162, 0.01
  %v291 = vmul.f32 %v163, 0.01
  %v292 = vmul.f32 %v164, 0.01
  %v293 = vmul.f32 %v165, 0.01
  %v294 = vmul.f32 %v166, 0.01
  %v295 = vmul.f32 %v167, 0.01
  %v296 = vmul.f32 %v168, 0.01
  %v297 = vmul.f32 %v169, 0.01
  %v298 = vmul.f32 %v170, 0.01
  %v299 = vmul.f32 %v171, 0.01
  %v300 = vmul.f32 %v172, 0.01
  %v301 = vmul.f32 %v173, 0.01
  %v302 = vmul.f32 %v174, 0.01
  %v303 = vmul.f32 %v175, 0.01
  %v304 = vmul.f32 %v176, 0.01
  %v305 = vmul.f32 %v177, 0.01
  %v306 = vmul.f32 %v178, 0.01
  %v307 = vmul.f32 %v179, 0.01
  %v308 = vmul.f32 %v180, 0.01
  %v309 = vmul.f32 %v181, 0.01
  %v310 = vmul.f32 %v182, 0.01
  %v311 = vmul.f32 %v183, 0.01
  %v312 = vmul.f32 %v184, 0.01
  %v313 = vmul.f32 %v185, 0.01
  %v314 = vmul.f32 %v186, 0.01
  %v315 = vmul.f32 %v187, 0.01
  %v316 = vmul.f32 %v188, 0.01
  %v317 = vmul.f32 %v189, 0.01
  %v318 = vmul.f32 %v190, 0.01
  %v319 = vmul.f32 %v191, 0.01
  %v320 = vmul.f32 %v192, 0.01
  %v321 = vmul.f32 %v193, 0.01
  %v322 = vmul.f32 %v194, 0.01
  %v323 = vmul.f32 %v195, 0.01
  %v324 = vmul.f32 %v196, 0.01
  %v325 = vmul.f32 %v197, 0.01
  %v326 = vmul.f32 %v198, 0.01
  %v327 = vmul.f32 %v199, 0.01
  %v328 = vmul.f32 %v200, 0.01
  %v329 = vmul.f32 %v201, 0.01
  %v330 = vmul.f32 %v202, 0.01
  %v331 = vmul.f32 %v203, 0.01
  %v332 = vmul.f32 %v204, 0.01
  %v333 = vmul.f32 %v205, 0.01
  %v334 = vmul.f32 %v206, 0.01
  %v335 = vmul.f32 %v207, 0.01
  %v336 = vmul.f32 %v208, 0.01
  %v337 = vmul.f32 %v209, 0.01
  %v338 = vmul.f32 %v210, 0.01
  %v339 = vmul.f32 %v211, 0.01
  %v340 = vmul.f32 %v212, 0.01
  %v341 = vmul.f32 %v213, 0.01
  %v342 = vmul.f32 %v214, 0.01
  %v343 = vmul.f32 %v215, 0.01
  %v344 = vmul.f32 %v216, 0.01
  %v345 = vmul.f32 %v217, 0.01
  %v346 = vmul.f32 %v218, 0.01
  %v347 = vmul.f32 %v219, 0.01
  %v348 = vmul.f32 %v220, 0.01
  %v349 = vmul.f32 %v221, 0.01
  %v350 = vmul.f32 %v222, 0.01
  %v351 = vsel %vm223, %v159, %v287
  %v352 = vsel %vm224, %v160, %v288
  %v353 = vsel %vm225, %v161, %v289
  %v354 = vsel %vm226, %v162, %v290
  %v355 = vsel %vm227, %v163, %v291
  %v356 = vsel %vm228, %v164, %v292
  %v357 = vsel %vm229, %v165, %v293
  %v358 = vsel %vm230, %v166, %v294
  %v359 = vsel %vm231, %v167, %v295
  %v360 = vsel %vm232, %v168, %v296
  %v361 = vsel %vm233, %v169, %v297
  %v362 = vsel %vm234, %v170, %v298
  %v363 = vsel %vm235, %v171, %v299
  %v364 = vsel %vm236, %v172, %v300
  %v365 = vsel %vm237, %v173, %v301
  %v366 = vsel %vm238, %v174, %v302
  %v367 = vsel %vm239, %v175, %v303
  %v368 = vsel %vm240, %v176, %v304
  %v369 = vsel %vm241, %v177, %v305
  %v370 = vsel %vm242, %v178, %v306
  %v371 = vsel %vm243, %v179, %v307
  %v372 = vsel %vm244, %v180, %v308
  %v373 = vsel %vm245, %v181, %v309
  %v374 = vsel %vm246, %v182, %v310
  %v375 = vsel %vm247, %v183, %v311
  %v376 = vsel %vm248, %v184, %v312
  %v377 = vsel %vm249, %v185, %v313
  %v378 = vsel %vm250, %v186, %v314
  %v379 = vsel %vm251, %v187, %v315
  %v380 = vsel %vm252, %v188, %v316
  %v381 = vsel %vm253, %v189, %v317
  %v382 = vsel %vm254, %v190, %v318
  %v383 = vsel %vm255, %v191, %v319
  %v384 = vsel %vm256, %v192, %v320
  %v385 = vsel %vm257, %v193, %v321
  %v386 = vsel %vm258, %v194, %v322
  %v387 = vsel %vm259, %v195, %v323
  %v388 = vsel %vm260, %v196, %v324
  %v389 = vsel %vm261, %v197, %v325
  %v390 = vsel %vm262, %v198, %v326
  %v391 = vsel %vm263, %v199, %v327
  %v392 = vsel %vm264, %v200, %v328
  %v393 = vsel %vm265, %v201, %v329
  %v394 = vsel %vm266, %v202, %v330
  %v395 = vsel %vm267, %v203, %v331
  %v396 = vsel %vm268, %v204, %v332
  %v397 = vsel %vm269, %v205, %v333
  %v398 = vsel %vm270, %v206, %v334
  %v399 = vsel %vm271, %v207, %v335
  %v400 = vsel %vm272, %v208, %v336
  %v401 = vsel %vm273, %v209, %v337
  %v402 = vsel %vm274, %v210, %v338
  %v403 = vsel %vm275, %v211, %v339
  %v404 = vsel %vm276, %v212, %v340
  %v405 = vsel %vm277, %v213, %v341
  %v406 = vsel %vm278, %v214, %v342
  %v407 = vsel %vm279, %v215, %v343
  %v408 = vsel %vm280, %v216, %v344
  %v409 = vsel %vm281, %v217, %v345
  %v410 = vsel %vm282, %v218, %v346
  %v411 = vsel %vm283, %v219, %v347
  %v412 = vsel %vm284, %v220, %v348
  %v413 = vsel %vm285, %v221, %v349
  %v414 = vsel %vm286, %v222, %v350
  %v415 = vld [vmem:[%s1] sm:$0xff]
  %v416 = vld [vmem:[%s1 + $0x8] sm:$0xff]
  %v417 = vld [vmem:[%s1 + $0x10] sm:$0xff]
  %v418 = vld [vmem:[%s1 + $0x18] sm:$0xff]
  %v419 = vld [vmem:[%s1 + $0x20] sm:$0xff]
  %v420 = vld [vmem:[%s1 + $0x28] sm:$0xff]
  %v421 = vld [vmem:[%s1 + $0x30] sm:$0xff]
  %v422 = vld [vmem:[%s1 + $0x38] sm:$0xff]
  %v423 = vld [vmem:[%s1 + $0x40] sm:$0xff]
  %v424 = vld [vmem:[%s1 + $0x48] sm:$0xff]
  %v425 = vld [vmem:[%s1 + $0x50] sm:$0xff]
  %v426 = vld [vmem:[%s1 + $0x58] sm:$0xff]
  %v427 = vld [vmem:[%s1 + $0x60] sm:$0xff]
  %v428 = vld [vmem:[%s1 + $0x68] sm:$0xff]
  %v429 = vld [vmem:[%s1 + $0x70] sm:$0xff]
  %v430 = vld [vmem:[%s1 + $0x78] sm:$0xff]
  %v431 = vld [vmem:[%s1 + $0x80] sm:$0xff]
  %v432 = vld [vmem:[%s1 + $0x88] sm:$0xff]
  %v433 = vld [vmem:[%s1 + $0x90] sm:$0xff]
  %v434 = vld [vmem:[%s1 + $0x98] sm:$0xff]
  %v435 = vld [vmem:[%s1 + $0xa0] sm:$0xff]
  %v436 = vld [vmem:[%s1 + $0xa8] sm:$0xff]
  %v437 = vld [vmem:[%s1 + $0xb0] sm:$0xff]
  %v438 = vld [vmem:[%s1 + $0xb8] sm:$0xff]
  %v439 = vld [vmem:[%s1 + $0xc0] sm:$0xff]
  %v440 = vld [vmem:[%s1 + $0xc8] sm:$0xff]
  %v441 = vld [vmem:[%s1 + $0xd0] sm:$0xff]
  %v442 = vld [vmem:[%s1 + $0xd8] sm:$0xff]
  %v443 = vld [vmem:[%s1 + $0xe0] sm:$0xff]
  %v444 = vld [vmem:[%s1 + $0xe8] sm:$0xff]
  %v445 = vld [vmem:[%s1 + $0xf0] sm:$0xff]
  %v446 = vld [vmem:[%s1 + $0xf8] sm:$0xff]
  %v447 = vld [vmem:[%s1 + $0x100] sm:$0xff]
  %v448 = vld [vmem:[%s1 + $0x108] sm:$0xff]
  %v449 = vld [vmem:[%s1 + $0x110] sm:$0xff]
  %v450 = vld [vmem:[%s1 + $0x118] sm:$0xff]
  %v451 = vld [vmem:[%s1 + $0x120] sm:$0xff]
  %v452 = vld [vmem:[%s1 + $0x128] sm:$0xff]
  %v453 = vld [vmem:[%s1 + $0x130] sm:$0xff]
  %v454 = vld [vmem:[%s1 + $0x138] sm:$0xff]
  %v455 = vld [vmem:[%s1 + $0x140] sm:$0xff]
  %v456 = vld [vmem:[%s1 + $0x148] sm:$0xff]
  %v457 = vld [vmem:[%s1 + $0x150] sm:$0xff]
  %v458 = vld [vmem:[%s1 + $0x158] sm:$0xff]
  %v459 = vld [vmem:[%s1 + $0x160] sm:$0xff]
  %v460 = vld [vmem:[%s1 + $0x168] sm:$0xff]
  %v461 = vld [vmem:[%s1 + $0x170] sm:$0xff]
  %v462 = vld [vmem:[%s1 + $0x178] sm:$0xff]
  %v463 = vld [vmem:[%s1 + $0x180] sm:$0xff]
  %v464 = vld [vmem:[%s1 + $0x188] sm:$0xff]
  %v465 = vld [vmem:[%s1 + $0x190] sm:$0xff]
  %v466 = vld [vmem:[%s1 + $0x198] sm:$0xff]
  %v467 = vld [vmem:[%s1 + $0x1a0] sm:$0xff]
  %v468 = vld [vmem:[%s1 + $0x1a8] sm:$0xff]
  %v469 = vld [vmem:[%s1 + $0x1b0] sm:$0xff]
  %v470 = vld [vmem:[%s1 + $0x1b8] sm:$0xff]
  %v471 = vld [vmem:[%s1 + $0x1c0] sm:$0xff]
  %v472 = vld [vmem:[%s1 + $0x1c8] sm:$0xff]
  %v473 = vld [vmem:[%s1 + $0x1d0] sm:$0xff]
  %v474 = vld [vmem:[%s1 + $0x1d8] sm:$0xff]
  %v475 = vld [vmem:[%s1 + $0x1e0] sm:$0xff]
  %v476 = vld [vmem:[%s1 + $0x1e8] sm:$0xff]
  %v477 = vld [vmem:[%s1 + $0x1f0] sm:$0xff]
  %v478 = vld [vmem:[%s1 + $0x1f8] sm:$0xff]
  %v479 = vadd.f32 %v351, %v415
  %v480 = vadd.f32 %v352, %v416
  %v481 = vadd.f32 %v353, %v417
  %v482 = vadd.f32 %v354, %v418
  %v483 = vadd.f32 %v355, %v419
  %v484 = vadd.f32 %v356, %v420
  %v485 = vadd.f32 %v357, %v421
  %v486 = vadd.f32 %v358, %v422
  %v487 = vadd.f32 %v359, %v423
  %v488 = vadd.f32 %v360, %v424
  %v489 = vadd.f32 %v361, %v425
  %v490 = vadd.f32 %v362, %v426
  %v491 = vadd.f32 %v363, %v427
  %v492 = vadd.f32 %v364, %v428
  %v493 = vadd.f32 %v365, %v429
  %v494 = vadd.f32 %v366, %v430
  %v495 = vadd.f32 %v367, %v431
  %v496 = vadd.f32 %v368, %v432
  %v497 = vadd.f32 %v369, %v433
  %v498 = vadd.f32 %v370, %v434
  %v499 = vadd.f32 %v371, %v435
  %v500 = vadd.f32 %v372, %v436
  %v501 = vadd.f32 %v373, %v437
  %v502 = vadd.f32 %v374, %v438
  %v503 = vadd.f32 %v375, %v439
  %v504 = vadd.f32 %v376, %v440
  %v505 = vadd.f32 %v377, %v441
  %v506 = vadd.f32 %v378, %v442
  %v507 = vadd.f32 %v379, %v443
  %v508 = vadd.f32 %v380, %v444
  %v509 = vadd.f32 %v381, %v445
  %v510 = vadd.f32 %v382, %v446
  %v511 = vadd.f32 %v383, %v447
  %v512 = vadd.f32 %v384, %v448
  %v513 = vadd.f32 %v385, %v449
  %v514 = vadd.f32 %v386, %v450
  %v515 = vadd.f32 %v387, %v451
  %v516 = vadd.f32 %v388, %v452
  %v517 = vadd.f32 %v389, %v453
  %v518 = vadd.f32 %v390, %v454
  %v519 = vadd.f32 %v391, %v455
  %v520 = vadd.f32 %v392, %v456
  %v521 = vadd.f32 %v393, %v457
  %v522 = vadd.f32 %v394, %v458
  %v523 = vadd.f32 %v395, %v459
  %v524 = vadd.f32 %v396, %v460
  %v525 = vadd.f32 %v397, %v461
  %v526 = vadd.f32 %v398, %v462
  %v527 = vadd.f32 %v399, %v463
  %v528 = vadd.f32 %v400, %v464
  %v529 = vadd.f32 %v401, %v465
  %v530 = vadd.f32 %v402, %v466
  %v531 = vadd.f32 %v403, %v467
  %v532 = vadd.f32 %v404, %v468
  %v533 = vadd.f32 %v405, %v469
  %v534 = vadd.f32 %v406, %v470
  %v535 = vadd.f32 %v407, %v471
  %v536 = vadd.f32 %v408, %v472
  %v537 = vadd.f32 %v409, %v473
  %v538 = vadd.f32 %v410, %v474
  %v539 = vadd.f32 %v411, %v475
  %v540 = vadd.f32 %v412, %v476
  %v541 = vadd.f32 %v413, %v477
  %v542 = vadd.f32 %v414, %v478
  %543 = vst [vmem:[%s4] sm:$0xff] %v479
  %544 = vst [vmem:[%s4 + $0x8] sm:$0xff] %v480
  %545 = vst [vmem:[%s4 + $0x10] sm:$0xff] %v481
  %546 = vst [vmem:[%s4 + $0x18] sm:$0xff] %v482
  %547 = vst [vmem:[%s4 + $0x20] sm:$0xff] %v483
  %548 = vst [vmem:[%s4 + $0x28] sm:$0xff] %v484
  %549 = vst [vmem:[%s4 + $0x30] sm:$0xff] %v485
  %550 = vst [vmem:[%s4 + $0x38] sm:$0xff] %v486
  %551 = vst [vmem:[%s4 + $0x40] sm:$0xff] %v487
  %552 = vst [vmem:[%s4 + $0x48] sm:$0xff] %v488
  %553 = vst [vmem:[%s4 + $0x50] sm:$0xff] %v489
  %554 = vst [vmem:[%s4 + $0x58] sm:$0xff] %v490
  %555 = vst [vmem:[%s4 + $0x60] sm:$0xff] %v491
  %556 = vst [vmem:[%s4 + $0x68] sm:$0xff] %v492
  %557 = vst [vmem:[%s4 + $0x70] sm:$0xff] %v493
  %558 = vst [vmem:[%s4 + $0x78] sm:$0xff] %v494
  %559 = vst [vmem:[%s4 + $0x80] sm:$0xff] %v495
  %560 = vst [vmem:[%s4 + $0x88] sm:$0xff] %v496
  %561 = vst [vmem:[%s4 + $0x90] sm:$0xff] %v497
  %562 = vst [vmem:[%s4 + $0x98] sm:$0xff] %v498
  %563 = vst [vmem:[%s4 + $0xa0] sm:$0xff] %v499
  %564 = vst [vmem:[%s4 + $0xa8] sm:$0xff] %v500
  %565 = vst [vmem:[%s4 + $0xb0] sm:$0xff] %v501
  %566 = vst [vmem:[%s4 + $0xb8] sm:$0xff] %v502
  %567 = vst [vmem:[%s4 + $0xc0] sm:$0xff] %v503
  %568 = vst [vmem:[%s4 + $0xc8] sm:$0xff] %v504
  %569 = vst [vmem:[%s4 + $0xd0] sm:$0xff] %v505
  %570 = vst [vmem:[%s4 + $0xd8] sm:$0xff] %v506
  %571 = vst [vmem:[%s4 + $0xe0] sm:$0xff] %v507
  %572 = vst [vmem:[%s4 + $0xe8] sm:$0xff] %v508
  %573 = vst [vmem:[%s4 + $0xf0] sm:$0xff] %v509
  %574 = vst [vmem:[%s4 + $0xf8] sm:$0xff] %v510
  %575 = vst [vmem:[%s4 + $0x100] sm:$0xff] %v511
  %576 = vst [vmem:[%s4 + $0x108] sm:$0xff] %v512
  %577 = vst [vmem:[%s4 + $0x110] sm:$0xff] %v513
  %578 = vst [vmem:[%s4 + $0x118] sm:$0xff] %v514
  %579 = vst [vmem:[%s4 + $0x120] sm:$0xff] %v515
  %580 = vst [vmem:[%s4 + $0x128] sm:$0xff] %v516
  %581 = vst [vmem:[%s4 + $0x130] sm:$0xff] %v517
  %582 = vst [vmem:[%s4 + $0x138] sm:$0xff] %v518
  %583 = vst [vmem:[%s4 + $0x140] sm:$0xff] %v519
  %584 = vst [vmem:[%s4 + $0x148] sm:$0xff] %v520
  %585 = vst [vmem:[%s4 + $0x150] sm:$0xff] %v521
  %586 = vst [vmem:[%s4 + $0x158] sm:$0xff] %v522
  %587 = vst [vmem:[%s4 + $0x160] sm:$0xff] %v523
  %588 = vst [vmem:[%s4 + $0x168] sm:$0xff] %v524
  %589 = vst [vmem:[%s4 + $0x170] sm:$0xff] %v525
  %590 = vst [vmem:[%s4 + $0x178] sm:$0xff] %v526
  %591 = vst [vmem:[%s4 + $0x180] sm:$0xff] %v527
  %592 = vst [vmem:[%s4 + $0x188] sm:$0xff] %v528
  %593 = vst [vmem:[%s4 + $0x190] sm:$0xff] %v529
  %594 = vst [vmem:[%s4 + $0x198] sm:$0xff] %v530
  %595 = vst [vmem:[%s4 + $0x1a0] sm:$0xff] %v531
  %596 = vst [vmem:[%s4 + $0x1a8] sm:$0xff] %v532
  %597 = vst [vmem:[%s4 + $0x1b0] sm:$0xff] %v533
  %598 = vst [vmem:[%s4 + $0x1b8] sm:$0xff] %v534
  %599 = vst [vmem:[%s4 + $0x1c0] sm:$0xff] %v535
  %600 = vst [vmem:[%s4 + $0x1c8] sm:$0xff] %v536
  %601 = vst [vmem:[%s4 + $0x1d0] sm:$0xff] %v537
  %602 = vst [vmem:[%s4 + $0x1d8] sm:$0xff] %v538
  %603 = vst [vmem:[%s4 + $0x1e0] sm:$0xff] %v539
  %604 = vst [vmem:[%s4 + $0x1e8] sm:$0xff] %v540
  %605 = vst [vmem:[%s4 + $0x1f0] sm:$0xff] %v541
  %606 = vst [vmem:[%s4 + $0x1f8] sm:$0xff] %v542
  // Predicated region
  $region18: #{dark_residual_block.5} parent=0 // pred_check
    _
  $region19: #{dark_residual_block.5} parent=0 // pred_check_branch
    %608 = sbr.rel (0) target = $region21
  $region20: #{dark_residual_block.5} parent=0 // pred_region
    _
  $region21: #{dark_residual_block.5} parent=0 // pred_fallthru
    _
  // Predicated region
  $region22: #{dark_residual_block.5} parent=0 // pred_check
    _
  $region23: #{dark_residual_block.5} parent=0 // pred_check_branch
    %610 = sbr.rel (0) target = $region25
  $region24: #{dark_residual_block.5} parent=0 // pred_region
    _
  $region25: #{dark_residual_block.5} parent=0 // pred_fallthru
    _

// kernel: dark_residual_block.4
$region0: #{dark_residual_block.4}
  #allocation0 [shape = 'u32[]', space=smem, size = 0x4, offset = 0x4, fixed_abs, tag = 'smem constant byte address 0x4 - core index']
  #allocation1 [shape = 'u32[144,128]{1,0:T(1,128)}', space=vmem, size = 0x12000, scoped, tag = 'internal scratch']
  #allocation2 [shape = 'f32[288,384]{1,0:T(8,128)}', space=vmem, size = 0x6c000, scoped, tag = 'scratch operand']
  #allocation3 [shape = 'f32[256,128]{1,0:T(8,128)}', space=vmem, size = 0x20000, scoped, tag = 'scratch operand']
  %s0 = inlined_call_operand.vmem [shape: f32[2,256,128], index: 0, kind: input, shape index: {}]
  %s1 = inlined_call_operand.vmem [shape: f32[3,384,128], index: 1, kind: input, shape index: {}]
  %s2 = inlined_call_operand.vmem [shape: f32[1,128], index: 2, kind: input, shape index: {}]
  %s3 = inlined_call_operand.vmem [shape: f32[1,128], index: 3, kind: input, shape index: {}]
  %s4 = inlined_call_operand.vmem [shape: f32[2,256,128], index: 4, kind: output, shape index: {0}]
  %s5 = inlined_call_operand.vmem [shape: f32[2,8,128], index: 5, kind: output, shape index: {1}]
  %s6 = inlined_call_operand.vmem [shape: f32[2,8,128], index: 6, kind: output, shape index: {2}]
  %7 = xla_tuple %s4, %s5, %s6
  %s8 = sld [smem:[#allocation0]]
  $region65: #{dark_residual_block.4} parent=0
    _
  %s10 = ssub.s32 1, %s8
  %s11 = scalar_select 0, %s10, %s8
  loop: start=0, step=1, limit=4
  $region2: #{dark_residual_block.4} parent=0 // loop_pre_header
    _
  $region3: #{dark_residual_block.4} parent=0 // loop_header
    %s13 = sphi 0, %s17
    %p14 = scmp.ge.s32.totalorder %s13, 4
    %s23 = sphi 0, %s25
    %s26 = sphi 0, %s23
    %s27 = sphi 0, %s26
    %s43 = sphi 0, %s27
    %s47 = sphi 0, %s47
    %s49 = sphi 0, %s47
    %s50 = sphi 0, %s49
    %s64 = sphi 0, %s50
    %s68 = sphi 0, %s68
    %s70 = sphi 0, %s68
    %s71 = sphi 0, %s70
    %s85 = sphi 0, %s71
    %s89 = sphi 0, %s89
    %s91 = sphi 0, %s89
    %s92 = sphi 0, %s91
    %s106 = sphi 0, %s92
    %s112 = sphi 0, %s114
    %s115 = sphi 0, %s112
    %s116 = sphi 0, %s115
    %s132 = sphi 0, %s116
    %s138 = sphi 0, %s140
    %s141 = sphi 0, %s138
    %s142 = sphi 0, %s141
    %s158 = sphi 0, %s142
    %s164 = sphi 0, %s166
    %s167 = sphi 0, %s164
    %s168 = sphi 0, %s167
    %s184 = sphi 0, %s168
  $region4: #{dark_residual_block.4} parent=0 // loop_header_branch
    %16 = sbr.rel (%p14) target = $region8
  $region5: #{dark_residual_block.4} parent=0 // loop_body
    %s18 = ssub.s32 %s13, 1
    %s19 = ssub.s32 %s13, 2
    %s20 = sadd.s32 %s13, 1
    %s21 = ssub.s32 %s13, %s20
    %p22 = scmp.eq.s32.totalorder %s21, 0
    %s24 = sadd.s32 %s23, 1
    %s25 = scalar_select %p22, %s23, %s24
    %p28 = pneg %p22
    %p29 = scmp.eq.s32.totalorder %s13, 1
    %p30 = por %p28, %p29
    %p31 = scmp.ne.s32.totalorder %s23, %s26
    %p32 = scmp.eq.s32.totalorder %s13, 0
    %p33 = por %p31, %p32
    %p34 = scmp.ne.s32.totalorder %s23, %s26
    %p35 = scmp.eq.s32.totalorder %s18, 1
    %p36 = por %p34, %p35
    %p37 = scmp.ne.s32.totalorder %s26, %s27
    %p38 = scmp.eq.s32.totalorder %s18, 0
    %p39 = por %p37, %p38
    %p40 = scmp.ne.s32.totalorder %s26, %s27
    %p41 = scmp.eq.s32.totalorder %s19, 1
    %p42 = por %p40, %p41
    %p44 = scmp.ne.s32.totalorder %s27, %s43
    %p45 = scmp.eq.s32.totalorder %s19, 0
    %p46 = por %p44, %p45
    %s48 = sadd.s32 %s47, 1
    %p51 = scmp.eq.s32.totalorder %s13, 1
    %p52 = scmp.ne.s32.totalorder %s47, %s49
    %p53 = scmp.eq.s32.totalorder %s13, 0
    %p54 = por %p52, %p53
    %p55 = scmp.ne.s32.totalorder %s47, %s49
    %p56 = scmp.eq.s32.totalorder %s18, 1
    %p57 = por %p55, %p56
    %p58 = scmp.ne.s32.totalorder %s49, %s50
    %p59 = scmp.eq.s32.totalorder %s18, 0
    %p60 = por %p58, %p59
    %p61 = scmp.ne.s32.totalorder %s49, %s50
    %p62 = scmp.eq.s32.totalorder %s19, 1
    %p63 = por %p61, %p62
    %p65 = scmp.ne.s32.totalorder %s50, %s64
    %p66 = scmp.eq.s32.totalorder %s19, 0
    %p67 = por %p65, %p66
    %s69 = sadd.s32 %s68, 1
    %p72 = scmp.eq.s32.totalorder %s13, 1
    %p73 = scmp.ne.s32.totalorder %s68, %s70
    %p74 = scmp.eq.s32.totalorder %s13, 0
    %p75 = por %p73, %p74
    %p76 = scmp.ne.s32.totalorder %s68, %s70
    %p77 = scmp.eq.s32.totalorder %s18, 1
    %p78 = por %p76, %p77
    %p79 = scmp.ne.s32.totalorder %s70, %s71
    %p80 = scmp.eq.s32.totalorder %s18, 0
    %p81 = por %p79, %p80
    %p82 = scmp.ne.s32.totalorder %s70, %s71
    %p83 = scmp.eq.s32.totalorder %s19, 1
    %p84 = por %p82, %p83
    %p86 = scmp.ne.s32.totalorder %s71, %s85
    %p87 = scmp.eq.s32.totalorder %s19, 0
    %p88 = por %p86, %p87
    %s90 = sadd.s32 %s89, 1
    %p93 = scmp.eq.s32.totalorder %s13, 1
    %p94 = scmp.ne.s32.totalorder %s89, %s91
    %p95 = scmp.eq.s32.totalorder %s13, 0
    %p96 = por %p94, %p95
    %p97 = scmp.ne.s32.totalorder %s89, %s91
    %p98 = scmp.eq.s32.totalorder %s18, 1
    %p99 = por %p97, %p98
    %p100 = scmp.ne.s32.totalorder %s91, %s92
    %p101 = scmp.eq.s32.totalorder %s18, 0
    %p102 = por %p100, %p101
    %p103 = scmp.ne.s32.totalorder %s91, %s92
    %p104 = scmp.eq.s32.totalorder %s19, 1
    %p105 = por %p103, %p104
    %p107 = scmp.ne.s32.totalorder %s92, %s106
    %p108 = scmp.eq.s32.totalorder %s19, 0
    %p109 = por %p107, %p108
    %s110 = ssub.s32 %s13, %s20
    %p111 = scmp.eq.s32.totalorder %s110, 0
    %s113 = sadd.s32 %s112, 1
    %s114 = scalar_select %p111, %s112, %s113
    %p117 = pneg %p111
    %p118 = scmp.eq.s32.totalorder %s13, 1
    %p119 = por %p117, %p118
    %p120 = scmp.ne.s32.totalorder %s112, %s115
    %p121 = scmp.eq.s32.totalorder %s13, 0
    %p122 = por %p120, %p121
    %p123 = scmp.ne.s32.totalorder %s112, %s115
    %p124 = scmp.eq.s32.totalorder %s18, 1
    %p125 = por %p123, %p124
    %p126 = scmp.ne.s32.totalorder %s115, %s116
    %p127 = scmp.eq.s32.totalorder %s18, 0
    %p128 = por %p126, %p127
    %p129 = scmp.ne.s32.totalorder %s115, %s116
    %p130 = scmp.eq.s32.totalorder %s19, 1
    %p131 = por %p129, %p130
    %p133 = scmp.ne.s32.totalorder %s116, %s132
    %p134 = scmp.eq.s32.totalorder %s19, 0
    %p135 = por %p133, %p134
    %s136 = ssub.s32 %s13, %s20
    %p137 = scmp.eq.s32.totalorder %s136, 0
    %s139 = sadd.s32 %s138, 1
    %s140 = scalar_select %p137, %s138, %s139
    %p143 = pneg %p137
    %p144 = scmp.eq.s32.totalorder %s13, 1
    %p145 = por %p143, %p144
    %p146 = scmp.ne.s32.totalorder %s138, %s141
    %p147 = scmp.eq.s32.totalorder %s13, 0
    %p148 = por %p146, %p147
    %p149 = scmp.ne.s32.totalorder %s138, %s141
    %p150 = scmp.eq.s32.totalorder %s18, 1
    %p151 = por %p149, %p150
    %p152 = scmp.ne.s32.totalorder %s141, %s142
    %p153 = scmp.eq.s32.totalorder %s18, 0
    %p154 = por %p152, %p153
    %p155 = scmp.ne.s32.totalorder %s141, %s142
    %p156 = scmp.eq.s32.totalorder %s19, 1
    %p157 = por %p155, %p156
    %p159 = scmp.ne.s32.totalorder %s142, %s158
    %p160 = scmp.eq.s32.totalorder %s19, 0
    %p161 = por %p159, %p160
    %s162 = ssub.s32 %s13, %s20
    %p163 = scmp.eq.s32.totalorder %s162, 0
    %s165 = sadd.s32 %s164, 1
    %s166 = scalar_select %p163, %s164, %s165
    %p169 = pneg %p163
    %p170 = scmp.eq.s32.totalorder %s13, 1
    %p171 = por %p169, %p170
    %p172 = scmp.ne.s32.totalorder %s164, %s167
    %p173 = scmp.eq.s32.totalorder %s13, 0
    %p174 = por %p172, %p173
    %p175 = scmp.ne.s32.totalorder %s164, %s167
    %p176 = scmp.eq.s32.totalorder %s18, 1
    %p177 = por %p175, %p176
    %p178 = scmp.ne.s32.totalorder %s167, %s168
    %p179 = scmp.eq.s32.totalorder %s18, 0
    %p180 = por %p178, %p179
    %p181 = scmp.ne.s32.totalorder %s167, %s168
    %p182 = scmp.eq.s32.totalorder %s19, 1
    %p183 = por %p181, %p182
    %p185 = scmp.ne.s32.totalorder %s168, %s184
    %p186 = scmp.eq.s32.totalorder %s19, 0
    %p187 = por %p185, %p186
    %p188 = scmp.le.s32.totalorder 1, %s13
    %p189 = scmp.lt.s32.totalorder %s13, 3
    %p190 = pnand %p188, %p189
    %p191 = pneg %p190
    // Predicated region
    $region9: #{dark_residual_block.4} parent=5 // pred_check
      _
    $region10: #{dark_residual_block.4} parent=5 // pred_check_branch
      %193 = sbr.rel (%p190) target = $region12
    $region11: #{dark_residual_block.4} parent=5 // pred_region
      %s194 = ssub.s32 %s13, 1
      // Predicated region
      $region13: #{dark_residual_block.4} parent=11 // pred_check
        %p195 = pneg %p60
      $region14: #{dark_residual_block.4} parent=11 // pred_check_branch
        %197 = sbr.rel (%p195) target = $region16
      $region15: #{dark_residual_block.4} parent=11 // pred_region
        _
      $region16: #{dark_residual_block.4} parent=11 // pred_fallthru
        _
      // Predicated region
      $region17: #{dark_residual_block.4} parent=11 // pred_check
        %p198 = pneg %p81
      $region18: #{dark_residual_block.4} parent=11 // pred_check_branch
        %200 = sbr.rel (%p198) target = $region20
      $region19: #{dark_residual_block.4} parent=11 // pred_region
        _
      $region20: #{dark_residual_block.4} parent=11 // pred_fallthru
        _
      // Predicated region
      $region21: #{dark_residual_block.4} parent=11 // pred_check
        %p201 = pneg %p102
      $region22: #{dark_residual_block.4} parent=11 // pred_check_branch
        %203 = sbr.rel (%p201) target = $region24
      $region23: #{dark_residual_block.4} parent=11 // pred_region
        _
      $region24: #{dark_residual_block.4} parent=11 // pred_fallthru
        _
    $region12: #{dark_residual_block.4} parent=5 // pred_fallthru
      _
    %p204 = scmp.lt.s32.totalorder %s13, 2
    // Predicated region
    $region25: #{dark_residual_block.4} parent=5 // pred_check
      %p205 = pneg %p204
    $region26: #{dark_residual_block.4} parent=5 // pred_check_branch
      %207 = sbr.rel (%p205) target = $region28
    $region27: #{dark_residual_block.4} parent=5 // pred_region
      // Predicated region
      $region29: #{dark_residual_block.4} parent=27 // pred_check
        %p208 = pneg %p33
      $region30: #{dark_residual_block.4} parent=27 // pred_check_branch
        %210 = sbr.rel (%p208) target = $region32
      $region31: #{dark_residual_block.4} parent=27 // pred_region
        %p211 = scmp.lt.s32.totalorder %s13, 1
        %s212 = scalar_select %p211, %s13, 1
        %s213 = smul.addr %s212, 32
        %s214 = smul.addr %s213, 8
        %s215 = scalar_lea.vmem %s0, %s214
      $region32: #{dark_residual_block.4} parent=27 // pred_fallthru
        _
    $region28: #{dark_residual_block.4} parent=5 // pred_fallthru
      _
    %p216 = scmp.le.s32.totalorder 1, %s13
    %p217 = scmp.lt.s32.totalorder %s13, 3
    %p218 = pnand %p216, %p217
    %p219 = pneg %p218
    // Predicated region
    $region33: #{dark_residual_block.4} parent=5 // pred_check
      _
    $region34: #{dark_residual_block.4} parent=5 // pred_check_branch
      %221 = sbr.rel (%p218) target = $region36
    $region35: #{dark_residual_block.4} parent=5 // pred_region
      %s222 = ssub.s32 %s13, 1
      %p223 = scmp.lt.s32.totalorder %s18, 1
      %s224 = scalar_select %p223, %s18, 1
      %s225 = smul.addr %s224, 32
      %s226 = smul.addr %s225, 8
      %s227 = scalar_lea.vmem %s0, %s226
      %p228 = pneg %p39
      %p229 = pneg %p36
      %p230 = pneg %p60
      %p231 = pneg %p57
      %p232 = pneg %p81
      %p233 = pneg %p78
      %p234 = pneg %p102
      %p235 = pneg %p99
      %p236 = pneg %p128
      %p237 = pneg %p125
      %p238 = scmp.lt.s32.totalorder %s18, 1
      %s239 = scalar_select %p238, %s18, 1
      %s240 = smul.addr %s239, 32
      %s241 = smul.addr %s240, 8
      %s242 = scalar_lea.vmem %s4, %s241
      %p243 = pneg %p154
      %p244 = pneg %p151
      %p245 = scmp.lt.s32.totalorder %s18, 1
      %s246 = scalar_select %p245, %s18, 1
      %s247 = smul.addr %s246, 8
      %s248 = scalar_lea.vmem %s5, %s247
      %p249 = pneg %p180
      %p250 = pneg %p177
      %p251 = scmp.lt.s32.totalorder %s18, 1
      %s252 = scalar_select %p251, %s18, 1
      %s253 = smul.addr %s252, 8
      %s254 = scalar_lea.vmem %s6, %s253
      %p255 = scmp.lt.s32.totalorder %s18, 1
      %s256 = scalar_select %p255, %s18, 1
      %s257 = smul.addr %s256, 32
      %s258 = smul.addr %s257, 8
      %s259 = scalar_lea.vmem %s0, %s258
      %p260 = scmp.lt.s32.totalorder %s18, 1
      %s261 = scalar_select %p260, %s18, 1
      %s262 = smul.addr %s261, 32
      %s263 = smul.addr %s262, 8
      %s264 = scalar_lea.vmem %s4, %s263
      %p265 = scmp.lt.s32.totalorder %s18, 1
      %s266 = scalar_select %p265, %s18, 1
      %s267 = smul.addr %s266, 8
      %s268 = scalar_lea.vmem %s5, %s267
      %p269 = scmp.lt.s32.totalorder %s18, 1
      %s270 = scalar_select %p269, %s18, 1
      %s271 = smul.addr %s270, 8
      %s272 = scalar_lea.vmem %s6, %s271
      %273 = vst [vmem:[#allocation2] sm:$0xff] 0.0
      %274 = vst [vmem:[#allocation2 + $0x8] sm:$0xff] 0.0
      %275 = vst [vmem:[#allocation2 + $0x10] sm:$0xff] 0.0
      %276 = vst [vmem:[#allocation2 + $0x18] sm:$0xff] 0.0
      %277 = vst [vmem:[#allocation2 + $0x20] sm:$0xff] 0.0
      %278 = vst [vmem:[#allocation2 + $0x28] sm:$0xff] 0.0
      %279 = vst [vmem:[#allocation2 + $0x330] sm:$0xff] 0.0
      %280 = vst [vmem:[#allocation2 + $0x338] sm:$0xff] 0.0
      %281 = vst [vmem:[#allocation2 + $0x340] sm:$0xff] 0.0
      %282 = vst [vmem:[#allocation2 + $0x348] sm:$0xff] 0.0
      %283 = vst [vmem:[#allocation2 + $0x350] sm:$0xff] 0.0
      %284 = vst [vmem:[#allocation2 + $0x358] sm:$0xff] 0.0
      %v285 = vld [vmem:[%s259] sm:$0xff]
      %v286 = vld [vmem:[%s259 + $0x8] sm:$0xff]
      %v287 = vld [vmem:[%s259 + $0x10] sm:$0xff]
      %v288 = vld [vmem:[%s259 + $0x18] sm:$0xff]
      %v289 = vld [vmem:[%s259 + $0x20] sm:$0xff]
      %v290 = vld [vmem:[%s259 + $0x28] sm:$0xff]
      %v291 = vld [vmem:[%s259 + $0x30] sm:$0xff]
      %v292 = vld [vmem:[%s259 + $0x38] sm:$0xff]
      %v293 = vld [vmem:[%s259 + $0x40] sm:$0xff]
      %v294 = vld [vmem:[%s259 + $0x48] sm:$0xff]
      %v295 = vld [vmem:[%s259 + $0x50] sm:$0xff]
      %v296 = vld [vmem:[%s259 + $0x58] sm:$0xff]
      %v297 = vld [vmem:[%s259 + $0x60] sm:$0xff]
      %v298 = vld [vmem:[%s259 + $0x68] sm:$0xff]
      %v299 = vld [vmem:[%s259 + $0x70] sm:$0xff]
      %v300 = vld [vmem:[%s259 + $0x78] sm:$0xff]
      %v301 = vld [vmem:[%s259 + $0x80] sm:$0xff]
      %v302 = vld [vmem:[%s259 + $0x88] sm:$0xff]
      %v303 = vld [vmem:[%s259 + $0x90] sm:$0xff]
      %v304 = vld [vmem:[%s259 + $0x98] sm:$0xff]
      %v305 = vld [vmem:[%s259 + $0xa0] sm:$0xff]
      %v306 = vld [vmem:[%s259 + $0xa8] sm:$0xff]
      %v307 = vld [vmem:[%s259 + $0xb0] sm:$0xff]
      %v308 = vld [vmem:[%s259 + $0xb8] sm:$0xff]
      %v309 = vld [vmem:[%s259 + $0xc0] sm:$0xff]
      %v310 = vld [vmem:[%s259 + $0xc8] sm:$0xff]
      %v311 = vld [vmem:[%s259 + $0xd0] sm:$0xff]
      %v312 = vld [vmem:[%s259 + $0xd8] sm:$0xff]
      %v313 = vld [vmem:[%s259 + $0xe0] sm:$0xff]
      %v314 = vld [vmem:[%s259 + $0xe8] sm:$0xff]
      %v315 = vld [vmem:[%s259 + $0xf0] sm:$0xff]
      %v316 = vld [vmem:[%s259 + $0xf8] sm:$0xff]
      %v317 = vld [vmem:[%s2] sm:$0x1]
      %v319 = vlaneseq
      %v320 = vshrl.u32 %v319, 7
      %v321 = vsub.s32 0, %v320
      %v322 = vrot.slane %v317, %v321
      %v324 = vmul.f32 %v285, %v322
      %v325 = vmul.f32 %v286, %v322
      %v326 = vmul.f32 %v287, %v322
      %v327 = vmul.f32 %v288, %v322
      %v328 = vmul.f32 %v289, %v322
      %v329 = vmul.f32 %v290, %v322
      %v330 = vmul.f32 %v291, %v322
      %v331 = vmul.f32 %v292, %v322
      %v332 = vmul.f32 %v293, %v322
      %v333 = vmul.f32 %v294, %v322
      %v334 = vmul.f32 %v295, %v322
      %v335 = vmul.f32 %v296, %v322
      %v336 = vmul.f32 %v297, %v322
      %v337 = vmul.f32 %v298, %v322
      %v338 = vmul.f32 %v299, %v322
      %v339 = vmul.f32 %v300, %v322
      %v340 = vmul.f32 %v301, %v322
      %v341 = vmul.f32 %v302, %v322
      %v342 = vmul.f32 %v303, %v322
      %v343 = vmul.f32 %v304, %v322
      %v344 = vmul.f32 %v305, %v322
      %v345 = vmul.f32 %v306, %v322
      %v346 = vmul.f32 %v307, %v322
      %v347 = vmul.f32 %v308, %v322
      %v348 = vmul.f32 %v309, %v322
      %v349 = vmul.f32 %v310, %v322
      %v350 = vmul.f32 %v311, %v322
      %v351 = vmul.f32 %v312, %v322
      %v352 = vmul.f32 %v313, %v322
      %v353 = vmul.f32 %v314, %v322
      %v354 = vmul.f32 %v315, %v322
      %v355 = vmul.f32 %v316, %v322
      %v356 = vld [vmem:[%s3] sm:$0x1]
      %v358 = vlaneseq
      %v359 = vshrl.u32 %v358, 7
      %v360 = vsub.s32 0, %v359
      %v361 = vrot.slane %v356, %v360
      %v363 = vadd.f32 %v324, %v361
      %v364 = vadd.f32 %v325, %v361
      %v365 = vadd.f32 %v326, %v361
      %v366 = vadd.f32 %v327, %v361
      %v367 = vadd.f32 %v328, %v361
      %v368 = vadd.f32 %v329, %v361
      %v369 = vadd.f32 %v330, %v361
      %v370 = vadd.f32 %v331, %v361
      %v371 = vadd.f32 %v332, %v361
      %v372 = vadd.f32 %v333, %v361
      %v373 = vadd.f32 %v334, %v361
      %v374 = vadd.f32 %v335, %v361
      %v375 = vadd.f32 %v336, %v361
      %v376 = vadd.f32 %v337, %v361
      %v377 = vadd.f32 %v338, %v361
      %v378 = vadd.f32 %v339, %v361
      %v379 = vadd.f32 %v340, %v361
      %v380 = vadd.f32 %v341, %v361
      %v381 = vadd.f32 %v342, %v361
      %v382 = vadd.f32 %v343, %v361
      %v383 = vadd.f32 %v344, %v361
      %v384 = vadd.f32 %v345, %v361
      %v385 = vadd.f32 %v346, %v361
      %v386 = vadd.f32 %v347, %v361
      %v387 = vadd.f32 %v348, %v361
      %v388 = vadd.f32 %v349, %v361
      %v389 = vadd.f32 %v350, %v361
      %v390 = vadd.f32 %v351, %v361
      %v391 = vadd.f32 %v352, %v361
      %v392 = vadd.f32 %v353, %v361
      %v393 = vadd.f32 %v354, %v361
      %v394 = vadd.f32 %v355, %v361
      %vm395 = vcmp.ge.f32.partialorder %v363, 0.0
      %vm396 = vcmp.ge.f32.partialorder %v364, 0.0
      %vm397 = vcmp.ge.f32.partialorder %v365, 0.0
      %vm398 = vcmp.ge.f32.partialorder %v366, 0.0
      %vm399 = vcmp.ge.f32.partialorder %v367, 0.0
      %vm400 = vcmp.ge.f32.partialorder %v368, 0.0
      %vm401 = vcmp.ge.f32.partialorder %v369, 0.0
      %vm402 = vcmp.ge.f32.partialorder %v370, 0.0
      %vm403 = vcmp.ge.f32.partialorder %v371, 0.0
      %vm404 = vcmp.ge.f32.partialorder %v372, 0.0
      %vm405 = vcmp.ge.f32.partialorder %v373, 0.0
      %vm406 = vcmp.ge.f32.partialorder %v374, 0.0
      %vm407 = vcmp.ge.f32.partialorder %v375, 0.0
      %vm408 = vcmp.ge.f32.partialorder %v376, 0.0
      %vm409 = vcmp.ge.f32.partialorder %v377, 0.0
      %vm410 = vcmp.ge.f32.partialorder %v378, 0.0
      %vm411 = vcmp.ge.f32.partialorder %v379, 0.0
      %vm412 = vcmp.ge.f32.partialorder %v380, 0.0
      %vm413 = vcmp.ge.f32.partialorder %v381, 0.0
      %vm414 = vcmp.ge.f32.partialorder %v382, 0.0
      %vm415 = vcmp.ge.f32.partialorder %v383, 0.0
      %vm416 = vcmp.ge.f32.partialorder %v384, 0.0
      %vm417 = vcmp.ge.f32.partialorder %v385, 0.0
      %vm418 = vcmp.ge.f32.partialorder %v386, 0.0
      %vm419 = vcmp.ge.f32.partialorder %v387, 0.0
      %vm420 = vcmp.ge.f32.partialorder %v388, 0.0
      %vm421 = vcmp.ge.f32.partialorder %v389, 0.0
      %vm422 = vcmp.ge.f32.partialorder %v390, 0.0
      %vm423 = vcmp.ge.f32.partialorder %v391, 0.0
      %vm424 = vcmp.ge.f32.partialorder %v392, 0.0
      %vm425 = vcmp.ge.f32.partialorder %v393, 0.0
      %vm426 = vcmp.ge.f32.partialorder %v394, 0.0
      %v427 = vmul.f32 %v363, 0.01
      %v428 = vmul.f32 %v364, 0.01
      %v429 = vmul.f32 %v365, 0.01
      %v430 = vmul.f32 %v366, 0.01
      %v431 = vmul.f32 %v367, 0.01
      %v432 = vmul.f32 %v368, 0.01
      %v433 = vmul.f32 %v369, 0.01
      %v434 = vmul.f32 %v370, 0.01
      %v435 = vmul.f32 %v371, 0.01
      %v436 = vmul.f32 %v372, 0.01
      %v437 = vmul.f32 %v373, 0.01
      %v438 = vmul.f32 %v374, 0.01
      %v439 = vmul.f32 %v375, 0.01
      %v440 = vmul.f32 %v376, 0.01
      %v441 = vmul.f32 %v377, 0.01
      %v442 = vmul.f32 %v378, 0.01
      %v443 = vmul.f32 %v379, 0.01
      %v444 = vmul.f32 %v380, 0.01
      %v445 = vmul.f32 %v381, 0.01
      %v446 = vmul.f32 %v382, 0.01
      %v447 = vmul.f32 %v383, 0.01
      %v448 = vmul.f32 %v384, 0.01
      %v449 = vmul.f32 %v385, 0.01
      %v450 = vmul.f32 %v386, 0.01
      %v451 = vmul.f32 %v387, 0.01
      %v452 = vmul.f32 %v388, 0.01
      %v453 = vmul.f32 %v389, 0.01
      %v454 = vmul.f32 %v390, 0.01
      %v455 = vmul.f32 %v391, 0.01
      %v456 = vmul.f32 %v392, 0.01
      %v457 = vmul.f32 %v393, 0.01
      %v458 = vmul.f32 %v394, 0.01
      %v459 = vsel %vm395, %v363, %v427
      %v460 = vsel %vm396, %v364, %v428
      %v461 = vsel %vm397, %v365, %v429
      %v462 = vsel %vm398, %v366, %v430
      %v463 = vsel %vm399, %v367, %v431
      %v464 = vsel %vm400, %v368, %v432
      %v465 = vsel %vm401, %v369, %v433
      %v466 = vsel %vm402, %v370, %v434
      %v467 = vsel %vm403, %v371, %v435
      %v468 = vsel %vm404, %v372, %v436
      %v469 = vsel %vm405, %v373, %v437
      %v470 = vsel %vm406, %v374, %v438
      %v471 = vsel %vm407, %v375, %v439
      %v472 = vsel %vm408, %v376, %v440
      %v473 = vsel %vm409, %v377, %v441
      %v474 = vsel %vm410, %v378, %v442
      %v475 = vsel %vm411, %v379, %v443
      %v476 = vsel %vm412, %v380, %v444
      %v477 = vsel %vm413, %v381, %v445
      %v478 = vsel %vm414, %v382, %v446
      %v479 = vsel %vm415, %v383, %v447
      %v480 = vsel %vm416, %v384, %v448
      %v481 = vsel %vm417, %v385, %v449
      %v482 = vsel %vm418, %v386, %v450
      %v483 = vsel %vm419, %v387, %v451
      %v484 = vsel %vm420, %v388, %v452
      %v485 = vsel %vm421, %v389, %v453
      %v486 = vsel %vm422, %v390, %v454
      %v487 = vsel %vm423, %v391, %v455
      %v488 = vsel %vm424, %v392, %v456
      %v489 = vsel %vm425, %v393, %v457
      %v490 = vsel %vm426, %v394, %v458
      %491 = vst [vmem:[#allocation2 + $0x38] sm:$0xff] %v459
      %492 = vst [vmem:[#allocation2 + $0x50] sm:$0xff] %v460
      %493 = vst [vmem:[#allocation2 + $0x68] sm:$0xff] %v461
      %494 = vst [vmem:[#allocation2 + $0x80] sm:$0xff] %v462
      %495 = vst [vmem:[#allocation2 + $0x98] sm:$0xff] %v463
      %496 = vst [vmem:[#allocation2 + $0xb0] sm:$0xff] %v464
      %497 = vst [vmem:[#allocation2 + $0xc8] sm:$0xff] %v465
      %498 = vst [vmem:[#allocation2 + $0xe0] sm:$0xff] %v466
      %499 = vst [vmem:[#allocation2 + $0xf8] sm:$0xff] %v467
      %500 = vst [vmem:[#allocation2 + $0x110] sm:$0xff] %v468
      %501 = vst [vmem:[#allocation2 + $0x128] sm:$0xff] %v469
      %502 = vst [vmem:[#allocation2 + $0x140] sm:$0xff] %v470
      %503 = vst [vmem:[#allocation2 + $0x158] sm:$0xff] %v471
      %504 = vst [vmem:[#allocation2 + $0x170] sm:$0xff] %v472
      %505 = vst [vmem:[#allocation2 + $0x188] sm:$0xff] %v473
      %506 = vst [vmem:[#allocation2 + $0x1a0] sm:$0xff] %v474
      %507 = vst [vmem:[#allocation2 + $0x1b8] sm:$0xff] %v475
      %508 = vst [vmem:[#allocation2 + $0x1d0] sm:$0xff] %v476
      %509 = vst [vmem:[#allocation2 + $0x1e8] sm:$0xff] %v477
      %510 = vst [vmem:[#allocation2 + $0x200] sm:$0xff] %v478
      %511 = vst [vmem:[#allocation2 + $0x218] sm:$0xff] %v479
      %512 = vst [vmem:[#allocation2 + $0x230] sm:$0xff] %v480
      %513 = vst [vmem:[#allocation2 + $0x248] sm:$0xff] %v481
      %514 = vst [vmem:[#allocation2 + $0x260] sm:$0xff] %v482
      %515 = vst [vmem:[#allocation2 + $0x278] sm:$0xff] %v483
      %516 = vst [vmem:[#allocation2 + $0x290] sm:$0xff] %v484
      %517 = vst [vmem:[#allocation2 + $0x2a8] sm:$0xff] %v485
      %518 = vst [vmem:[#allocation2 + $0x2c0] sm:$0xff] %v486
      %519 = vst [vmem:[#allocation2 + $0x2d8] sm:$0xff] %v487
      %520 = vst [vmem:[#allocation2 + $0x2f0] sm:$0xff] %v488
      %521 = vst [vmem:[#allocation2 + $0x308] sm:$0xff] %v489
      %522 = vst [vmem:[#allocation2 + $0x320] sm:$0xff] %v490
      %v523 = vlaneseq
      %v524 = vshrl.u32 %v523, 7
      %v525 = vadd.s32 %v524, 8
      %v526 = vadd.s32 %v524, 16
      %v527 = vadd.s32 %v524, 24
      %v528 = vadd.s32 %v524, 32
      %v529 = vadd.s32 %v524, 40
      %v530 = vadd.s32 %v524, 48
      %v531 = vadd.s32 %v524, 56
      %v532 = vadd.s32 %v524, 64
      %v533 = vadd.s32 %v524, 72
      %v534 = vadd.s32 %v524, 80
      %v535 = vadd.s32 %v524, 88
      %v536 = vadd.s32 %v524, 96
      %v537 = vadd.s32 %v524, 104
      %v538 = vadd.s32 %v524, 112
      %v539 = vadd.s32 %v524, 120
      %v540 = vadd.s32 %v524, 128
      %v541 = vadd.s32 %v524, 136
      %v542 = vadd.s32 %v524, 144
      %v543 = vadd.s32 %v524, 152
      %v544 = vadd.s32 %v524, 160
      %v545 = vadd.s32 %v524, 168
      %v546 = vadd.s32 %v524, 176
      %v547 = vadd.s32 %v524, 184
      %v548 = vadd.s32 %v524, 192
      %v549 = vadd.s32 %v524, 200
      %v550 = vadd.s32 %v524, 208
      %v551 = vadd.s32 %v524, 216
      %v552 = vadd.s32 %v524, 224
      %v553 = vadd.s32 %v524, 232
      %v554 = vadd.s32 %v524, 240
      %v555 = vadd.s32 %v524, 248
      %v556 = vand.u32 %v524, 15
      %v557 = vand.u32 %v525, 15
      %v558 = vand.u32 %v526, 15
      %v559 = vand.u32 %v527, 15
      %v560 = vand.u32 %v528, 15
      %v561 = vand.u32 %v529, 15
      %v562 = vand.u32 %v530, 15
      %v563 = vand.u32 %v531, 15
      %v564 = vand.u32 %v532, 15
      %v565 = vand.u32 %v533, 15
      %v566 = vand.u32 %v534, 15
      %v567 = vand.u32 %v535, 15
      %v568 = vand.u32 %v536, 15
      %v569 = vand.u32 %v537, 15
      %v570 = vand.u32 %v538, 15
      %v571 = vand.u32 %v539, 15
      %v572 = vand.u32 %v540, 15
      %v573 = vand.u32 %v541, 15
      %v574 = vand.u32 %v542, 15
      %v575 = vand.u32 %v543, 15
      %v576 = vand.u32 %v544, 15
      %v577 = vand.u32 %v545, 15
      %v578 = vand.u32 %v546, 15
      %v579 = vand.u32 %v547, 15
      %v580 = vand.u32 %v548, 15
      %v581 = vand.u32 %v549, 15
      %v582 = vand.u32 %v550, 15
      %v583 = vand.u32 %v551, 15
      %v584 = vand.u32 %v552, 15
      %v585 = vand.u32 %v553, 15
      %v586 = vand.u32 %v554, 15
      %v587 = vand.u32 %v555, 15
      %vm588 = vcmp.ge.s32.totalorder %v556, 1
      %vm589 = vcmp.ge.s32.totalorder %v557, 1
      %vm590 = vcmp.ge.s32.totalorder %v558, 1
      %vm591 = vcmp.ge.s32.totalorder %v559, 1
      %vm592 = vcmp.ge.s32.totalorder %v560, 1
      %vm593 = vcmp.ge.s32.totalorder %v561, 1
      %vm594 = vcmp.ge.s32.totalorder %v562, 1
      %vm595 = vcmp.ge.s32.totalorder %v563, 1
      %vm596 = vcmp.ge.s32.totalorder %v564, 1
      %vm597 = vcmp.ge.s32.totalorder %v565, 1
      %vm598 = vcmp.ge.s32.totalorder %v566, 1
      %vm599 = vcmp.ge.s32.totalorder %v567, 1
      %vm600 = vcmp.ge.s32.totalorder %v568, 1
      %vm601 = vcmp.ge.s32.totalorder %v569, 1
      %vm602 = vcmp.ge.s32.totalorder %v570, 1
      %vm603 = vcmp.ge.s32.totalorder %v571, 1
      %vm604 = vcmp.ge.s32.totalorder %v572, 1
      %vm605 = vcmp.ge.s32.totalorder %v573, 1
      %vm606 = vcmp.ge.s32.totalorder %v574, 1
      %vm607 = vcmp.ge.s32.totalorder %v575, 1
      %vm608 = vcmp.ge.s32.totalorder %v576, 1
      %vm609 = vcmp.ge.s32.totalorder %v577, 1
      %vm610 = vcmp.ge.s32.totalorder %v578, 1
      %vm611 = vcmp.ge.s32.totalorder %v579, 1
      %vm612 = vcmp.ge.s32.totalorder %v580, 1
      %vm613 = vcmp.ge.s32.totalorder %v581, 1
      %vm614 = vcmp.ge.s32.totalorder %v582, 1
      %vm615 = vcmp.ge.s32.totalorder %v583, 1
      %vm616 = vcmp.ge.s32.totalorder %v584, 1
      %vm617 = vcmp.ge.s32.totalorder %v585, 1
      %vm618 = vcmp.ge.s32.totalorder %v586, 1
      %vm619 = vcmp.ge.s32.totalorder %v587, 1
      %v620 = vld [vmem:[#allocation2 + $0x20] sm:$0x80]
      %v621 = vld [vmem:[#allocation2 + $0x38] sm:$0xff]
      %v622 = vld [vmem:[#allocation2 + $0x50] sm:$0xff]
      %v623 = vld [vmem:[#allocation2 + $0x68] sm:$0xff]
      %v624 = vld [vmem:[#allocation2 + $0x80] sm:$0xff]
      %v625 = vld [vmem:[#allocation2 + $0x98] sm:$0xff]
      %v626 = vld [vmem:[#allocation2 + $0xb0] sm:$0xff]
      %v627 = vld [vmem:[#allocation2 + $0xc8] sm:$0xff]
      %v628 = vld [vmem:[#allocation2 + $0xe0] sm:$0xff]
      %v629 = vld [vmem:[#allocation2 + $0xf8] sm:$0xff]
      %v630 = vld [vmem:[#allocation2 + $0x110] sm:$0xff]
      %v631 = vld [vmem:[#allocation2 + $0x128] sm:$0xff]
      %v632 = vld [vmem:[#allocation2 + $0x140] sm:$0xff]
      %v633 = vld [vmem:[#allocation2 + $0x158] sm:$0xff]
      %v634 = vld [vmem:[#allocation2 + $0x170] sm:$0xff]
      %v635 = vld [vmem:[#allocation2 + $0x188] sm:$0xff]
      %v636 = vld [vmem:[#allocation2 + $0x1a0] sm:$0xff]
      %v637 = vld [vmem:[#allocation2 + $0x1b8] sm:$0xff]
      %v638 = vld [vmem:[#allocation2 + $0x1d0] sm:$0xff]
      %v639 = vld [vmem:[#allocation2 + $0x1e8] sm:$0xff]
      %v640 = vld [vmem:[#allocation2 + $0x200] sm:$0xff]
      %v641 = vld [vmem:[#allocation2 + $0x218] sm:$0xff]
      %v642 = vld [vmem:[#allocation2 + $0x230] sm:$0xff]
      %v643 = vld [vmem:[#allocation2 + $0x248] sm:$0xff]
      %v644 = vld [vmem:[#allocation2 + $0x260] sm:$0xff]
      %v645 = vld [vmem:[#allocation2 + $0x278] sm:$0xff]
      %v646 = vld [vmem:[#allocation2 + $0x290] sm:$0xff]
      %v647 = vld [vmem:[#allocation2 + $0x2a8] sm:$0xff]
      %v648 = vld [vmem:[#allocation2 + $0x2c0] sm:$0xff]
      %v649 = vld [vmem:[#allocation2 + $0x2d8] sm:$0xff]
      %v650 = vld [vmem:[#allocation2 + $0x2f0] sm:$0xff]
      %v651 = vld [vmem:[#allocation2 + $0x308] sm:$0xff]
      %v652 = vld [vmem:[#allocation2 + $0x320] sm:$0x7f]
      %v653 = vsel %vm588, 1, 0
      %v654 = vsel %vm589, 1, 0
      %v655 = vsel %vm590, 1, 0
      %v656 = vsel %vm591, 1, 0
      %v657 = vsel %vm592, 1, 0
      %v658 = vsel %vm593, 1, 0
      %v659 = vsel %vm594, 1, 0
      %v660 = vsel %vm595, 1, 0
      %v661 = vsel %vm596, 1, 0
      %v662 = vsel %vm597, 1, 0
      %v663 = vsel %vm598, 1, 0
      %v664 = vsel %vm599, 1, 0
      %v665 = vsel %vm600, 1, 0
      %v666 = vsel %vm601, 1, 0
      %v667 = vsel %vm602, 1, 0
      %v668 = vsel %vm603, 1, 0
      %v669 = vsel %vm604, 1, 0
      %v670 = vsel %vm605, 1, 0
      %v671 = vsel %vm606, 1, 0
      %v672 = vsel %vm607, 1, 0
      %v673 = vsel %vm608, 1, 0
      %v674 = vsel %vm609, 1, 0
      %v675 = vsel %vm610, 1, 0
      %v676 = vsel %vm611, 1, 0
      %v677 = vsel %vm612, 1, 0
      %v678 = vsel %vm613, 1, 0
      %v679 = vsel %vm614, 1, 0
      %v680 = vsel %vm615, 1, 0
      %v681 = vsel %vm616, 1, 0
      %v682 = vsel %vm617, 1, 0
      %v683 = vsel %vm618, 1, 0
      %v684 = vsel %vm619, 1, 0
      %vm685 = vcmp.eq.s32.totalorder %v653, 1
      %vm686 = vcmp.eq.s32.totalorder %v654, 1
      %vm687 = vcmp.eq.s32.totalorder %v655, 1
      %vm688 = vcmp.eq.s32.totalorder %v656, 1
      %vm689 = vcmp.eq.s32.totalorder %v657, 1
      %vm690 = vcmp.eq.s32.totalorder %v658, 1
      %vm691 = vcmp.eq.s32.totalorder %v659, 1
      %vm692 = vcmp.eq.s32.totalorder %v660, 1
      %vm693 = vcmp.eq.s32.totalorder %v661, 1
      %vm694 = vcmp.eq.s32.totalorder %v662, 1
      %vm695 = vcmp.eq.s32.totalorder %v663, 1
      %vm696 = vcmp.eq.s32.totalorder %v664, 1
      %vm697 = vcmp.eq.s32.totalorder %v665, 1
      %vm698 = vcmp.eq.s32.totalorder %v666, 1
      %vm699 = vcmp.eq.s32.totalorder %v667, 1
      %vm700 = vcmp.eq.s32.totalorder %v668, 1
      %vm701 = vcmp.eq.s32.totalorder %v669, 1
      %vm702 = vcmp.eq.s32.totalorder %v670, 1
      %vm703 = vcmp.eq.s32.totalorder %v671, 1
      %vm704 = vcmp.eq.s32.totalorder %v672, 1
      %vm705 = vcmp.eq.s32.totalorder %v673, 1
      %vm706 = vcmp.eq.s32.totalorder %v674, 1
      %vm707 = vcmp.eq.s32.totalorder %v675, 1
      %vm708 = vcmp.eq.s32.totalorder %v676, 1
      %vm709 = vcmp.eq.s32.totalorder %v677, 1
      %vm710 = vcmp.eq.s32.totalorder %v678, 1
      %vm711 = vcmp.eq.s32.totalorder %v679, 1
      %vm712 = vcmp.eq.s32.totalorder %v680, 1
      %vm713 = vcmp.eq.s32.totalorder %v681, 1
      %vm714 = vcmp.eq.s32.totalorder %v682, 1
      %vm715 = vcmp.eq.s32.totalorder %v683, 1
      %vm716 = vcmp.eq.s32.totalorder %v684, 1
      %vm750 = vcmask 1040384
      %v751 = vrot.slane %v620, 7
      %v752 = vrot.slane %v621, 7
      %v753 = vsel %vm750, %v751, %v752
      %v754 = vrot.slane %v622, 7
      %v755 = vsel %vm750, %v752, %v754
      %v756 = vrot.slane %v623, 7
      %v757 = vsel %vm750, %v754, %v756
      %v758 = vrot.slane %v624, 7
      %v759 = vsel %vm750, %v756, %v758
      %v760 = vrot.slane %v625, 7
      %v761 = vsel %vm750, %v758, %v760
      %v762 = vrot.slane %v626, 7
      %v763 = vsel %vm750, %v760, %v762
      %v764 = vrot.slane %v627, 7
      %v765 = vsel %vm750, %v762, %v764
      %v766 = vrot.slane %v628, 7
      %v767 = vsel %vm750, %v764, %v766
      %v768 = vrot.slane %v629, 7
      %v769 = vsel %vm750, %v766, %v768
      %v770 = vrot.slane %v630, 7
      %v771 = vsel %vm750, %v768, %v770
      %v772 = vrot.slane %v631, 7
      %v773 = vsel %vm750, %v770, %v772
      %v774 = vrot.slane %v632, 7
      %v775 = vsel %vm750, %v772, %v774
      %v776 = vrot.slane %v633, 7
      %v777 = vsel %vm750, %v774, %v776
      %v778 = vrot.slane %v634, 7
      %v779 = vsel %vm750, %v776, %v778
      %v780 = vrot.slane %v635, 7
      %v781 = vsel %vm750, %v778, %v780
      %v782 = vrot.slane %v636, 7
      %v783 = vsel %vm750, %v780, %v782
      %v784 = vrot.slane %v637, 7
      %v785 = vsel %vm750, %v782, %v784
      %v786 = vrot.slane %v638, 7
      %v787 = vsel %vm750, %v784, %v786
      %v788 = vrot.slane %v639, 7
      %v789 = vsel %vm750, %v786, %v788
      %v790 = vrot.slane %v640, 7
      %v791 = vsel %vm750, %v788, %v790
      %v792 = vrot.slane %v641, 7
      %v793 = vsel %vm750, %v790, %v792
      %v794 = vrot.slane %v642, 7
      %v795 = vsel %vm750, %v792, %v794
      %v796 = vrot.slane %v643, 7
      %v797 = vsel %vm750, %v794, %v796
      %v798 = vrot.slane %v644, 7
      %v799 = vsel %vm750, %v796, %v798
      %v800 = vrot.slane %v645, 7
      %v801 = vsel %vm750, %v798, %v800
      %v802 = vrot.slane %v646, 7
      %v803 = vsel %vm750, %v800, %v802
      %v804 = vrot.slane %v647, 7
      %v805 = vsel %vm750, %v802, %v804
      %v806 = vrot.slane %v648, 7
      %v807 = vsel %vm750, %v804, %v806
      %v808 = vrot.slane %v649, 7
      %v809 = vsel %vm750, %v806, %v808
      %v810 = vrot.slane %v650, 7
      %v811 = vsel %vm750, %v808, %v810
      %v812 = vrot.slane %v651, 7
      %v813 = vsel %vm750, %v810, %v812
      %v814 = vrot.slane %v652, 7
      %v815 = vsel %vm750, %v812, %v814
      %v848 = vsel %vm685, %v753, 0.0
      %v849 = vsel %vm686, %v755, 0.0
      %v850 = vsel %vm687, %v757, 0.0
      %v851 = vsel %vm688, %v759, 0.0
      %v852 = vsel %vm689, %v761, 0.0
      %v853 = vsel %vm690, %v763, 0.0
      %v854 = vsel %vm691, %v765, 0.0
      %v855 = vsel %vm692, %v767, 0.0
      %v856 = vsel %vm693, %v769, 0.0
      %v857 = vsel %vm694, %v771, 0.0
      %v858 = vsel %vm695, %v773, 0.0
      %v859 = vsel %vm696, %v775, 0.0
      %v860 = vsel %vm697, %v777, 0.0
      %v861 = vsel %vm698, %v779, 0.0
      %v862 = vsel %vm699, %v781, 0.0
      %v863 = vsel %vm700, %v783, 0.0
      %v864 = vsel %vm701, %v785, 0.0
      %v865 = vsel %vm702, %v787, 0.0
      %v866 = vsel %vm703, %v789, 0.0
      %v867 = vsel %vm704, %v791, 0.0
      %v868 = vsel %vm705, %v793, 0.0
      %v869 = vsel %vm706, %v795, 0.0
      %v870 = vsel %vm707, %v797, 0.0
      %v871 = vsel %vm708, %v799, 0.0
      %v872 = vsel %vm709, %v801, 0.0
      %v873 = vsel %vm710, %v803, 0.0
      %v874 = vsel %vm711, %v805, 0.0
      %v875 = vsel %vm712, %v807, 0.0
      %v876 = vsel %vm713, %v809, 0.0
      %v877 = vsel %vm714, %v811, 0.0
      %v878 = vsel %vm715, %v813, 0.0
      %v879 = vsel %vm716, %v815, 0.0
      %880 = vst [vmem:[#allocation2 + $0x30] sm:$0xff] %v848
      %881 = vst [vmem:[#allocation2 + $0x48] sm:$0xff] %v849
      %882 = vst [vmem:[#allocation2 + $0x60] sm:$0xff] %v850
      %883 = vst [vmem:[#allocation2 + $0x78] sm:$0xff] %v851
      %884 = vst [vmem:[#allocation2 + $0x90] sm:$0xff] %v852
      %885 = vst [vmem:[#allocation2 + $0xa8] sm:$0xff] %v853
      %886 = vst [vmem:[#allocation2 + $0xc0] sm:$0xff] %v854
      %887 = vst [vmem:[#allocation2 + $0xd8] sm:$0xff] %v855
      %888 = vst [vmem:[#allocation2 + $0xf0] sm:$0xff] %v856
      %889 = vst [vmem:[#allocation2 + $0x108] sm:$0xff] %v857
      %890 = vst [vmem:[#allocation2 + $0x120] sm:$0xff] %v858
      %891 = vst [vmem:[#allocation2 + $0x138] sm:$0xff] %v859
      %892 = vst [vmem:[#allocation2 + $0x150] sm:$0xff] %v860
      %893 = vst [vmem:[#allocation2 + $0x168] sm:$0xff] %v861
      %894 = vst [vmem:[#allocation2 + $0x180] sm:$0xff] %v862
      %895 = vst [vmem:[#allocation2 + $0x198] sm:$0xff] %v863
      %896 = vst [vmem:[#allocation2 + $0x1b0] sm:$0xff] %v864
      %897 = vst [vmem:[#allocation2 + $0x1c8] sm:$0xff] %v865
      %898 = vst [vmem:[#allocation2 + $0x1e0] sm:$0xff] %v866
      %899 = vst [vmem:[#allocation2 + $0x1f8] sm:$0xff] %v867
      %900 = vst [vmem:[#allocation2 + $0x210] sm:$0xff] %v868
      %901 = vst [vmem:[#allocation2 + $0x228] sm:$0xff] %v869
      %902 = vst [vmem:[#allocation2 + $0x240] sm:$0xff] %v870
      %903 = vst [vmem:[#allocation2 + $0x258] sm:$0xff] %v871
      %904 = vst [vmem:[#allocation2 + $0x270] sm:$0xff] %v872
      %905 = vst [vmem:[#allocation2 + $0x288] sm:$0xff] %v873
      %906 = vst [vmem:[#allocation2 + $0x2a0] sm:$0xff] %v874
      %907 = vst [vmem:[#allocation2 + $0x2b8] sm:$0xff] %v875
      %908 = vst [vmem:[#allocation2 + $0x2d0] sm:$0xff] %v876
      %909 = vst [vmem:[#allocation2 + $0x2e8] sm:$0xff] %v877
      %910 = vst [vmem:[#allocation2 + $0x300] sm:$0xff] %v878
      %911 = vst [vmem:[#allocation2 + $0x318] sm:$0xff] %v879
      %vm912 = vcmp.le.s32.totalorder %v556, 14
      %vm913 = vcmp.le.s32.totalorder %v557, 14
      %vm914 = vcmp.le.s32.totalorder %v558, 14
      %vm915 = vcmp.le.s32.totalorder %v559, 14
      %vm916 = vcmp.le.s32.totalorder %v560, 14
      %vm917 = vcmp.le.s32.totalorder %v561, 14
      %vm918 = vcmp.le.s32.totalorder %v562, 14
      %vm919 = vcmp.le.s32.totalorder %v563, 14
      %vm920 = vcmp.le.s32.totalorder %v564, 14
      %vm921 = vcmp.le.s32.totalorder %v565, 14
      %vm922 = vcmp.le.s32.totalorder %v566, 14
      %vm923 = vcmp.le.s32.totalorder %v567, 14
      %vm924 = vcmp.le.s32.totalorder %v568, 14
      %vm925 = vcmp.le.s32.totalorder %v569, 14
      %vm926 = vcmp.le.s32.totalorder %v570, 14
      %vm927 = vcmp.le.s32.totalorder %v571, 14
      %vm928 = vcmp.le.s32.totalorder %v572, 14
      %vm929 = vcmp.le.s32.totalorder %v573, 14
      %vm930 = vcmp.le.s32.totalorder %v574, 14
      %vm931 = vcmp.le.s32.totalorder %v575, 14
      %vm932 = vcmp.le.s32.totalorder %v576, 14
      %vm933 = vcmp.le.s32.totalorder %v577, 14
      %vm934 = vcmp.le.s32.totalorder %v578, 14
      %vm935 = vcmp.le.s32.totalorder %v579, 14
      %vm936 = vcmp.le.s32.totalorder %v580, 14
      %vm937 = vcmp.le.s32.totalorder %v581, 14
      %vm938 = vcmp.le.s32.totalorder %v582, 14
      %vm939 = vcmp.le.s32.totalorder %v583, 14
      %vm940 = vcmp.le.s32.totalorder %v584, 14
      %vm941 = vcmp.le.s32.totalorder %v585, 14
      %vm942 = vcmp.le.s32.totalorder %v586, 14
      %vm943 = vcmp.le.s32.totalorder %v587, 14
      %v944 = vld [vmem:[#allocation2 + $0x38] sm:$0xfe]
      %v945 = vld [vmem:[#allocation2 + $0x50] sm:$0xff]
      %v946 = vld [vmem:[#allocation2 + $0x68] sm:$0xff]
      %v947 = vld [vmem:[#allocation2 + $0x80] sm:$0xff]
      %v948 = vld [vmem:[#allocation2 + $0x98] sm:$0xff]
      %v949 = vld [vmem:[#allocation2 + $0xb0] sm:$0xff]
      %v950 = vld [vmem:[#allocation2 + $0xc8] sm:$0xff]
      %v951 = vld [vmem:[#allocation2 + $0xe0] sm:$0xff]
      %v952 = vld [vmem:[#allocation2 + $0xf8] sm:$0xff]
      %v953 = vld [vmem:[#allocation2 + $0x110] sm:$0xff]
      %v954 = vld [vmem:[#allocation2 + $0x128] sm:$0xff]
      %v955 = vld [vmem:[#allocation2 + $0x140] sm:$0xff]
      %v956 = vld [vmem:[#allocation2 + $0x158] sm:$0xff]
      %v957 = vld [vmem:[#allocation2 + $0x170] sm:$0xff]
      %v958 = vld [vmem:[#allocation2 + $0x188] sm:$0xff]
      %v959 = vld [vmem:[#allocation2 + $0x1a0] sm:$0xff]
      %v960 = vld [vmem:[#allocation2 + $0x1b8] sm:$0xff]
      %v961 = vld [vmem:[#allocation2 + $0x1d0] sm:$0xff]
      %v962 = vld [vmem:[#allocation2 + $0x1e8] sm:$0xff]
      %v963 = vld [vmem:[#allocation2 + $0x200] sm:$0xff]
      %v964 = vld [vmem:[#allocation2 + $0x218] sm:$0xff]
      %v965 = vld [vmem:[#allocation2 + $0x230] sm:$0xff]
      %v966 = vld [vmem:[#allocation2 + $0x248] sm:$0xff]
      %v967 = vld [vmem:[#allocation2 + $0x260] sm:$0xff]
      %v968 = vld [vmem:[#allocation2 + $0x278] sm:$0xff]
      %v969 = vld [vmem:[#allocation2 + $0x290] sm:$0xff]
      %v970 = vld [vmem:[#allocation2 + $0x2a8] sm:$0xff]
      %v971 = vld [vmem:[#allocation2 + $0x2c0] sm:$0xff]
      %v972 = vld [vmem:[#allocation2 + $0x2d8] sm:$0xff]
      %v973 = vld [vmem:[#allocation2 + $0x2f0] sm:$0xff]
      %v974 = vld [vmem:[#allocation2 + $0x308] sm:$0xff]
      %v975 = vld [vmem:[#allocation2 + $0x320] sm:$0xff]
      %v976 = vld [vmem:[#allocation2 + $0x338] sm:$0x1]
      %v977 = vsel %vm912, 1, 0
      %v978 = vsel %vm913, 1, 0
      %v979 = vsel %vm914, 1, 0
      %v980 = vsel %vm915, 1, 0
      %v981 = vsel %vm916, 1, 0
      %v982 = vsel %vm917, 1, 0
      %v983 = vsel %vm918, 1, 0
      %v984 = vsel %vm919, 1, 0
      %v985 = vsel %vm920, 1, 0
      %v986 = vsel %vm921, 1, 0
      %v987 = vsel %vm922, 1, 0
      %v988 = vsel %vm923, 1, 0
      %v989 = vsel %vm924, 1, 0
      %v990 = vsel %vm925, 1, 0
      %v991 = vsel %vm926, 1, 0
      %v992 = vsel %vm927, 1, 0
      %v993 = vsel %vm928, 1, 0
      %v994 = vsel %vm929, 1, 0
      %v995 = vsel %vm930, 1, 0
      %v996 = vsel %vm931, 1, 0
      %v997 = vsel %vm932, 1, 0
      %v998 = vsel %vm933, 1, 0
      %v999 = vsel %vm934, 1, 0
      %v1000 = vsel %vm935, 1, 0
      %v1001 = vsel %vm936, 1, 0
      %v1002 = vsel %vm937, 1, 0
      %v1003 = vsel %vm938, 1, 0
      %v1004 = vsel %vm939, 1, 0
      %v1005 = vsel %vm940, 1, 0
      %v1006 = vsel %vm941, 1, 0
      %v1007 = vsel %vm942, 1, 0
      %v1008 = vsel %vm943, 1, 0
      %vm1009 = vcmp.eq.s32.totalorder %v977, 1
      %vm1010 = vcmp.eq.s32.totalorder %v978, 1
      %vm1011 = vcmp.eq.s32.totalorder %v979, 1
      %vm1012 = vcmp.eq.s32.totalorder %v980, 1
      %vm1013 = vcmp.eq.s32.totalorder %v981, 1
      %vm1014 = vcmp.eq.s32.totalorder %v982, 1
      %vm1015 = vcmp.eq.s32.totalorder %v983, 1
      %vm1016 = vcmp.eq.s32.totalorder %v984, 1
      %vm1017 = vcmp.eq.s32.totalorder %v985, 1
      %vm1018 = vcmp.eq.s32.totalorder %v986, 1
      %vm1019 = vcmp.eq.s32.totalorder %v987, 1
      %vm1020 = vcmp.eq.s32.totalorder %v988, 1
      %vm1021 = vcmp.eq.s32.totalorder %v989, 1
      %vm1022 = vcmp.eq.s32.totalorder %v990, 1
      %vm1023 = vcmp.eq.s32.totalorder %v991, 1
      %vm1024 = vcmp.eq.s32.totalorder %v992, 1
      %vm1025 = vcmp.eq.s32.totalorder %v993, 1
      %vm1026 = vcmp.eq.s32.totalorder %v994, 1
      %vm1027 = vcmp.eq.s32.totalorder %v995, 1
      %vm1028 = vcmp.eq.s32.totalorder %v996, 1
      %vm1029 = vcmp.eq.s32.totalorder %v997, 1
      %vm1030 = vcmp.eq.s32.totalorder %v998, 1
      %vm1031 = vcmp.eq.s32.totalorder %v999, 1
      %vm1032 = vcmp.eq.s32.totalorder %v1000, 1
      %vm1033 = vcmp.eq.s32.totalorder %v1001, 1
      %vm1034 = vcmp.eq.s32.totalorder %v1002, 1
      %vm1035 = vcmp.eq.s32.totalorder %v1003, 1
      %vm1036 = vcmp.eq.s32.totalorder %v1004, 1
      %vm1037 = vcmp.eq.s32.totalorder %v1005, 1
      %vm1038 = vcmp.eq.s32.totalorder %v1006, 1
      %vm1039 = vcmp.eq.s32.totalorder %v1007, 1
      %vm1040 = vcmp.eq.s32.totalorder %v1008, 1
      %vm1074 = vcmask 1046528
      %v1075 = vrot.slane %v944, 1
      %v1076 = vrot.slane %v945, 1
      %v1077 = vsel %vm1074, %v1075, %v1076
      %v1078 = vrot.slane %v946, 1
      %v1079 = vsel %vm1074, %v1076, %v1078
      %v1080 = vrot.slane %v947, 1
      %v1081 = vsel %vm1074, %v1078, %v1080
      %v1082 = vrot.slane %v948, 1
      %v1083 = vsel %vm1074, %v1080, %v1082
      %v1084 = vrot.slane %v949, 1
      %v1085 = vsel %vm1074, %v1082, %v1084
      %v1086 = vrot.slane %v950, 1
      %v1087 = vsel %vm1074, %v1084, %v1086
      %v1088 = vrot.slane %v951, 1
      %v1089 = vsel %vm1074, %v1086, %v1088
      %v1090 = vrot.slane %v952, 1
      %v1091 = vsel %vm1074, %v1088, %v1090
      %v1092 = vrot.slane %v953, 1
      %v1093 = vsel %vm1074, %v1090, %v1092
      %v1094 = vrot.slane %v954, 1
      %v1095 = vsel %vm1074, %v1092, %v1094
      %v1096 = vrot.slane %v955, 1
      %v1097 = vsel %vm1074, %v1094, %v1096
      %v1098 = vrot.slane %v956, 1
      %v1099 = vsel %vm1074, %v1096, %v1098
      %v1100 = vrot.slane %v957, 1
      %v1101 = vsel %vm1074, %v1098, %v1100
      %v1102 = vrot.slane %v958, 1
      %v1103 = vsel %vm1074, %v1100, %v1102
      %v1104 = vrot.slane %v959, 1
      %v1105 = vsel %vm1074, %v1102, %v1104
      %v1106 = vrot.slane %v960, 1
      %v1107 = vsel %vm1074, %v1104, %v1106
      %v1108 = vrot.slane %v961, 1
      %v1109 = vsel %vm1074, %v1106, %v1108
      %v1110 = vrot.slane %v962, 1
      %v1111 = vsel %vm1074, %v1108, %v1110
      %v1112 = vrot.slane %v963, 1
      %v1113 = vsel %vm1074, %v1110, %v1112
      %v1114 = vrot.slane %v964, 1
      %v1115 = vsel %vm1074, %v1112, %v1114
      %v1116 = vrot.slane %v965, 1
      %v1117 = vsel %vm1074, %v1114, %v1116
      %v1118 = vrot.slane %v966, 1
      %v1119 = vsel %vm1074, %v1116, %v1118
      %v1120 = vrot.slane %v967, 1
      %v1121 = vsel %vm1074, %v1118, %v1120
      %v1122 = vrot.slane %v968, 1
      %v1123 = vsel %vm1074, %v1120, %v1122
      %v1124 = vrot.slane %v969, 1
      %v1125 = vsel %vm1074, %v1122, %v1124
      %v1126 = vrot.slane %v970, 1
      %v1127 = vsel %vm1074, %v1124, %v1126
      %v1128 = vrot.slane %v971, 1
      %v1129 = vsel %vm1074, %v1126, %v1128
      %v1130 = vrot.slane %v972, 1
      %v1131 = vsel %vm1074, %v1128, %v1130
      %v1132 = vrot.slane %v973, 1
      %v1133 = vsel %vm1074, %v1130, %v1132
      %v1134 = vrot.slane %v974, 1
      %v1135 = vsel %vm1074, %v1132, %v1134
      %v1136 = vrot.slane %v975, 1
      %v1137 = vsel %vm1074, %v1134, %v1136
      %v1138 = vrot.slane %v976, 1
      %v1139 = vsel %vm1074, %v1136, %v1138
      %v1172 = vsel %vm1009, %v1077, 0.0
      %v1173 = vsel %vm1010, %v1079, 0.0
      %v1174 = vsel %vm1011, %v1081, 0.0
      %v1175 = vsel %vm1012, %v1083, 0.0
      %v1176 = vsel %vm1013, %v1085, 0.0
      %v1177 = vsel %vm1014, %v1087, 0.0
      %v1178 = vsel %vm1015, %v1089, 0.0
      %v1179 = vsel %vm1016, %v1091, 0.0
      %v1180 = vsel %vm1017, %v1093, 0.0
      %v1181 = vsel %vm1018, %v1095, 0.0
      %v1182 = vsel %vm1019, %v1097, 0.0
      %v1183 = vsel %vm1020, %v1099, 0.0
      %v1184 = vsel %vm1021, %v1101, 0.0
      %v1185 = vsel %vm1022, %v1103, 0.0
      %v1186 = vsel %vm1023, %v1105, 0.0
      %v1187 = vsel %vm1024, %v1107, 0.0
      %v1188 = vsel %vm1025, %v1109, 0.0
      %v1189 = vsel %vm1026, %v1111, 0.0
      %v1190 = vsel %vm1027, %v1113, 0.0
      %v1191 = vsel %vm1028, %v1115, 0.0
      %v1192 = vsel %vm1029, %v1117, 0.0
      %v1193 = vsel %vm1030, %v1119, 0.0
      %v1194 = vsel %vm1031, %v1121, 0.0
      %v1195 = vsel %vm1032, %v1123, 0.0
      %v1196 = vsel %vm1033, %v1125, 0.0
      %v1197 = vsel %vm1034, %v1127, 0.0
      %v1198 = vsel %vm1035, %v1129, 0.0
      %v1199 = vsel %vm1036, %v1131, 0.0
      %v1200 = vsel %vm1037, %v1133, 0.0
      %v1201 = vsel %vm1038, %v1135, 0.0
      %v1202 = vsel %vm1039, %v1137, 0.0
      %v1203 = vsel %vm1040, %v1139, 0.0
      %1204 = vst [vmem:[#allocation2 + $0x40] sm:$0xff] %v1172
      %1205 = vst [vmem:[#allocation2 + $0x58] sm:$0xff] %v1173
      %1206 = vst [vmem:[#allocation2 + $0x70] sm:$0xff] %v1174
      %1207 = vst [vmem:[#allocation2 + $0x88] sm:$0xff] %v1175
      %1208 = vst [vmem:[#allocation2 + $0xa0] sm:$0xff] %v1176
      %1209 = vst [vmem:[#allocation2 + $0xb8] sm:$0xff] %v1177
      %1210 = vst [vmem:[#allocation2 + $0xd0] sm:$0xff] %v1178
      %1211 = vst [vmem:[#allocation2 + $0xe8] sm:$0xff] %v1179
      %1212 = vst [vmem:[#allocation2 + $0x100] sm:$0xff] %v1180
      %1213 = vst [vmem:[#allocation2 + $0x118] sm:$0xff] %v1181
      %1214 = vst [vmem:[#allocation2 + $0x130] sm:$0xff] %v1182
      %1215 = vst [vmem:[#allocation2 + $0x148] sm:$0xff] %v1183
      %1216 = vst [vmem:[#allocation2 + $0x160] sm:$0xff] %v1184
      %1217 = vst [vmem:[#allocation2 + $0x178] sm:$0xff] %v1185
      %1218 = vst [vmem:[#allocation2 + $0x190] sm:$0xff] %v1186
      %1219 = vst [vmem:[#allocation2 + $0x1a8] sm:$0xff] %v1187
      %1220 = vst [vmem:[#allocation2 + $0x1c0] sm:$0xff] %v1188
      %1221 = vst [vmem:[#allocation2 + $0x1d8] sm:$0xff] %v1189
      %1222 = vst [vmem:[#allocation2 + $0x1f0] sm:$0xff] %v1190
      %1223 = vst [vmem:[#allocation2 + $0x208] sm:$0xff] %v1191
      %1224 = vst [vmem:[#allocation2 + $0x220] sm:$0xff] %v1192
      %1225 = vst [vmem:[#allocation2 + $0x238] sm:$0xff] %v1193
      %1226 = vst [vmem:[#allocation2 + $0x250] sm:$0xff] %v1194
      %1227 = vst [vmem:[#allocation2 + $0x268] sm:$0xff] %v1195
      %1228 = vst [vmem:[#allocation2 + $0x280] sm:$0xff] %v1196
      %1229 = vst [vmem:[#allocation2 + $0x298] sm:$0xff] %v1197
      %1230 = vst [vmem:[#allocation2 + $0x2b0] sm:$0xff] %v1198
      %1231 = vst [vmem:[#allocation2 + $0x2c8] sm:$0xff] %v1199
      %1232 = vst [vmem:[#allocation2 + $0x2e0] sm:$0xff] %v1200
      %1233 = vst [vmem:[#allocation2 + $0x2f8] sm:$0xff] %v1201
      %1234 = vst [vmem:[#allocation2 + $0x310] sm:$0xff] %v1202
      %1235 = vst [vmem:[#allocation2 + $0x328] sm:$0xff] %v1203
      %v1236 = vld [vmem:[#allocation2] sm:$0xff]
      %v1237 = vld [vmem:[#allocation2 + $0x8] sm:$0xff]
      %v1238 = vld [vmem:[#allocation2 + $0x10] sm:$0xff]
      %v1239 = vld [vmem:[#allocation2 + $0x18] sm:$0xff]
      %v1240 = vld [vmem:[#allocation2 + $0x20] sm:$0xff]
      %v1241 = vld [vmem:[#allocation2 + $0x28] sm:$0xff]
      %v1242 = vld [vmem:[#allocation2 + $0x30] sm:$0xff]
      %v1243 = vld [vmem:[#allocation2 + $0x38] sm:$0xff]
      %v1244 = vld [vmem:[#allocation2 + $0x40] sm:$0xff]
      %v1245 = vld [vmem:[#allocation2 + $0x48] sm:$0xff]
      %v1246 = vld [vmem:[#allocation2 + $0x50] sm:$0xff]
      %v1247 = vld [vmem:[#allocation2 + $0x58] sm:$0xff]
      %v1248 = vld [vmem:[#allocation2 + $0x60] sm:$0xff]
      %v1249 = vld [vmem:[#allocation2 + $0x68] sm:$0xff]
      %v1250 = vld [vmem:[#allocation2 + $0x70] sm:$0xff]
      %v1251 = vld [vmem:[#allocation2 + $0x78] sm:$0xff]
      %v1252 = vld [vmem:[#allocation2 + $0x80] sm:$0xff]
      %v1253 = vld [vmem:[#allocation2 + $0x88] sm:$0xff]
      %v1254 = vld [vmem:[#allocation2 + $0x90] sm:$0xff]
      %v1255 = vld [vmem:[#allocation2 + $0x98] sm:$0xff]
      %v1256 = vld [vmem:[#allocation2 + $0xa0] sm:$0xff]
      %v1257 = vld [vmem:[#allocation2 + $0xa8] sm:$0xff]
      %v1258 = vld [vmem:[#allocation2 + $0xb0] sm:$0xff]
      %v1259 = vld [vmem:[#allocation2 + $0xb8] sm:$0xff]
      %v1260 = vld [vmem:[#allocation2 + $0xc0] sm:$0xff]
      %v1261 = vld [vmem:[#allocation2 + $0xc8] sm:$0xff]
      %v1262 = vld [vmem:[#allocation2 + $0xd0] sm:$0xff]
      %v1263 = vld [vmem:[#allocation2 + $0xd8] sm:$0xff]
      %v1264 = vld [vmem:[#allocation2 + $0xe0] sm:$0xff]
      %v1265 = vld [vmem:[#allocation2 + $0xe8] sm:$0xff]
      %v1266 = vld [vmem:[#allocation2 + $0xf0] sm:$0xff]
      %v1267 = vld [vmem:[#allocation2 + $0xf8] sm:$0xff]
      %v1268 = vld [vmem:[#allocation2 + $0x100] sm:$0xff]
      %v1269 = vld [vmem:[#allocation2 + $0x108] sm:$0xff]
      %v1270 = vld [vmem:[#allocation2 + $0x110] sm:$0xff]
      %v1271 = vld [vmem:[#allocation2 + $0x118] sm:$0xff]
      %v1272 = vld [vmem:[#allocation2 + $0x120] sm:$0xff]
      %v1273 = vld [vmem:[#allocation2 + $0x128] sm:$0xff]
      %v1274 = vld [vmem:[#allocation2 + $0x130] sm:$0xff]
      %v1275 = vld [vmem:[#allocation2 + $0x138] sm:$0xff]
      %v1276 = vld [vmem:[#allocation2 + $0x140] sm:$0xff]
      %v1277 = vld [vmem:[#allocation2 + $0x148] sm:$0xff]
      %v1278 = vld [vmem:[#allocation2 + $0x150] sm:$0xff]
      %v1279 = vld [vmem:[#allocation2 + $0x158] sm:$0xff]
      %v1280 = vld [vmem:[#allocation2 + $0x160] sm:$0xff]
      %v1281 = vld [vmem:[#allocation2 + $0x168] sm:$0xff]
      %v1282 = vld [vmem:[#allocation2 + $0x170] sm:$0xff]
      %v1283 = vld [vmem:[#allocation2 + $0x178] sm:$0xff]
      %v1284 = vld [vmem:[#allocation2 + $0x180] sm:$0xff]
      %v1285 = vld [vmem:[#allocation2 + $0x188] sm:$0xff]
      %v1286 = vld [vmem:[#allocation2 + $0x190] sm:$0xff]
      %v1287 = vld [vmem:[#allocation2 + $0x198] sm:$0xff]
      %v1288 = vld [vmem:[#allocation2 + $0x1a0] sm:$0xff]
      %v1289 = vld [vmem:[#allocation2 + $0x1a8] sm:$0xff]
      %v1290 = vld [vmem:[#allocation2 + $0x1b0] sm:$0xff]
      %v1291 = vld [vmem:[#allocation2 + $0x1b8] sm:$0xff]
      %v1292 = vld [vmem:[#allocation2 + $0x1c0] sm:$0xff]
      %v1293 = vld [vmem:[#allocation2 + $0x1c8] sm:$0xff]
      %v1294 = vld [vmem:[#allocation2 + $0x1d0] sm:$0xff]
      %v1295 = vld [vmem:[#allocation2 + $0x1d8] sm:$0xff]
      %v1296 = vld [vmem:[#allocation2 + $0x1e0] sm:$0xff]
      %v1297 = vld [vmem:[#allocation2 + $0x1e8] sm:$0xff]
      %v1298 = vld [vmem:[#allocation2 + $0x1f0] sm:$0xff]
      %v1299 = vld [vmem:[#allocation2 + $0x1f8] sm:$0xff]
      %v1300 = vld [vmem:[#allocation2 + $0x200] sm:$0xff]
      %v1301 = vld [vmem:[#allocation2 + $0x208] sm:$0xff]
      %v1302 = vld [vmem:[#allocation2 + $0x210] sm:$0xff]
      %v1303 = vld [vmem:[#allocation2 + $0x218] sm:$0xff]
      %v1304 = vld [vmem:[#allocation2 + $0x220] sm:$0xff]
      %v1305 = vld [vmem:[#allocation2 + $0x228] sm:$0xff]
      %v1306 = vld [vmem:[#allocation2 + $0x230] sm:$0xff]
      %v1307 = vld [vmem:[#allocation2 + $0x238] sm:$0xff]
      %v1308 = vld [vmem:[#allocation2 + $0x240] sm:$0xff]
      %v1309 = vld [vmem:[#allocation2 + $0x248] sm:$0xff]
      %v1310 = vld [vmem:[#allocation2 + $0x250] sm:$0xff]
      %v1311 = vld [vmem:[#allocation2 + $0x258] sm:$0xff]
      %v1312 = vld [vmem:[#allocation2 + $0x260] sm:$0xff]
      %v1313 = vld [vmem:[#allocation2 + $0x268] sm:$0xff]
      %v1314 = vld [vmem:[#allocation2 + $0x270] sm:$0xff]
      %v1315 = vld [vmem:[#allocation2 + $0x278] sm:$0xff]
      %v1316 = vld [vmem:[#allocation2 + $0x280] sm:$0xff]
      %v1317 = vld [vmem:[#allocation2 + $0x288] sm:$0xff]
      %v1318 = vld [vmem:[#allocation2 + $0x290] sm:$0xff]
      %v1319 = vld [vmem:[#allocation2 + $0x298] sm:$0xff]
      %v1320 = vld [vmem:[#allocation2 + $0x2a0] sm:$0xff]
      %v1321 = vld [vmem:[#allocation2 + $0x2a8] sm:$0xff]
      %v1322 = vld [vmem:[#allocation2 + $0x2b0] sm:$0xff]
      %v1323 = vld [vmem:[#allocation2 + $0x2b8] sm:$0xff]
      %v1324 = vld [vmem:[#allocation2 + $0x2c0] sm:$0xff]
      %v1325 = vld [vmem:[#allocation2 + $0x2c8] sm:$0xff]
      %v1326 = vld [vmem:[#allocation2 + $0x2d0] sm:$0xff]
      %v1327 = vld [vmem:[#allocation2 + $0x2d8] sm:$0xff]
      %v1328 = vld [vmem:[#allocation2 + $0x2e0] sm:$0xff]
      %v1329 = vld [vmem:[#allocation2 + $0x2e8] sm:$0xff]
      %v1330 = vld [vmem:[#allocation2 + $0x2f0] sm:$0xff]
      %v1331 = vld [vmem:[#allocation2 + $0x2f8] sm:$0xff]
      %v1332 = vld [vmem:[%s1] sm:$0xff]
      %v1333 = vld [vmem:[%s1 + $0x8] sm:$0xff]
      %v1334 = vld [vmem:[%s1 + $0x10] sm:$0xff]
      %v1335 = vld [vmem:[%s1 + $0x18] sm:$0xff]
      %v1336 = vld [vmem:[%s1 + $0x20] sm:$0xff]
      %v1337 = vld [vmem:[%s1 + $0x28] sm:$0xff]
      %v1338 = vld [vmem:[%s1 + $0x30] sm:$0xff]
      %v1339 = vld [vmem:[%s1 + $0x38] sm:$0xff]
      %v1340 = vld [vmem:[%s1 + $0x40] sm:$0xff]
      %v1341 = vld [vmem:[%s1 + $0x48] sm:$0xff]
      %v1342 = vld [vmem:[%s1 + $0x50] sm:$0xff]
      %v1343 = vld [vmem:[%s1 + $0x58] sm:$0xff]
      %v1344 = vld [vmem:[%s1 + $0x60] sm:$0xff]
      %v1345 = vld [vmem:[%s1 + $0x68] sm:$0xff]
      %v1346 = vld [vmem:[%s1 + $0x70] sm:$0xff]
      %v1347 = vld [vmem:[%s1 + $0x78] sm:$0xff]
      %v1348 = vld [vmem:[%s1 + $0x80] sm:$0xff]
      %v1349 = vld [vmem:[%s1 + $0x88] sm:$0xff]
      %v1350 = vld [vmem:[%s1 + $0x90] sm:$0xff]
      %v1351 = vld [vmem:[%s1 + $0x98] sm:$0xff]
      %v1352 = vld [vmem:[%s1 + $0xa0] sm:$0xff]
      %v1353 = vld [vmem:[%s1 + $0xa8] sm:$0xff]
      %v1354 = vld [vmem:[%s1 + $0xb0] sm:$0xff]
      %v1355 = vld [vmem:[%s1 + $0xb8] sm:$0xff]
      %v1356 = vld [vmem:[%s1 + $0xc0] sm:$0xff]
      %v1357 = vld [vmem:[%s1 + $0xc8] sm:$0xff]
      %v1358 = vld [vmem:[%s1 + $0xd0] sm:$0xff]
      %v1359 = vld [vmem:[%s1 + $0xd8] sm:$0xff]
      %v1360 = vld [vmem:[%s1 + $0xe0] sm:$0xff]
      %v1361 = vld [vmem:[%s1 + $0xe8] sm:$0xff]
      %v1362 = vld [vmem:[%s1 + $0xf0] sm:$0xff]
      %v1363 = vld [vmem:[%s1 + $0xf8] sm:$0xff]
      %v1364 = vld [vmem:[%s1 + $0x100] sm:$0xff]
      %v1365 = vld [vmem:[%s1 + $0x108] sm:$0xff]
      %v1366 = vld [vmem:[%s1 + $0x110] sm:$0xff]
      %v1367 = vld [vmem:[%s1 + $0x118] sm:$0xff]
      %v1368 = vld [vmem:[%s1 + $0x120] sm:$0xff]
      %v1369 = vld [vmem:[%s1 + $0x128] sm:$0xff]
      %v1370 = vld [vmem:[%s1 + $0x130] sm:$0xff]
      %v1371 = vld [vmem:[%s1 + $0x138] sm:$0xff]
      %v1372 = vld [vmem:[%s1 + $0x140] sm:$0xff]
      %v1373 = vld [vmem:[%s1 + $0x148] sm:$0xff]
      %v1374 = vld [vmem:[%s1 + $0x150] sm:$0xff]
      %v1375 = vld [vmem:[%s1 + $0x158] sm:$0xff]
      %v1376 = vld [vmem:[%s1 + $0x160] sm:$0xff]
      %v1377 = vld [vmem:[%s1 + $0x168] sm:$0xff]
      %v1378 = vld [vmem:[%s1 + $0x170] sm:$0xff]
      %v1379 = vld [vmem:[%s1 + $0x178] sm:$0xff]
      %1380 = vmatprep.subr.mxu0 0.0
      %1381 = vmatpush1.msra.mxu0 %v1347
      %1382 = vmatprep.subr.mxu0 0.0
      %1383 = vmatpush1.msra.mxu0 %v1346
      %1384 = vmatprep.subr.mxu0 0.0
      %1385 = vmatpush1.msra.mxu0 %v1345
      %1386 = vmatprep.subr.mxu0 0.0
      %1387 = vmatpush1.msra.mxu0 %v1344
      %1388 = vmatprep.subr.mxu0 0.0
      %1389 = vmatpush1.msra.mxu0 %v1343
      %1390 = vmatprep.subr.mxu0 0.0
      %1391 = vmatpush1.msra.mxu0 %v1342
      %1392 = vmatprep.subr.mxu0 0.0
      %1393 = vmatpush1.msra.mxu0 %v1341
      %1394 = vmatprep.subr.mxu0 0.0
      %1395 = vmatpush1.msra.mxu0 %v1340
      %1396 = vmatprep.subr.mxu0 0.0
      %1397 = vmatpush1.msra.mxu0 %v1339
      %1398 = vmatprep.subr.mxu0 0.0
      %1399 = vmatpush1.msra.mxu0 %v1338
      %1400 = vmatprep.subr.mxu0 0.0
      %1401 = vmatpush1.msra.mxu0 %v1337
      %1402 = vmatprep.subr.mxu0 0.0
      %1403 = vmatpush1.msra.mxu0 %v1336
      %1404 = vmatprep.subr.mxu0 0.0
      %1405 = vmatpush1.msra.mxu0 %v1335
      %1406 = vmatprep.subr.mxu0 0.0
      %1407 = vmatpush1.msra.mxu0 %v1334
      %1408 = vmatprep.subr.mxu0 0.0
      %1409 = vmatpush1.msra.mxu0 %v1333
      %1410 = vmatprep.subr.mxu0 0.0
      %1411 = vmatpush1.msra.mxu0 %v1332
      %1412 = vmatprep.subr.mxu0 0.0
      %1413 = vmatpush2.msra.mxu0 %v1363
      %1414 = vmatprep.subr.mxu0 0.0
      %1415 = vmatpush2.msra.mxu0 %v1362
      %1416 = vmatprep.subr.mxu0 0.0
      %1417 = vmatpush2.msra.mxu0 %v1361
      %1418 = vmatprep.subr.mxu0 0.0
      %1419 = vmatpush2.msra.mxu0 %v1360
      %1420 = vmatprep.subr.mxu0 0.0
      %1421 = vmatpush2.msra.mxu0 %v1359
      %1422 = vmatprep.subr.mxu0 0.0
      %1423 = vmatpush2.msra.mxu0 %v1358
      %1424 = vmatprep.subr.mxu0 0.0
      %1425 = vmatpush2.msra.mxu0 %v1357
      %1426 = vmatprep.subr.mxu0 0.0
      %1427 = vmatpush2.msra.mxu0 %v1356
      %1428 = vmatprep.subr.mxu0 0.0
      %1429 = vmatpush2.msra.mxu0 %v1355
      %1430 = vmatprep.subr.mxu0 0.0
      %1431 = vmatpush2.msra.mxu0 %v1354
      %1432 = vmatprep.subr.mxu0 0.0
      %1433 = vmatpush2.msra.mxu0 %v1353
      %1434 = vmatprep.subr.mxu0 0.0
      %1435 = vmatpush2.msra.mxu0 %v1352
      %1436 = vmatprep.subr.mxu0 0.0
      %1437 = vmatpush2.msra.mxu0 %v1351
      %1438 = vmatprep.subr.mxu0 0.0
      %1439 = vmatpush2.msra.mxu0 %v1350
      %1440 = vmatprep.subr.mxu0 0.0
      %1441 = vmatpush2.msra.mxu0 %v1349
      %1442 = vmatprep.subr.mxu0 0.0
      %1443 = vmatpush2.msra.mxu0 %v1348
      %1444 = vmatprep.mubr.f32.mxu0 %v1237
      %1445 = vmatmul.mubr.f32.gmra.mxu0 %v1236
      %v1446 = vpop.f32.mrf.mxu0
      %v1447 = vadd.f32 0.0, %v1446
      %v1448 = vpop.f32.mrf.mxu0
      %1449 = vmatprep.mubr.f32.mxu0 %v1240
      %1450 = vmatmul.mubr.f32.gmra.mxu0 %v1239
      %v1451 = vpop.f32.mrf.mxu0
      %v1452 = vadd.f32 0.0, %v1451
      %v1453 = vpop.f32.mrf.mxu0
      %1454 = vmatprep.mubr.f32.mxu0 %v1243
      %1455 = vmatmul.mubr.f32.gmra.mxu0 %v1242
      %v1456 = vpop.f32.mrf.mxu0
      %v1457 = vadd.f32 0.0, %v1456
      %v1458 = vpop.f32.mrf.mxu0
      %1459 = vmatprep.mubr.f32.mxu0 %v1246
      %1460 = vmatmul.mubr.f32.gmra.mxu0 %v1245
      %v1461 = vpop.f32.mrf.mxu0
      %v1462 = vadd.f32 0.0, %v1461
      %v1463 = vpop.f32.mrf.mxu0
      %1464 = vmatprep.mubr.f32.mxu0 %v1249
      %1465 = vmatmul.mubr.f32.gmra.mxu0 %v1248
      %v1466 = vpop.f32.mrf.mxu0
      %v1467 = vadd.f32 0.0, %v1466
      %v1468 = vpop.f32.mrf.mxu0
      %1469 = vmatprep.mubr.f32.mxu0 %v1252
      %1470 = vmatmul.mubr.f32.gmra.mxu0 %v1251
      %v1471 = vpop.f32.mrf.mxu0
      %v1472 = vadd.f32 0.0, %v1471
      %v1473 = vpop.f32.mrf.mxu0
      %1474 = vmatprep.mubr.f32.mxu0 %v1255
      %1475 = vmatmul.mubr.f32.gmra.mxu0 %v1254
      %v1476 = vpop.f32.mrf.mxu0
      %v1477 = vadd.f32 0.0, %v1476
      %v1478 = vpop.f32.mrf.mxu0
      %1479 = vmatprep.mubr.f32.mxu0 %v1258
      %1480 = vmatmul.mubr.f32.gmra.mxu0 %v1257
      %v1481 = vpop.f32.mrf.mxu0
      %v1482 = vadd.f32 0.0, %v1481
      %v1483 = vpop.f32.mrf.mxu0
      %1484 = vmatprep.mubr.f32.mxu0 %v1261
      %1485 = vmatmul.mubr.f32.gmra.mxu0 %v1260
      %v1486 = vpop.f32.mrf.mxu0
      %v1487 = vadd.f32 0.0, %v1486
      %v1488 = vpop.f32.mrf.mxu0
      %1489 = vmatprep.mubr.f32.mxu0 %v1264
      %1490 = vmatmul.mubr.f32.gmra.mxu0 %v1263
      %v1491 = vpop.f32.mrf.mxu0
      %v1492 = vadd.f32 0.0, %v1491
      %v1493 = vpop.f32.mrf.mxu0
      %1494 = vmatprep.mubr.f32.mxu0 %v1267
      %1495 = vmatmul.mubr.f32.gmra.mxu0 %v1266
      %v1496 = vpop.f32.mrf.mxu0
      %v1497 = vadd.f32 0.0, %v1496
      %v1498 = vpop.f32.mrf.mxu0
      %1499 = vmatprep.mubr.f32.mxu0 %v1270
      %1500 = vmatmul.mubr.f32.gmra.mxu0 %v1269
      %v1501 = vpop.f32.mrf.mxu0
      %v1502 = vadd.f32 0.0, %v1501
      %v1503 = vpop.f32.mrf.mxu0
      %1504 = vmatprep.mubr.f32.mxu0 %v1273
      %1505 = vmatmul.mubr.f32.gmra.mxu0 %v1272
      %v1506 = vpop.f32.mrf.mxu0
      %v1507 = vadd.f32 0.0, %v1506
      %v1508 = vpop.f32.mrf.mxu0
      %1509 = vmatprep.mubr.f32.mxu0 %v1276
      %1510 = vmatmul.mubr.f32.gmra.mxu0 %v1275
      %v1511 = vpop.f32.mrf.mxu0
      %v1512 = vadd.f32 0.0, %v1511
      %v1513 = vpop.f32.mrf.mxu0
      %1514 = vmatprep.mubr.f32.mxu0 %v1279
      %1515 = vmatmul.mubr.f32.gmra.mxu0 %v1278
      %v1516 = vpop.f32.mrf.mxu0
      %v1517 = vadd.f32 0.0, %v1516
      %v1518 = vpop.f32.mrf.mxu0
      %1519 = vmatprep.mubr.f32.mxu0 %v1282
      %1520 = vmatmul.mubr.f32.gmra.mxu0 %v1281
      %v1521 = vpop.f32.mrf.mxu0
      %v1522 = vadd.f32 0.0, %v1521
      %v1523 = vpop.f32.mrf.mxu0
      %1524 = vmatprep.mubr.f32.mxu0 %v1285
      %1525 = vmatmul.mubr.f32.gmra.mxu0 %v1284
      %v1526 = vpop.f32.mrf.mxu0
      %v1527 = vadd.f32 0.0, %v1526
      %v1528 = vpop.f32.mrf.mxu0
      %1529 = vmatprep.mubr.f32.mxu0 %v1288
      %1530 = vmatmul.mubr.f32.gmra.mxu0 %v1287
      %v1531 = vpop.f32.mrf.mxu0
      %v1532 = vadd.f32 0.0, %v1531
      %v1533 = vpop.f32.mrf.mxu0
      %1534 = vmatprep.mubr.f32.mxu0 %v1291
      %1535 = vmatmul.mubr.f32.gmra.mxu0 %v1290
      %v1536 = vpop.f32.mrf.mxu0
      %v1537 = vadd.f32 0.0, %v1536
      %v1538 = vpop.f32.mrf.mxu0
      %1539 = vmatprep.mubr.f32.mxu0 %v1294
      %1540 = vmatmul.mubr.f32.gmra.mxu0 %v1293
      %v1541 = vpop.f32.mrf.mxu0
      %v1542 = vadd.f32 0.0, %v1541
      %v1543 = vpop.f32.mrf.mxu0
      %1544 = vmatprep.mubr.f32.mxu0 %v1297
      %1545 = vmatmul.mubr.f32.gmra.mxu0 %v1296
      %v1546 = vpop.f32.mrf.mxu0
      %v1547 = vadd.f32 0.0, %v1546
      %v1548 = vpop.f32.mrf.mxu0
      %1549 = vmatprep.mubr.f32.mxu0 %v1300
      %1550 = vmatmul.mubr.f32.gmra.mxu0 %v1299
      %v1551 = vpop.f32.mrf.mxu0
      %v1552 = vadd.f32 0.0, %v1551
      %v1553 = vpop.f32.mrf.mxu0
      %1554 = vmatprep.mubr.f32.mxu0 %v1303
      %1555 = vmatmul.mubr.f32.gmra.mxu0 %v1302
      %v1556 = vpop.f32.mrf.mxu0
      %v1557 = vadd.f32 0.0, %v1556
      %v1558 = vpop.f32.mrf.mxu0
      %1559 = vmatprep.mubr.f32.mxu0 %v1306
      %1560 = vmatmul.mubr.f32.gmra.mxu0 %v1305
      %v1561 = vpop.f32.mrf.mxu0
      %v1562 = vadd.f32 0.0, %v1561
      %v1563 = vpop.f32.mrf.mxu0
      %1564 = vmatprep.mubr.f32.mxu0 %v1309
      %1565 = vmatmul.mubr.f32.gmra.mxu0 %v1308
      %v1566 = vpop.f32.mrf.mxu0
      %v1567 = vadd.f32 0.0, %v1566
      %v1568 = vpop.f32.mrf.mxu0
      %1569 = vmatprep.mubr.f32.mxu0 %v1312
      %1570 = vmatmul.mubr.f32.gmra.mxu0 %v1311
      %v1571 = vpop.f32.mrf.mxu0
      %v1572 = vadd.f32 0.0, %v1571
      %v1573 = vpop.f32.mrf.mxu0
      %1574 = vmatprep.mubr.f32.mxu0 %v1315
      %1575 = vmatmul.mubr.f32.gmra.mxu0 %v1314
      %v1576 = vpop.f32.mrf.mxu0
      %v1577 = vadd.f32 0.0, %v1576
      %v1578 = vpop.f32.mrf.mxu0
      %1579 = vmatprep.mubr.f32.mxu0 %v1318
      %1580 = vmatmul.mubr.f32.gmra.mxu0 %v1317
      %v1581 = vpop.f32.mrf.mxu0
      %v1582 = vadd.f32 0.0, %v1581
      %v1583 = vpop.f32.mrf.mxu0
      %1584 = vmatprep.mubr.f32.mxu0 %v1321
      %1585 = vmatmul.mubr.f32.gmra.mxu0 %v1320
      %v1586 = vpop.f32.mrf.mxu0
      %v1587 = vadd.f32 0.0, %v1586
      %v1588 = vpop.f32.mrf.mxu0
      %1589 = vmatprep.mubr.f32.mxu0 %v1324
      %1590 = vmatmul.mubr.f32.gmra.mxu0 %v1323
      %v1591 = vpop.f32.mrf.mxu0
      %v1592 = vadd.f32 0.0, %v1591
      %v1593 = vpop.f32.mrf.mxu0
      %1594 = vmatprep.mubr.f32.mxu0 %v1327
      %1595 = vmatmul.mubr.f32.gmra.mxu0 %v1326
      %v1596 = vpop.f32.mrf.mxu0
      %v1597 = vadd.f32 0.0, %v1596
      %v1598 = vpop.f32.mrf.mxu0
      %1599 = vmatprep.mubr.f32.mxu0 %v1330
      %1600 = vmatmul.mubr.f32.gmra.mxu0 %v1329
      %v1601 = vpop.f32.mrf.mxu0
      %v1602 = vadd.f32 0.0, %v1601
      %v1603 = vpop.f32.mrf.mxu0
      %1604 = vdwg.mxu0
      %1605 = vmatprep.subr.mxu0 0.0
      %1606 = vmatpush1.msra.mxu0 %v1379
      %1607 = vmatprep.subr.mxu0 0.0
      %1608 = vmatpush1.msra.mxu0 %v1378
      %1609 = vmatprep.subr.mxu0 0.0
      %1610 = vmatpush1.msra.mxu0 %v1377
      %1611 = vmatprep.subr.mxu0 0.0
      %1612 = vmatpush1.msra.mxu0 %v1376
      %1613 = vmatprep.subr.mxu0 0.0
      %1614 = vmatpush1.msra.mxu0 %v1375
      %1615 = vmatprep.subr.mxu0 0.0
      %1616 = vmatpush1.msra.mxu0 %v1374
      %1617 = vmatprep.subr.mxu0 0.0
      %1618 = vmatpush1.msra.mxu0 %v1373
      %1619 = vmatprep.subr.mxu0 0.0
      %1620 = vmatpush1.msra.mxu0 %v1372
      %1621 = vmatprep.subr.mxu0 0.0
      %1622 = vmatpush1.msra.mxu0 %v1371
      %1623 = vmatprep.subr.mxu0 0.0
      %1624 = vmatpush1.msra.mxu0 %v1370
      %1625 = vmatprep.subr.mxu0 0.0
      %1626 = vmatpush1.msra.mxu0 %v1369
      %1627 = vmatprep.subr.mxu0 0.0
      %1628 = vmatpush1.msra.mxu0 %v1368
      %1629 = vmatprep.subr.mxu0 0.0
      %1630 = vmatpush1.msra.mxu0 %v1367
      %1631 = vmatprep.subr.mxu0 0.0
      %1632 = vmatpush1.msra.mxu0 %v1366
      %1633 = vmatprep.subr.mxu0 0.0
      %1634 = vmatpush1.msra.mxu0 %v1365
      %1635 = vmatprep.subr.mxu0 0.0
      %1636 = vmatpush1.msra.mxu0 %v1364
      %1637 = vmatprep.subr.mxu0 0.0
      %1638 = vmatpush2.msra.mxu0 0.0
      %1639 = vmatprep.subr.mxu0 0.0
      %1640 = vmatpush2.msra.mxu0 0.0
      %1641 = vmatprep.subr.mxu0 0.0
      %1642 = vmatpush2.msra.mxu0 0.0
      %1643 = vmatprep.subr.mxu0 0.0
      %1644 = vmatpush2.msra.mxu0 0.0
      %1645 = vmatprep.subr.mxu0 0.0
      %1646 = vmatpush2.msra.mxu0 0.0
      %1647 = vmatprep.subr.mxu0 0.0
      %1648 = vmatpush2.msra.mxu0 0.0
      %1649 = vmatprep.subr.mxu0 0.0
      %1650 = vmatpush2.msra.mxu0 0.0
      %1651 = vmatprep.subr.mxu0 0.0
      %1652 = vmatpush2.msra.mxu0 0.0
      %1653 = vmatprep.subr.mxu0 0.0
      %1654 = vmatpush2.msra.mxu0 0.0
      %1655 = vmatprep.subr.mxu0 0.0
      %1656 = vmatpush2.msra.mxu0 0.0
      %1657 = vmatprep.subr.mxu0 0.0
      %1658 = vmatpush2.msra.mxu0 0.0
      %1659 = vmatprep.subr.mxu0 0.0
      %1660 = vmatpush2.msra.mxu0 0.0
      %1661 = vmatprep.subr.mxu0 0.0
      %1662 = vmatpush2.msra.mxu0 0.0
      %1663 = vmatprep.subr.mxu0 0.0
      %1664 = vmatpush2.msra.mxu0 0.0
      %1665 = vmatprep.subr.mxu0 0.0
      %1666 = vmatpush2.msra.mxu0 0.0
      %1667 = vmatprep.subr.mxu0 0.0
      %1668 = vmatpush2.msra.mxu0 0.0
      %1669 = vmatprep.mubr.f32.mxu0 0.0
      %1670 = vmatmul.mubr.f32.gmra.mxu0 %v1238
      %v1671 = vpop.f32.mrf.mxu0
      %v1672 = vadd.f32 %v1447, %v1671
      %v1673 = vpop.f32.mrf.mxu0
      %1674 = vmatprep.mubr.f32.mxu0 0.0
      %1675 = vmatmul.mubr.f32.gmra.mxu0 %v1241
      %v1676 = vpop.f32.mrf.mxu0
      %v1677 = vadd.f32 %v1452, %v1676
      %v1678 = vpop.f32.mrf.mxu0
      %1679 = vmatprep.mubr.f32.mxu0 0.0
      %1680 = vmatmul.mubr.f32.gmra.mxu0 %v1244
      %v1681 = vpop.f32.mrf.mxu0
      %v1682 = vadd.f32 %v1457, %v1681
      %v1683 = vpop.f32.mrf.mxu0
      %1684 = vmatprep.mubr.f32.mxu0 0.0
      %1685 = vmatmul.mubr.f32.gmra.mxu0 %v1247
      %v1686 = vpop.f32.mrf.mxu0
      %v1687 = vadd.f32 %v1462, %v1686
      %v1688 = vpop.f32.mrf.mxu0
      %1689 = vmatprep.mubr.f32.mxu0 0.0
      %1690 = vmatmul.mubr.f32.gmra.mxu0 %v1250
      %v1691 = vpop.f32.mrf.mxu0
      %v1692 = vadd.f32 %v1467, %v1691
      %v1693 = vpop.f32.mrf.mxu0
      %1694 = vmatprep.mubr.f32.mxu0 0.0
      %1695 = vmatmul.mubr.f32.gmra.mxu0 %v1253
      %v1696 = vpop.f32.mrf.mxu0
      %v1697 = vadd.f32 %v1472, %v1696
      %v1698 = vpop.f32.mrf.mxu0
      %1699 = vmatprep.mubr.f32.mxu0 0.0
      %1700 = vmatmul.mubr.f32.gmra.mxu0 %v1256
      %v1701 = vpop.f32.mrf.mxu0
      %v1702 = vadd.f32 %v1477, %v1701
      %v1703 = vpop.f32.mrf.mxu0
      %1704 = vmatprep.mubr.f32.mxu0 0.0
      %1705 = vmatmul.mubr.f32.gmra.mxu0 %v1259
      %v1706 = vpop.f32.mrf.mxu0
      %v1707 = vadd.f32 %v1482, %v1706
      %v1708 = vpop.f32.mrf.mxu0
      %1709 = vmatprep.mubr.f32.mxu0 0.0
      %1710 = vmatmul.mubr.f32.gmra.mxu0 %v1262
      %v1711 = vpop.f32.mrf.mxu0
      %v1712 = vadd.f32 %v1487, %v1711
      %v1713 = vpop.f32.mrf.mxu0
      %1714 = vmatprep.mubr.f32.mxu0 0.0
      %1715 = vmatmul.mubr.f32.gmra.mxu0 %v1265
      %v1716 = vpop.f32.mrf.mxu0
      %v1717 = vadd.f32 %v1492, %v1716
      %v1718 = vpop.f32.mrf.mxu0
      %1719 = vmatprep.mubr.f32.mxu0 0.0
      %1720 = vmatmul.mubr.f32.gmra.mxu0 %v1268
      %v1721 = vpop.f32.mrf.mxu0
      %v1722 = vadd.f32 %v1497, %v1721
      %v1723 = vpop.f32.mrf.mxu0
      %1724 = vmatprep.mubr.f32.mxu0 0.0
      %1725 = vmatmul.mubr.f32.gmra.mxu0 %v1271
      %v1726 = vpop.f32.mrf.mxu0
      %v1727 = vadd.f32 %v1502, %v1726
      %v1728 = vpop.f32.mrf.mxu0
      %1729 = vmatprep.mubr.f32.mxu0 0.0
      %1730 = vmatmul.mubr.f32.gmra.mxu0 %v1274
      %v1731 = vpop.f32.mrf.mxu0
      %v1732 = vadd.f32 %v1507, %v1731
      %v1733 = vpop.f32.mrf.mxu0
      %1734 = vmatprep.mubr.f32.mxu0 0.0
      %1735 = vmatmul.mubr.f32.gmra.mxu0 %v1277
      %v1736 = vpop.f32.mrf.mxu0
      %v1737 = vadd.f32 %v1512, %v1736
      %v1738 = vpop.f32.mrf.mxu0
      %1739 = vmatprep.mubr.f32.mxu0 0.0
      %1740 = vmatmul.mubr.f32.gmra.mxu0 %v1280
      %v1741 = vpop.f32.mrf.mxu0
      %v1742 = vadd.f32 %v1517, %v1741
      %v1743 = vpop.f32.mrf.mxu0
      %1744 = vmatprep.mubr.f32.mxu0 0.0
      %1745 = vmatmul.mubr.f32.gmra.mxu0 %v1283
      %v1746 = vpop.f32.mrf.mxu0
      %v1747 = vadd.f32 %v1522, %v1746
      %v1748 = vpop.f32.mrf.mxu0
      %1749 = vmatprep.mubr.f32.mxu0 0.0
      %1750 = vmatmul.mubr.f32.gmra.mxu0 %v1286
      %v1751 = vpop.f32.mrf.mxu0
      %v1752 = vadd.f32 %v1527, %v1751
      %v1753 = vpop.f32.mrf.mxu0
      %1754 = vmatprep.mubr.f32.mxu0 0.0
      %1755 = vmatmul.mubr.f32.gmra.mxu0 %v1289
      %v1756 = vpop.f32.mrf.mxu0
      %v1757 = vadd.f32 %v1532, %v1756
      %v1758 = vpop.f32.mrf.mxu0
      %1759 = vmatprep.mubr.f32.mxu0 0.0
      %1760 = vmatmul.mubr.f32.gmra.mxu0 %v1292
      %v1761 = vpop.f32.mrf.mxu0
      %v1762 = vadd.f32 %v1537, %v1761
      %v1763 = vpop.f32.mrf.mxu0
      %1764 = vmatprep.mubr.f32.mxu0 0.0
      %1765 = vmatmul.mubr.f32.gmra.mxu0 %v1295
      %v1766 = vpop.f32.mrf.mxu0
      %v1767 = vadd.f32 %v1542, %v1766
      %v1768 = vpop.f32.mrf.mxu0
      %1769 = vmatprep.mubr.f32.mxu0 0.0
      %1770 = vmatmul.mubr.f32.gmra.mxu0 %v1298
      %v1771 = vpop.f32.mrf.mxu0
      %v1772 = vadd.f32 %v1547, %v1771
      %v1773 = vpop.f32.mrf.mxu0
      %1774 = vmatprep.mubr.f32.mxu0 0.0
      %1775 = vmatmul.mubr.f32.gmra.mxu0 %v1301
      %v1776 = vpop.f32.mrf.mxu0
      %v1777 = vadd.f32 %v1552, %v1776
      %v1778 = vpop.f32.mrf.mxu0
      %1779 = vmatprep.mubr.f32.mxu0 0.0
      %1780 = vmatmul.mubr.f32.gmra.mxu0 %v1304
      %v1781 = vpop.f32.mrf.mxu0
      %v1782 = vadd.f32 %v1557, %v1781
      %v1783 = vpop.f32.mrf.mxu0
      %1784 = vmatprep.mubr.f32.mxu0 0.0
      %1785 = vmatmul.mubr.f32.gmra.mxu0 %v1307
      %v1786 = vpop.f32.mrf.mxu0
      %v1787 = vadd.f32 %v1562, %v1786
      %v1788 = vpop.f32.mrf.mxu0
      %1789 = vmatprep.mubr.f32.mxu0 0.0
      %1790 = vmatmul.mubr.f32.gmra.mxu0 %v1310
      %v1791 = vpop.f32.mrf.mxu0
      %v1792 = vadd.f32 %v1567, %v1791
      %v1793 = vpop.f32.mrf.mxu0
      %1794 = vmatprep.mubr.f32.mxu0 0.0
      %1795 = vmatmul.mubr.f32.gmra.mxu0 %v1313
      %v1796 = vpop.f32.mrf.mxu0
      %v1797 = vadd.f32 %v1572, %v1796
      %v1798 = vpop.f32.mrf.mxu0
      %1799 = vmatprep.mubr.f32.mxu0 0.0
      %1800 = vmatmul.mubr.f32.gmra.mxu0 %v1316
      %v1801 = vpop.f32.mrf.mxu0
      %v1802 = vadd.f32 %v1577, %v1801
      %v1803 = vpop.f32.mrf.mxu0
      %1804 = vmatprep.mubr.f32.mxu0 0.0
      %1805 = vmatmul.mubr.f32.gmra.mxu0 %v1319
      %v1806 = vpop.f32.mrf.mxu0
      %v1807 = vadd.f32 %v1582, %v1806
      %v1808 = vpop.f32.mrf.mxu0
      %1809 = vmatprep.mubr.f32.mxu0 0.0
      %1810 = vmatmul.mubr.f32.gmra.mxu0 %v1322
      %v1811 = vpop.f32.mrf.mxu0
      %v1812 = vadd.f32 %v1587, %v1811
      %v1813 = vpop.f32.mrf.mxu0
      %1814 = vmatprep.mubr.f32.mxu0 0.0
      %1815 = vmatmul.mubr.f32.gmra.mxu0 %v1325
      %v1816 = vpop.f32.mrf.mxu0
      %v1817 = vadd.f32 %v1592, %v1816
      %v1818 = vpop.f32.mrf.mxu0
      %1819 = vmatprep.mubr.f32.mxu0 0.0
      %1820 = vmatmul.mubr.f32.gmra.mxu0 %v1328
      %v1821 = vpop.f32.mrf.mxu0
      %v1822 = vadd.f32 %v1597, %v1821
      %v1823 = vpop.f32.mrf.mxu0
      %1824 = vmatprep.mubr.f32.mxu0 0.0
      %1825 = vmatmul.mubr.f32.gmra.mxu0 %v1331
      %v1826 = vpop.f32.mrf.mxu0
      %v1827 = vadd.f32 %v1602, %v1826
      %v1828 = vpop.f32.mrf.mxu0
      %1829 = vdwg.mxu0
      %1830 = vst [vmem:[#allocation3] sm:$0xff] %v1672
      %1831 = vst [vmem:[#allocation3 + $0x8] sm:$0xff] %v1677
      %1832 = vst [vmem:[#allocation3 + $0x10] sm:$0xff] %v1682
      %1833 = vst [vmem:[#allocation3 + $0x18] sm:$0xff] %v1687
      %1834 = vst [vmem:[#allocation3 + $0x20] sm:$0xff] %v1692
      %1835 = vst [vmem:[#allocation3 + $0x28] sm:$0xff] %v1697
      %1836 = vst [vmem:[#allocation3 + $0x30] sm:$0xff] %v1702
      %1837 = vst [vmem:[#allocation3 + $0x38] sm:$0xff] %v1707
      %1838 = vst [vmem:[#allocation3 + $0x40] sm:$0xff] %v1712
      %1839 = vst [vmem:[#allocation3 + $0x48] sm:$0xff] %v1717
      %1840 = vst [vmem:[#allocation3 + $0x50] sm:$0xff] %v1722
      %1841 = vst [vmem:[#allocation3 + $0x58] sm:$0xff] %v1727
      %1842 = vst [vmem:[#allocation3 + $0x60] sm:$0xff] %v1732
      %1843 = vst [vmem:[#allocation3 + $0x68] sm:$0xff] %v1737
      %1844 = vst [vmem:[#allocation3 + $0x70] sm:$0xff] %v1742
      %1845 = vst [vmem:[#allocation3 + $0x78] sm:$0xff] %v1747
      %1846 = vst [vmem:[#allocation3 + $0x80] sm:$0xff] %v1752
      %1847 = vst [vmem:[#allocation3 + $0x88] sm:$0xff] %v1757
      %1848 = vst [vmem:[#allocation3 + $0x90] sm:$0xff] %v1762
      %1849 = vst [vmem:[#allocation3 + $0x98] sm:$0xff] %v1767
      %1850 = vst [vmem:[#allocation3 + $0xa0] sm:$0xff] %v1772
      %1851 = vst [vmem:[#allocation3 + $0xa8] sm:$0xff] %v1777
      %1852 = vst [vmem:[#allocation3 + $0xb0] sm:$0xff] %v1782
      %1853 = vst [vmem:[#allocation3 + $0xb8] sm:$0xff] %v1787
      %1854 = vst [vmem:[#allocation3 + $0xc0] sm:$0xff] %v1792
      %1855 = vst [vmem:[#allocation3 + $0xc8] sm:$0xff] %v1797
      %1856 = vst [vmem:[#allocation3 + $0xd0] sm:$0xff] %v1802
      %1857 = vst [vmem:[#allocation3 + $0xd8] sm:$0xff] %v1807
      %1858 = vst [vmem:[#allocation3 + $0xe0] sm:$0xff] %v1812
      %1859 = vst [vmem:[#allocation3 + $0xe8] sm:$0xff] %v1817
      %1860 = vst [vmem:[#allocation3 + $0xf0] sm:$0xff] %v1822
      %1861 = vst [vmem:[#allocation3 + $0xf8] sm:$0xff] %v1827
      %v1862 = vld [vmem:[#allocation2 + $0x30] sm:$0xff]
      %v1863 = vld [vmem:[#allocation2 + $0x38] sm:$0xff]
      %v1864 = vld [vmem:[#allocation2 + $0x40] sm:$0xff]
      %v1865 = vld [vmem:[#allocation2 + $0x48] sm:$0xff]
      %v1866 = vld [vmem:[#allocation2 + $0x50] sm:$0xff]
      %v1867 = vld [vmem:[#allocation2 + $0x58] sm:$0xff]
      %v1868 = vld [vmem:[#allocation2 + $0x60] sm:$0xff]
      %v1869 = vld [vmem:[#allocation2 + $0x68] sm:$0xff]
      %v1870 = vld [vmem:[#allocation2 + $0x70] sm:$0xff]
      %v1871 = vld [vmem:[#allocation2 + $0x78] sm:$0xff]
      %v1872 = vld [vmem:[#allocation2 + $0x80] sm:$0xff]
      %v1873 = vld [vmem:[#allocation2 + $0x88] sm:$0xff]
      %v1874 = vld [vmem:[#allocation2 + $0x90] sm:$0xff]
      %v1875 = vld [vmem:[#allocation2 + $0x98] sm:$0xff]
      %v1876 = vld [vmem:[#allocation2 + $0xa0] sm:$0xff]
      %v1877 = vld [vmem:[#allocation2 + $0xa8] sm:$0xff]
      %v1878 = vld [vmem:[#allocation2 + $0xb0] sm:$0xff]
      %v1879 = vld [vmem:[#allocation2 + $0xb8] sm:$0xff]
      %v1880 = vld [vmem:[#allocation2 + $0xc0] sm:$0xff]
      %v1881 = vld [vmem:[#allocation2 + $0xc8] sm:$0xff]
      %v1882 = vld [vmem:[#allocation2 + $0xd0] sm:$0xff]
      %v1883 = vld [vmem:[#allocation2 + $0xd8] sm:$0xff]
      %v1884 = vld [vmem:[#allocation2 + $0xe0] sm:$0xff]
      %v1885 = vld [vmem:[#allocation2 + $0xe8] sm:$0xff]
      %v1886 = vld [vmem:[#allocation2 + $0xf0] sm:$0xff]
      %v1887 = vld [vmem:[#allocation2 + $0xf8] sm:$0xff]
      %v1888 = vld [vmem:[#allocation2 + $0x100] sm:$0xff]
      %v1889 = vld [vmem:[#allocation2 + $0x108] sm:$0xff]
      %v1890 = vld [vmem:[#allocation2 + $0x110] sm:$0xff]
      %v1891 = vld [vmem:[#allocation2 + $0x118] sm:$0xff]
      %v1892 = vld [vmem:[#allocation2 + $0x120] sm:$0xff]
      %v1893 = vld [vmem:[#allocation2 + $0x128] sm:$0xff]
      %v1894 = vld [vmem:[#allocation2 + $0x130] sm:$0xff]
      %v1895 = vld [vmem:[#allocation2 + $0x138] sm:$0xff]
      %v1896 = vld [vmem:[#allocation2 + $0x140] sm:$0xff]
      %v1897 = vld [vmem:[#allocation2 + $0x148] sm:$0xff]
      %v1898 = vld [vmem:[#allocation2 + $0x150] sm:$0xff]
      %v1899 = vld [vmem:[#allocation2 + $0x158] sm:$0xff]
      %v1900 = vld [vmem:[#allocation2 + $0x160] sm:$0xff]
      %v1901 = vld [vmem:[#allocation2 + $0x168] sm:$0xff]
      %v1902 = vld [vmem:[#allocation2 + $0x170] sm:$0xff]
      %v1903 = vld [vmem:[#allocation2 + $0x178] sm:$0xff]
      %v1904 = vld [vmem:[#allocation2 + $0x180] sm:$0xff]
      %v1905 = vld [vmem:[#allocation2 + $0x188] sm:$0xff]
      %v1906 = vld [vmem:[#allocation2 + $0x190] sm:$0xff]
      %v1907 = vld [vmem:[#allocation2 + $0x198] sm:$0xff]
      %v1908 = vld [vmem:[#allocation2 + $0x1a0] sm:$0xff]
      %v1909 = vld [vmem:[#allocation2 + $0x1a8] sm:$0xff]
      %v1910 = vld [vmem:[#allocation2 + $0x1b0] sm:$0xff]
      %v1911 = vld [vmem:[#allocation2 + $0x1b8] sm:$0xff]
      %v1912 = vld [vmem:[#allocation2 + $0x1c0] sm:$0xff]
      %v1913 = vld [vmem:[#allocation2 + $0x1c8] sm:$0xff]
      %v1914 = vld [vmem:[#allocation2 + $0x1d0] sm:$0xff]
      %v1915 = vld [vmem:[#allocation2 + $0x1d8] sm:$0xff]
      %v1916 = vld [vmem:[#allocation2 + $0x1e0] sm:$0xff]
      %v1917 = vld [vmem:[#allocation2 + $0x1e8] sm:$0xff]
      %v1918 = vld [vmem:[#allocation2 + $0x1f0] sm:$0xff]
      %v1919 = vld [vmem:[#allocation2 + $0x1f8] sm:$0xff]
      %v1920 = vld [vmem:[#allocation2 + $0x200] sm:$0xff]
      %v1921 = vld [vmem:[#allocation2 + $0x208] sm:$0xff]
      %v1922 = vld [vmem:[#allocation2 + $0x210] sm:$0xff]
      %v1923 = vld [vmem:[#allocation2 + $0x218] sm:$0xff]
      %v1924 = vld [vmem:[#allocation2 + $0x220] sm:$0xff]
      %v1925 = vld [vmem:[#allocation2 + $0x228] sm:$0xff]
      %v1926 = vld [vmem:[#allocation2 + $0x230] sm:$0xff]
      %v1927 = vld [vmem:[#allocation2 + $0x238] sm:$0xff]
      %v1928 = vld [vmem:[#allocation2 + $0x240] sm:$0xff]
      %v1929 = vld [vmem:[#allocation2 + $0x248] sm:$0xff]
      %v1930 = vld [vmem:[#allocation2 + $0x250] sm:$0xff]
      %v1931 = vld [vmem:[#allocation2 + $0x258] sm:$0xff]
      %v1932 = vld [vmem:[#allocation2 + $0x260] sm:$0xff]
      %v1933 = vld [vmem:[#allocation2 + $0x268] sm:$0xff]
      %v1934 = vld [vmem:[#allocation2 + $0x270] sm:$0xff]
      %v1935 = vld [vmem:[#allocation2 + $0x278] sm:$0xff]
      %v1936 = vld [vmem:[#allocation2 + $0x280] sm:$0xff]
      %v1937 = vld [vmem:[#allocation2 + $0x288] sm:$0xff]
      %v1938 = vld [vmem:[#allocation2 + $0x290] sm:$0xff]
      %v1939 = vld [vmem:[#allocation2 + $0x298] sm:$0xff]
      %v1940 = vld [vmem:[#allocation2 + $0x2a0] sm:$0xff]
      %v1941 = vld [vmem:[#allocation2 + $0x2a8] sm:$0xff]
      %v1942 = vld [vmem:[#allocation2 + $0x2b0] sm:$0xff]
      %v1943 = vld [vmem:[#allocation2 + $0x2b8] sm:$0xff]
      %v1944 = vld [vmem:[#allocation2 + $0x2c0] sm:$0xff]
      %v1945 = vld [vmem:[#allocation2 + $0x2c8] sm:$0xff]
      %v1946 = vld [vmem:[#allocation2 + $0x2d0] sm:$0xff]
      %v1947 = vld [vmem:[#allocation2 + $0x2d8] sm:$0xff]
      %v1948 = vld [vmem:[#allocation2 + $0x2e0] sm:$0xff]
      %v1949 = vld [vmem:[#allocation2 + $0x2e8] sm:$0xff]
      %v1950 = vld [vmem:[#allocation2 + $0x2f0] sm:$0xff]
      %v1951 = vld [vmem:[#allocation2 + $0x2f8] sm:$0xff]
      %v1952 = vld [vmem:[#allocation2 + $0x300] sm:$0xff]
      %v1953 = vld [vmem:[#allocation2 + $0x308] sm:$0xff]
      %v1954 = vld [vmem:[#allocation2 + $0x310] sm:$0xff]
      %v1955 = vld [vmem:[#allocation2 + $0x318] sm:$0xff]
      %v1956 = vld [vmem:[#allocation2 + $0x320] sm:$0xff]
      %v1957 = vld [vmem:[#allocation2 + $0x328] sm:$0xff]
      %s1958 = scalar_lea.vmem %s1, 384
      %v1959 = vld [vmem:[%s1958] sm:$0xff]
      %v1960 = vld [vmem:[%s1958 + $0x8] sm:$0xff]
      %v1961 = vld [vmem:[%s1958 + $0x10] sm:$0xff]
      %v1962 = vld [vmem:[%s1958 + $0x18] sm:$0xff]
      %v1963 = vld [vmem:[%s1958 + $0x20] sm:$0xff]
      %v1964 = vld [vmem:[%s1958 + $0x28] sm:$0xff]
      %v1965 = vld [vmem:[%s1958 + $0x30] sm:$0xff]
      %v1966 = vld [vmem:[%s1958 + $0x38] sm:$0xff]
      %v1967 = vld [vmem:[%s1958 + $0x40] sm:$0xff]
      %v1968 = vld [vmem:[%s1958 + $0x48] sm:$0xff]
      %v1969 = vld [vmem:[%s1958 + $0x50] sm:$0xff]
      %v1970 = vld [vmem:[%s1958 + $0x58] sm:$0xff]
      %v1971 = vld [vmem:[%s1958 + $0x60] sm:$0xff]
      %v1972 = vld [vmem:[%s1958 + $0x68] sm:$0xff]
      %v1973 = vld [vmem:[%s1958 + $0x70] sm:$0xff]
      %v1974 = vld [vmem:[%s1958 + $0x78] sm:$0xff]
      %v1975 = vld [vmem:[%s1958 + $0x80] sm:$0xff]
      %v1976 = vld [vmem:[%s1958 + $0x88] sm:$0xff]
      %v1977 = vld [vmem:[%s1958 + $0x90] sm:$0xff]
      %v1978 = vld [vmem:[%s1958 + $0x98] sm:$0xff]
      %v1979 = vld [vmem:[%s1958 + $0xa0] sm:$0xff]
      %v1980 = vld [vmem:[%s1958 + $0xa8] sm:$0xff]
      %v1981 = vld [vmem:[%s1958 + $0xb0] sm:$0xff]
      %v1982 = vld [vmem:[%s1958 + $0xb8] sm:$0xff]
      %v1983 = vld [vmem:[%s1958 + $0xc0] sm:$0xff]
      %v1984 = vld [vmem:[%s1958 + $0xc8] sm:$0xff]
      %v1985 = vld [vmem:[%s1958 + $0xd0] sm:$0xff]
      %v1986 = vld [vmem:[%s1958 + $0xd8] sm:$0xff]
      %v1987 = vld [vmem:[%s1958 + $0xe0] sm:$0xff]
      %v1988 = vld [vmem:[%s1958 + $0xe8] sm:$0xff]
      %v1989 = vld [vmem:[%s1958 + $0xf0] sm:$0xff]
      %v1990 = vld [vmem:[%s1958 + $0xf8] sm:$0xff]
      %v1991 = vld [vmem:[%s1958 + $0x100] sm:$0xff]
      %v1992 = vld [vmem:[%s1958 + $0x108] sm:$0xff]
      %v1993 = vld [vmem:[%s1958 + $0x110] sm:$0xff]
      %v1994 = vld [vmem:[%s1958 + $0x118] sm:$0xff]
      %v1995 = vld [vmem:[%s1958 + $0x120] sm:$0xff]
      %v1996 = vld [vmem:[%s1958 + $0x128] sm:$0xff]
      %v1997 = vld [vmem:[%s1958 + $0x130] sm:$0xff]
      %v1998 = vld [vmem:[%s1958 + $0x138] sm:$0xff]
      %v1999 = vld [vmem:[%s1958 + $0x140] sm:$0xff]
      %v2000 = vld [vmem:[%s1958 + $0x148] sm:$0xff]
      %v2001 = vld [vmem:[%s1958 + $0x150] sm:$0xff]
      %v2002 = vld [vmem:[%s1958 + $0x158] sm:$0xff]
      %v2003 = vld [vmem:[%s1958 + $0x160] sm:$0xff]
      %v2004 = vld [vmem:[%s1958 + $0x168] sm:$0xff]
      %v2005 = vld [vmem:[%s1958 + $0x170] sm:$0xff]
      %v2006 = vld [vmem:[%s1958 + $0x178] sm:$0xff]
      %2007 = vmatprep.subr.mxu0 0.0
      %2008 = vmatpush1.msra.mxu0 %v1974
      %2009 = vmatprep.subr.mxu0 0.0
      %2010 = vmatpush1.msra.mxu0 %v1973
      %2011 = vmatprep.subr.mxu0 0.0
      %2012 = vmatpush1.msra.mxu0 %v1972
      %2013 = vmatprep.subr.mxu0 0.0
      %2014 = vmatpush1.msra.mxu0 %v1971
      %2015 = vmatprep.subr.mxu0 0.0
      %2016 = vmatpush1.msra.mxu0 %v1970
      %2017 = vmatprep.subr.mxu0 0.0
      %2018 = vmatpush1.msra.mxu0 %v1969
      %2019 = vmatprep.subr.mxu0 0.0
      %2020 = vmatpush1.msra.mxu0 %v1968
      %2021 = vmatprep.subr.mxu0 0.0
      %2022 = vmatpush1.msra.mxu0 %v1967
      %2023 = vmatprep.subr.mxu0 0.0
      %2024 = vmatpush1.msra.mxu0 %v1966
      %2025 = vmatprep.subr.mxu0 0.0
      %2026 = vmatpush1.msra.mxu0 %v1965
      %2027 = vmatprep.subr.mxu0 0.0
      %2028 = vmatpush1.msra.mxu0 %v1964
      %2029 = vmatprep.subr.mxu0 0.0
      %2030 = vmatpush1.msra.mxu0 %v1963
      %2031 = vmatprep.subr.mxu0 0.0
      %2032 = vmatpush1.msra.mxu0 %v1962
      %2033 = vmatprep.subr.mxu0 0.0
      %2034 = vmatpush1.msra.mxu0 %v1961
      %2035 = vmatprep.subr.mxu0 0.0
      %2036 = vmatpush1.msra.mxu0 %v1960
      %2037 = vmatprep.subr.mxu0 0.0
      %2038 = vmatpush1.msra.mxu0 %v1959
      %2039 = vmatprep.subr.mxu0 0.0
      %2040 = vmatpush2.msra.mxu0 %v1990
      %2041 = vmatprep.subr.mxu0 0.0
      %2042 = vmatpush2.msra.mxu0 %v1989
      %2043 = vmatprep.subr.mxu0 0.0
      %2044 = vmatpush2.msra.mxu0 %v1988
      %2045 = vmatprep.subr.mxu0 0.0
      %2046 = vmatpush2.msra.mxu0 %v1987
      %2047 = vmatprep.subr.mxu0 0.0
      %2048 = vmatpush2.msra.mxu0 %v1986
      %2049 = vmatprep.subr.mxu0 0.0
      %2050 = vmatpush2.msra.mxu0 %v1985
      %2051 = vmatprep.subr.mxu0 0.0
      %2052 = vmatpush2.msra.mxu0 %v1984
      %2053 = vmatprep.subr.mxu0 0.0
      %2054 = vmatpush2.msra.mxu0 %v1983
      %2055 = vmatprep.subr.mxu0 0.0
      %2056 = vmatpush2.msra.mxu0 %v1982
      %2057 = vmatprep.subr.mxu0 0.0
      %2058 = vmatpush2.msra.mxu0 %v1981
      %2059 = vmatprep.subr.mxu0 0.0
      %2060 = vmatpush2.msra.mxu0 %v1980
      %2061 = vmatprep.subr.mxu0 0.0
      %2062 = vmatpush2.msra.mxu0 %v1979
      %2063 = vmatprep.subr.mxu0 0.0
      %2064 = vmatpush2.msra.mxu0 %v1978
      %2065 = vmatprep.subr.mxu0 0.0
      %2066 = vmatpush2.msra.mxu0 %v1977
      %2067 = vmatprep.subr.mxu0 0.0
      %2068 = vmatpush2.msra.mxu0 %v1976
      %2069 = vmatprep.subr.mxu0 0.0
      %2070 = vmatpush2.msra.mxu0 %v1975
      %2071 = vmatprep.mubr.f32.mxu0 %v1863
      %2072 = vmatmul.mubr.f32.gmra.mxu0 %v1862
      %v2073 = vpop.f32.mrf.mxu0
      %v2074 = vadd.f32 0.0, %v2073
      %v2075 = vpop.f32.mrf.mxu0
      %2076 = vmatprep.mubr.f32.mxu0 %v1866
      %2077 = vmatmul.mubr.f32.gmra.mxu0 %v1865
      %v2078 = vpop.f32.mrf.mxu0
      %v2079 = vadd.f32 0.0, %v2078
      %v2080 = vpop.f32.mrf.mxu0
      %2081 = vmatprep.mubr.f32.mxu0 %v1869
      %2082 = vmatmul.mubr.f32.gmra.mxu0 %v1868
      %v2083 = vpop.f32.mrf.mxu0
      %v2084 = vadd.f32 0.0, %v2083
      %v2085 = vpop.f32.mrf.mxu0
      %2086 = vmatprep.mubr.f32.mxu0 %v1872
      %2087 = vmatmul.mubr.f32.gmra.mxu0 %v1871
      %v2088 = vpop.f32.mrf.mxu0
      %v2089 = vadd.f32 0.0, %v2088
      %v2090 = vpop.f32.mrf.mxu0
      %2091 = vmatprep.mubr.f32.mxu0 %v1875
      %2092 = vmatmul.mubr.f32.gmra.mxu0 %v1874
      %v2093 = vpop.f32.mrf.mxu0
      %v2094 = vadd.f32 0.0, %v2093
      %v2095 = vpop.f32.mrf.mxu0
      %2096 = vmatprep.mubr.f32.mxu0 %v1878
      %2097 = vmatmul.mubr.f32.gmra.mxu0 %v1877
      %v2098 = vpop.f32.mrf.mxu0
      %v2099 = vadd.f32 0.0, %v2098
      %v2100 = vpop.f32.mrf.mxu0
      %2101 = vmatprep.mubr.f32.mxu0 %v1881
      %2102 = vmatmul.mubr.f32.gmra.mxu0 %v1880
      %v2103 = vpop.f32.mrf.mxu0
      %v2104 = vadd.f32 0.0, %v2103
      %v2105 = vpop.f32.mrf.mxu0
      %2106 = vmatprep.mubr.f32.mxu0 %v1884
      %2107 = vmatmul.mubr.f32.gmra.mxu0 %v1883
      %v2108 = vpop.f32.mrf.mxu0
      %v2109 = vadd.f32 0.0, %v2108
      %v2110 = vpop.f32.mrf.mxu0
      %2111 = vmatprep.mubr.f32.mxu0 %v1887
      %2112 = vmatmul.mubr.f32.gmra.mxu0 %v1886
      %v2113 = vpop.f32.mrf.mxu0
      %v2114 = vadd.f32 0.0, %v2113
      %v2115 = vpop.f32.mrf.mxu0
      %2116 = vmatprep.mubr.f32.mxu0 %v1890
      %2117 = vmatmul.mubr.f32.gmra.mxu0 %v1889
      %v2118 = vpop.f32.mrf.mxu0
      %v2119 = vadd.f32 0.0, %v2118
      %v2120 = vpop.f32.mrf.mxu0
      %2121 = vmatprep.mubr.f32.mxu0 %v1893
      %2122 = vmatmul.mubr.f32.gmra.mxu0 %v1892
      %v2123 = vpop.f32.mrf.mxu0
      %v2124 = vadd.f32 0.0, %v2123
      %v2125 = vpop.f32.mrf.mxu0
      %2126 = vmatprep.mubr.f32.mxu0 %v1896
      %2127 = vmatmul.mubr.f32.gmra.mxu0 %v1895
      %v2128 = vpop.f32.mrf.mxu0
      %v2129 = vadd.f32 0.0, %v2128
      %v2130 = vpop.f32.mrf.mxu0
      %2131 = vmatprep.mubr.f32.mxu0 %v1899
      %2132 = vmatmul.mubr.f32.gmra.mxu0 %v1898
      %v2133 = vpop.f32.mrf.mxu0
      %v2134 = vadd.f32 0.0, %v2133
      %v2135 = vpop.f32.mrf.mxu0
      %2136 = vmatprep.mubr.f32.mxu0 %v1902
      %2137 = vmatmul.mubr.f32.gmra.mxu0 %v1901
      %v2138 = vpop.f32.mrf.mxu0
      %v2139 = vadd.f32 0.0, %v2138
      %v2140 = vpop.f32.mrf.mxu0
      %2141 = vmatprep.mubr.f32.mxu0 %v1905
      %2142 = vmatmul.mubr.f32.gmra.mxu0 %v1904
      %v2143 = vpop.f32.mrf.mxu0
      %v2144 = vadd.f32 0.0, %v2143
      %v2145 = vpop.f32.mrf.mxu0
      %2146 = vmatprep.mubr.f32.mxu0 %v1908
      %2147 = vmatmul.mubr.f32.gmra.mxu0 %v1907
      %v2148 = vpop.f32.mrf.mxu0
      %v2149 = vadd.f32 0.0, %v2148
      %v2150 = vpop.f32.mrf.mxu0
      %2151 = vmatprep.mubr.f32.mxu0 %v1911
      %2152 = vmatmul.mubr.f32.gmra.mxu0 %v1910
      %v2153 = vpop.f32.mrf.mxu0
      %v2154 = vadd.f32 0.0, %v2153
      %v2155 = vpop.f32.mrf.mxu0
      %2156 = vmatprep.mubr.f32.mxu0 %v1914
      %2157 = vmatmul.mubr.f32.gmra.mxu0 %v1913
      %v2158 = vpop.f32.mrf.mxu0
      %v2159 = vadd.f32 0.0, %v2158
      %v2160 = vpop.f32.mrf.mxu0
      %2161 = vmatprep.mubr.f32.mxu0 %v1917
      %2162 = vmatmul.mubr.f32.gmra.mxu0 %v1916
      %v2163 = vpop.f32.mrf.mxu0
      %v2164 = vadd.f32 0.0, %v2163
      %v2165 = vpop.f32.mrf.mxu0
      %2166 = vmatprep.mubr.f32.mxu0 %v1920
      %2167 = vmatmul.mubr.f32.gmra.mxu0 %v1919
      %v2168 = vpop.f32.mrf.mxu0
      %v2169 = vadd.f32 0.0, %v2168
      %v2170 = vpop.f32.mrf.mxu0
      %2171 = vmatprep.mubr.f32.mxu0 %v1923
      %2172 = vmatmul.mubr.f32.gmra.mxu0 %v1922
      %v2173 = vpop.f32.mrf.mxu0
      %v2174 = vadd.f32 0.0, %v2173
      %v2175 = vpop.f32.mrf.mxu0
      %2176 = vmatprep.mubr.f32.mxu0 %v1926
      %2177 = vmatmul.mubr.f32.gmra.mxu0 %v1925
      %v2178 = vpop.f32.mrf.mxu0
      %v2179 = vadd.f32 0.0, %v2178
      %v2180 = vpop.f32.mrf.mxu0
      %2181 = vmatprep.mubr.f32.mxu0 %v1929
      %2182 = vmatmul.mubr.f32.gmra.mxu0 %v1928
      %v2183 = vpop.f32.mrf.mxu0
      %v2184 = vadd.f32 0.0, %v2183
      %v2185 = vpop.f32.mrf.mxu0
      %2186 = vmatprep.mubr.f32.mxu0 %v1932
      %2187 = vmatmul.mubr.f32.gmra.mxu0 %v1931
      %v2188 = vpop.f32.mrf.mxu0
      %v2189 = vadd.f32 0.0, %v2188
      %v2190 = vpop.f32.mrf.mxu0
      %2191 = vmatprep.mubr.f32.mxu0 %v1935
      %2192 = vmatmul.mubr.f32.gmra.mxu0 %v1934
      %v2193 = vpop.f32.mrf.mxu0
      %v2194 = vadd.f32 0.0, %v2193
      %v2195 = vpop.f32.mrf.mxu0
      %2196 = vmatprep.mubr.f32.mxu0 %v1938
      %2197 = vmatmul.mubr.f32.gmra.mxu0 %v1937
      %v2198 = vpop.f32.mrf.mxu0
      %v2199 = vadd.f32 0.0, %v2198
      %v2200 = vpop.f32.mrf.mxu0
      %2201 = vmatprep.mubr.f32.mxu0 %v1941
      %2202 = vmatmul.mubr.f32.gmra.mxu0 %v1940
      %v2203 = vpop.f32.mrf.mxu0
      %v2204 = vadd.f32 0.0, %v2203
      %v2205 = vpop.f32.mrf.mxu0
      %2206 = vmatprep.mubr.f32.mxu0 %v1944
      %2207 = vmatmul.mubr.f32.gmra.mxu0 %v1943
      %v2208 = vpop.f32.mrf.mxu0
      %v2209 = vadd.f32 0.0, %v2208
      %v2210 = vpop.f32.mrf.mxu0
      %2211 = vmatprep.mubr.f32.mxu0 %v1947
      %2212 = vmatmul.mubr.f32.gmra.mxu0 %v1946
      %v2213 = vpop.f32.mrf.mxu0
      %v2214 = vadd.f32 0.0, %v2213
      %v2215 = vpop.f32.mrf.mxu0
      %2216 = vmatprep.mubr.f32.mxu0 %v1950
      %2217 = vmatmul.mubr.f32.gmra.mxu0 %v1949
      %v2218 = vpop.f32.mrf.mxu0
      %v2219 = vadd.f32 0.0, %v2218
      %v2220 = vpop.f32.mrf.mxu0
      %2221 = vmatprep.mubr.f32.mxu0 %v1953
      %2222 = vmatmul.mubr.f32.gmra.mxu0 %v1952
      %v2223 = vpop.f32.mrf.mxu0
      %v2224 = vadd.f32 0.0, %v2223
      %v2225 = vpop.f32.mrf.mxu0
      %2226 = vmatprep.mubr.f32.mxu0 %v1956
      %2227 = vmatmul.mubr.f32.gmra.mxu0 %v1955
      %v2228 = vpop.f32.mrf.mxu0
      %v2229 = vadd.f32 0.0, %v2228
      %v2230 = vpop.f32.mrf.mxu0
      %2231 = vdwg.mxu0
      %2232 = vmatprep.subr.mxu0 0.0
      %2233 = vmatpush1.msra.mxu0 %v2006
      %2234 = vmatprep.subr.mxu0 0.0
      %2235 = vmatpush1.msra.mxu0 %v2005
      %2236 = vmatprep.subr.mxu0 0.0
      %2237 = vmatpush1.msra.mxu0 %v2004
      %2238 = vmatprep.subr.mxu0 0.0
      %2239 = vmatpush1.msra.mxu0 %v2003
      %2240 = vmatprep.subr.mxu0 0.0
      %2241 = vmatpush1.msra.mxu0 %v2002
      %2242 = vmatprep.subr.mxu0 0.0
      %2243 = vmatpush1.msra.mxu0 %v2001
      %2244 = vmatprep.subr.mxu0 0.0
      %2245 = vmatpush1.msra.mxu0 %v2000
      %2246 = vmatprep.subr.mxu0 0.0
      %2247 = vmatpush1.msra.mxu0 %v1999
      %2248 = vmatprep.subr.mxu0 0.0
      %2249 = vmatpush1.msra.mxu0 %v1998
      %2250 = vmatprep.subr.mxu0 0.0
      %2251 = vmatpush1.msra.mxu0 %v1997
      %2252 = vmatprep.subr.mxu0 0.0
      %2253 = vmatpush1.msra.mxu0 %v1996
      %2254 = vmatprep.subr.mxu0 0.0
      %2255 = vmatpush1.msra.mxu0 %v1995
      %2256 = vmatprep.subr.mxu0 0.0
      %2257 = vmatpush1.msra.mxu0 %v1994
      %2258 = vmatprep.subr.mxu0 0.0
      %2259 = vmatpush1.msra.mxu0 %v1993
      %2260 = vmatprep.subr.mxu0 0.0
      %2261 = vmatpush1.msra.mxu0 %v1992
      %2262 = vmatprep.subr.mxu0 0.0
      %2263 = vmatpush1.msra.mxu0 %v1991
      %2264 = vmatprep.subr.mxu0 0.0
      %2265 = vmatpush2.msra.mxu0 0.0
      %2266 = vmatprep.subr.mxu0 0.0
      %2267 = vmatpush2.msra.mxu0 0.0
      %2268 = vmatprep.subr.mxu0 0.0
      %2269 = vmatpush2.msra.mxu0 0.0
      %2270 = vmatprep.subr.mxu0 0.0
      %2271 = vmatpush2.msra.mxu0 0.0
      %2272 = vmatprep.subr.mxu0 0.0
      %2273 = vmatpush2.msra.mxu0 0.0
      %2274 = vmatprep.subr.mxu0 0.0
      %2275 = vmatpush2.msra.mxu0 0.0
      %2276 = vmatprep.subr.mxu0 0.0
      %2277 = vmatpush2.msra.mxu0 0.0
      %2278 = vmatprep.subr.mxu0 0.0
      %2279 = vmatpush2.msra.mxu0 0.0
      %2280 = vmatprep.subr.mxu0 0.0
      %2281 = vmatpush2.msra.mxu0 0.0
      %2282 = vmatprep.subr.mxu0 0.0
      %2283 = vmatpush2.msra.mxu0 0.0
      %2284 = vmatprep.subr.mxu0 0.0
      %2285 = vmatpush2.msra.mxu0 0.0
      %2286 = vmatprep.subr.mxu0 0.0
      %2287 = vmatpush2.msra.mxu0 0.0
      %2288 = vmatprep.subr.mxu0 0.0
      %2289 = vmatpush2.msra.mxu0 0.0
      %2290 = vmatprep.subr.mxu0 0.0
      %2291 = vmatpush2.msra.mxu0 0.0
      %2292 = vmatprep.subr.mxu0 0.0
      %2293 = vmatpush2.msra.mxu0 0.0
      %2294 = vmatprep.subr.mxu0 0.0
      %2295 = vmatpush2.msra.mxu0 0.0
      %2296 = vmatprep.mubr.f32.mxu0 0.0
      %2297 = vmatmul.mubr.f32.gmra.mxu0 %v1864
      %v2298 = vpop.f32.mrf.mxu0
      %v2299 = vadd.f32 %v2074, %v2298
      %v2300 = vpop.f32.mrf.mxu0
      %2301 = vmatprep.mubr.f32.mxu0 0.0
      %2302 = vmatmul.mubr.f32.gmra.mxu0 %v1867
      %v2303 = vpop.f32.mrf.mxu0
      %v2304 = vadd.f32 %v2079, %v2303
      %v2305 = vpop.f32.mrf.mxu0
      %2306 = vmatprep.mubr.f32.mxu0 0.0
      %2307 = vmatmul.mubr.f32.gmra.mxu0 %v1870
      %v2308 = vpop.f32.mrf.mxu0
      %v2309 = vadd.f32 %v2084, %v2308
      %v2310 = vpop.f32.mrf.mxu0
      %2311 = vmatprep.mubr.f32.mxu0 0.0
      %2312 = vmatmul.mubr.f32.gmra.mxu0 %v1873
      %v2313 = vpop.f32.mrf.mxu0
      %v2314 = vadd.f32 %v2089, %v2313
      %v2315 = vpop.f32.mrf.mxu0
      %2316 = vmatprep.mubr.f32.mxu0 0.0
      %2317 = vmatmul.mubr.f32.gmra.mxu0 %v1876
      %v2318 = vpop.f32.mrf.mxu0
      %v2319 = vadd.f32 %v2094, %v2318
      %v2320 = vpop.f32.mrf.mxu0
      %2321 = vmatprep.mubr.f32.mxu0 0.0
      %2322 = vmatmul.mubr.f32.gmra.mxu0 %v1879
      %v2323 = vpop.f32.mrf.mxu0
      %v2324 = vadd.f32 %v2099, %v2323
      %v2325 = vpop.f32.mrf.mxu0
      %2326 = vmatprep.mubr.f32.mxu0 0.0
      %2327 = vmatmul.mubr.f32.gmra.mxu0 %v1882
      %v2328 = vpop.f32.mrf.mxu0
      %v2329 = vadd.f32 %v2104, %v2328
      %v2330 = vpop.f32.mrf.mxu0
      %2331 = vmatprep.mubr.f32.mxu0 0.0
      %2332 = vmatmul.mubr.f32.gmra.mxu0 %v1885
      %v2333 = vpop.f32.mrf.mxu0
      %v2334 = vadd.f32 %v2109, %v2333
      %v2335 = vpop.f32.mrf.mxu0
      %2336 = vmatprep.mubr.f32.mxu0 0.0
      %2337 = vmatmul.mubr.f32.gmra.mxu0 %v1888
      %v2338 = vpop.f32.mrf.mxu0
      %v2339 = vadd.f32 %v2114, %v2338
      %v2340 = vpop.f32.mrf.mxu0
      %2341 = vmatprep.mubr.f32.mxu0 0.0
      %2342 = vmatmul.mubr.f32.gmra.mxu0 %v1891
      %v2343 = vpop.f32.mrf.mxu0
      %v2344 = vadd.f32 %v2119, %v2343
      %v2345 = vpop.f32.mrf.mxu0
      %2346 = vmatprep.mubr.f32.mxu0 0.0
      %2347 = vmatmul.mubr.f32.gmra.mxu0 %v1894
      %v2348 = vpop.f32.mrf.mxu0
      %v2349 = vadd.f32 %v2124, %v2348
      %v2350 = vpop.f32.mrf.mxu0
      %2351 = vmatprep.mubr.f32.mxu0 0.0
      %2352 = vmatmul.mubr.f32.gmra.mxu0 %v1897
      %v2353 = vpop.f32.mrf.mxu0
      %v2354 = vadd.f32 %v2129, %v2353
      %v2355 = vpop.f32.mrf.mxu0
      %2356 = vmatprep.mubr.f32.mxu0 0.0
      %2357 = vmatmul.mubr.f32.gmra.mxu0 %v1900
      %v2358 = vpop.f32.mrf.mxu0
      %v2359 = vadd.f32 %v2134, %v2358
      %v2360 = vpop.f32.mrf.mxu0
      %2361 = vmatprep.mubr.f32.mxu0 0.0
      %2362 = vmatmul.mubr.f32.gmra.mxu0 %v1903
      %v2363 = vpop.f32.mrf.mxu0
      %v2364 = vadd.f32 %v2139, %v2363
      %v2365 = vpop.f32.mrf.mxu0
      %2366 = vmatprep.mubr.f32.mxu0 0.0
      %2367 = vmatmul.mubr.f32.gmra.mxu0 %v1906
      %v2368 = vpop.f32.mrf.mxu0
      %v2369 = vadd.f32 %v2144, %v2368
      %v2370 = vpop.f32.mrf.mxu0
      %2371 = vmatprep.mubr.f32.mxu0 0.0
      %2372 = vmatmul.mubr.f32.gmra.mxu0 %v1909
      %v2373 = vpop.f32.mrf.mxu0
      %v2374 = vadd.f32 %v2149, %v2373
      %v2375 = vpop.f32.mrf.mxu0
      %2376 = vmatprep.mubr.f32.mxu0 0.0
      %2377 = vmatmul.mubr.f32.gmra.mxu0 %v1912
      %v2378 = vpop.f32.mrf.mxu0
      %v2379 = vadd.f32 %v2154, %v2378
      %v2380 = vpop.f32.mrf.mxu0
      %2381 = vmatprep.mubr.f32.mxu0 0.0
      %2382 = vmatmul.mubr.f32.gmra.mxu0 %v1915
      %v2383 = vpop.f32.mrf.mxu0
      %v2384 = vadd.f32 %v2159, %v2383
      %v2385 = vpop.f32.mrf.mxu0
      %2386 = vmatprep.mubr.f32.mxu0 0.0
      %2387 = vmatmul.mubr.f32.gmra.mxu0 %v1918
      %v2388 = vpop.f32.mrf.mxu0
      %v2389 = vadd.f32 %v2164, %v2388
      %v2390 = vpop.f32.mrf.mxu0
      %2391 = vmatprep.mubr.f32.mxu0 0.0
      %2392 = vmatmul.mubr.f32.gmra.mxu0 %v1921
      %v2393 = vpop.f32.mrf.mxu0
      %v2394 = vadd.f32 %v2169, %v2393
      %v2395 = vpop.f32.mrf.mxu0
      %2396 = vmatprep.mubr.f32.mxu0 0.0
      %2397 = vmatmul.mubr.f32.gmra.mxu0 %v1924
      %v2398 = vpop.f32.mrf.mxu0
      %v2399 = vadd.f32 %v2174, %v2398
      %v2400 = vpop.f32.mrf.mxu0
      %2401 = vmatprep.mubr.f32.mxu0 0.0
      %2402 = vmatmul.mubr.f32.gmra.mxu0 %v1927
      %v2403 = vpop.f32.mrf.mxu0
      %v2404 = vadd.f32 %v2179, %v2403
      %v2405 = vpop.f32.mrf.mxu0
      %2406 = vmatprep.mubr.f32.mxu0 0.0
      %2407 = vmatmul.mubr.f32.gmra.mxu0 %v1930
      %v2408 = vpop.f32.mrf.mxu0
      %v2409 = vadd.f32 %v2184, %v2408
      %v2410 = vpop.f32.mrf.mxu0
      %2411 = vmatprep.mubr.f32.mxu0 0.0
      %2412 = vmatmul.mubr.f32.gmra.mxu0 %v1933
      %v2413 = vpop.f32.mrf.mxu0
      %v2414 = vadd.f32 %v2189, %v2413
      %v2415 = vpop.f32.mrf.mxu0
      %2416 = vmatprep.mubr.f32.mxu0 0.0
      %2417 = vmatmul.mubr.f32.gmra.mxu0 %v1936
      %v2418 = vpop.f32.mrf.mxu0
      %v2419 = vadd.f32 %v2194, %v2418
      %v2420 = vpop.f32.mrf.mxu0
      %2421 = vmatprep.mubr.f32.mxu0 0.0
      %2422 = vmatmul.mubr.f32.gmra.mxu0 %v1939
      %v2423 = vpop.f32.mrf.mxu0
      %v2424 = vadd.f32 %v2199, %v2423
      %v2425 = vpop.f32.mrf.mxu0
      %2426 = vmatprep.mubr.f32.mxu0 0.0
      %2427 = vmatmul.mubr.f32.gmra.mxu0 %v1942
      %v2428 = vpop.f32.mrf.mxu0
      %v2429 = vadd.f32 %v2204, %v2428
      %v2430 = vpop.f32.mrf.mxu0
      %2431 = vmatprep.mubr.f32.mxu0 0.0
      %2432 = vmatmul.mubr.f32.gmra.mxu0 %v1945
      %v2433 = vpop.f32.mrf.mxu0
      %v2434 = vadd.f32 %v2209, %v2433
      %v2435 = vpop.f32.mrf.mxu0
      %2436 = vmatprep.mubr.f32.mxu0 0.0
      %2437 = vmatmul.mubr.f32.gmra.mxu0 %v1948
      %v2438 = vpop.f32.mrf.mxu0
      %v2439 = vadd.f32 %v2214, %v2438
      %v2440 = vpop.f32.mrf.mxu0
      %2441 = vmatprep.mubr.f32.mxu0 0.0
      %2442 = vmatmul.mubr.f32.gmra.mxu0 %v1951
      %v2443 = vpop.f32.mrf.mxu0
      %v2444 = vadd.f32 %v2219, %v2443
      %v2445 = vpop.f32.mrf.mxu0
      %2446 = vmatprep.mubr.f32.mxu0 0.0
      %2447 = vmatmul.mubr.f32.gmra.mxu0 %v1954
      %v2448 = vpop.f32.mrf.mxu0
      %v2449 = vadd.f32 %v2224, %v2448
      %v2450 = vpop.f32.mrf.mxu0
      %2451 = vmatprep.mubr.f32.mxu0 0.0
      %2452 = vmatmul.mubr.f32.gmra.mxu0 %v1957
      %v2453 = vpop.f32.mrf.mxu0
      %v2454 = vadd.f32 %v2229, %v2453
      %v2455 = vpop.f32.mrf.mxu0
      %2456 = vdwg.mxu0
      %v2457 = vld [vmem:[#allocation3] sm:$0xff]
      %v2458 = vld [vmem:[#allocation3 + $0x8] sm:$0xff]
      %v2459 = vld [vmem:[#allocation3 + $0x10] sm:$0xff]
      %v2460 = vld [vmem:[#allocation3 + $0x18] sm:$0xff]
      %v2461 = vld [vmem:[#allocation3 + $0x20] sm:$0xff]
      %v2462 = vld [vmem:[#allocation3 + $0x28] sm:$0xff]
      %v2463 = vld [vmem:[#allocation3 + $0x30] sm:$0xff]
      %v2464 = vld [vmem:[#allocation3 + $0x38] sm:$0xff]
      %v2465 = vld [vmem:[#allocation3 + $0x40] sm:$0xff]
      %v2466 = vld [vmem:[#allocation3 + $0x48] sm:$0xff]
      %v2467 = vld [vmem:[#allocation3 + $0x50] sm:$0xff]
      %v2468 = vld [vmem:[#allocation3 + $0x58] sm:$0xff]
      %v2469 = vld [vmem:[#allocation3 + $0x60] sm:$0xff]
      %v2470 = vld [vmem:[#allocation3 + $0x68] sm:$0xff]
      %v2471 = vld [vmem:[#allocation3 + $0x70] sm:$0xff]
      %v2472 = vld [vmem:[#allocation3 + $0x78] sm:$0xff]
      %v2473 = vld [vmem:[#allocation3 + $0x80] sm:$0xff]
      %v2474 = vld [vmem:[#allocation3 + $0x88] sm:$0xff]
      %v2475 = vld [vmem:[#allocation3 + $0x90] sm:$0xff]
      %v2476 = vld [vmem:[#allocation3 + $0x98] sm:$0xff]
      %v2477 = vld [vmem:[#allocation3 + $0xa0] sm:$0xff]
      %v2478 = vld [vmem:[#allocation3 + $0xa8] sm:$0xff]
      %v2479 = vld [vmem:[#allocation3 + $0xb0] sm:$0xff]
      %v2480 = vld [vmem:[#allocation3 + $0xb8] sm:$0xff]
      %v2481 = vld [vmem:[#allocation3 + $0xc0] sm:$0xff]
      %v2482 = vld [vmem:[#allocation3 + $0xc8] sm:$0xff]
      %v2483 = vld [vmem:[#allocation3 + $0xd0] sm:$0xff]
      %v2484 = vld [vmem:[#allocation3 + $0xd8] sm:$0xff]
      %v2485 = vld [vmem:[#allocation3 + $0xe0] sm:$0xff]
      %v2486 = vld [vmem:[#allocation3 + $0xe8] sm:$0xff]
      %v2487 = vld [vmem:[#allocation3 + $0xf0] sm:$0xff]
      %v2488 = vld [vmem:[#allocation3 + $0xf8] sm:$0xff]
      %v2489 = vadd.f32 %v2457, %v2299
      %v2490 = vadd.f32 %v2458, %v2304
      %v2491 = vadd.f32 %v2459, %v2309
      %v2492 = vadd.f32 %v2460, %v2314
      %v2493 = vadd.f32 %v2461, %v2319
      %v2494 = vadd.f32 %v2462, %v2324
      %v2495 = vadd.f32 %v2463, %v2329
      %v2496 = vadd.f32 %v2464, %v2334
      %v2497 = vadd.f32 %v2465, %v2339
      %v2498 = vadd.f32 %v2466, %v2344
      %v2499 = vadd.f32 %v2467, %v2349
      %v2500 = vadd.f32 %v2468, %v2354
      %v2501 = vadd.f32 %v2469, %v2359
      %v2502 = vadd.f32 %v2470, %v2364
      %v2503 = vadd.f32 %v2471, %v2369
      %v2504 = vadd.f32 %v2472, %v2374
      %v2505 = vadd.f32 %v2473, %v2379
      %v2506 = vadd.f32 %v2474, %v2384
      %v2507 = vadd.f32 %v2475, %v2389
      %v2508 = vadd.f32 %v2476, %v2394
      %v2509 = vadd.f32 %v2477, %v2399
      %v2510 = vadd.f32 %v2478, %v2404
      %v2511 = vadd.f32 %v2479, %v2409
      %v2512 = vadd.f32 %v2480, %v2414
      %v2513 = vadd.f32 %v2481, %v2419
      %v2514 = vadd.f32 %v2482, %v2424
      %v2515 = vadd.f32 %v2483, %v2429
      %v2516 = vadd.f32 %v2484, %v2434
      %v2517 = vadd.f32 %v2485, %v2439
      %v2518 = vadd.f32 %v2486, %v2444
      %v2519 = vadd.f32 %v2487, %v2449
      %v2520 = vadd.f32 %v2488, %v2454
      %2521 = vst [vmem:[#allocation3] sm:$0xff] %v2489
      %2522 = vst [vmem:[#allocation3 + $0x8] sm:$0xff] %v2490
      %2523 = vst [vmem:[#allocation3 + $0x10] sm:$0xff] %v2491
      %2524 = vst [vmem:[#allocation3 + $0x18] sm:$0xff] %v2492
      %2525 = vst [vmem:[#allocation3 + $0x20] sm:$0xff] %v2493
      %2526 = vst [vmem:[#allocation3 + $0x28] sm:$0xff] %v2494
      %2527 = vst [vmem:[#allocation3 + $0x30] sm:$0xff] %v2495
      %2528 = vst [vmem:[#allocation3 + $0x38] sm:$0xff] %v2496
      %2529 = vst [vmem:[#allocation3 + $0x40] sm:$0xff] %v2497
      %2530 = vst [vmem:[#allocation3 + $0x48] sm:$0xff] %v2498
      %2531 = vst [vmem:[#allocation3 + $0x50] sm:$0xff] %v2499
      %2532 = vst [vmem:[#allocation3 + $0x58] sm:$0xff] %v2500
      %2533 = vst [vmem:[#allocation3 + $0x60] sm:$0xff] %v2501
      %2534 = vst [vmem:[#allocation3 + $0x68] sm:$0xff] %v2502
      %2535 = vst [vmem:[#allocation3 + $0x70] sm:$0xff] %v2503
      %2536 = vst [vmem:[#allocation3 + $0x78] sm:$0xff] %v2504
      %2537 = vst [vmem:[#allocation3 + $0x80] sm:$0xff] %v2505
      %2538 = vst [vmem:[#allocation3 + $0x88] sm:$0xff] %v2506
      %2539 = vst [vmem:[#allocation3 + $0x90] sm:$0xff] %v2507
      %2540 = vst [vmem:[#allocation3 + $0x98] sm:$0xff] %v2508
      %2541 = vst [vmem:[#allocation3 + $0xa0] sm:$0xff] %v2509
      %2542 = vst [vmem:[#allocation3 + $0xa8] sm:$0xff] %v2510
      %2543 = vst [vmem:[#allocation3 + $0xb0] sm:$0xff] %v2511
      %2544 = vst [vmem:[#allocation3 + $0xb8] sm:$0xff] %v2512
      %2545 = vst [vmem:[#allocation3 + $0xc0] sm:$0xff] %v2513
      %2546 = vst [vmem:[#allocation3 + $0xc8] sm:$0xff] %v2514
      %2547 = vst [vmem:[#allocation3 + $0xd0] sm:$0xff] %v2515
      %2548 = vst [vmem:[#allocation3 + $0xd8] sm:$0xff] %v2516
      %2549 = vst [vmem:[#allocation3 + $0xe0] sm:$0xff] %v2517
      %2550 = vst [vmem:[#allocation3 + $0xe8] sm:$0xff] %v2518
      %2551 = vst [vmem:[#allocation3 + $0xf0] sm:$0xff] %v2519
      %2552 = vst [vmem:[#allocation3 + $0xf8] sm:$0xff] %v2520
      %v2553 = vld [vmem:[#allocation2 + $0x60] sm:$0xff]
      %v2554 = vld [vmem:[#allocation2 + $0x68] sm:$0xff]
      %v2555 = vld [vmem:[#allocation2 + $0x70] sm:$0xff]
      %v2556 = vld [vmem:[#allocation2 + $0x78] sm:$0xff]
      %v2557 = vld [vmem:[#allocation2 + $0x80] sm:$0xff]
      %v2558 = vld [vmem:[#allocation2 + $0x88] sm:$0xff]
      %v2559 = vld [vmem:[#allocation2 + $0x90] sm:$0xff]
      %v2560 = vld [vmem:[#allocation2 + $0x98] sm:$0xff]
      %v2561 = vld [vmem:[#allocation2 + $0xa0] sm:$0xff]
      %v2562 = vld [vmem:[#allocation2 + $0xa8] sm:$0xff]
      %v2563 = vld [vmem:[#allocation2 + $0xb0] sm:$0xff]
      %v2564 = vld [vmem:[#allocation2 + $0xb8] sm:$0xff]
      %v2565 = vld [vmem:[#allocation2 + $0xc0] sm:$0xff]
      %v2566 = vld [vmem:[#allocation2 + $0xc8] sm:$0xff]
      %v2567 = vld [vmem:[#allocation2 + $0xd0] sm:$0xff]
      %v2568 = vld [vmem:[#allocation2 + $0xd8] sm:$0xff]
      %v2569 = vld [vmem:[#allocation2 + $0xe0] sm:$0xff]
      %v2570 = vld [vmem:[#allocation2 + $0xe8] sm:$0xff]
      %v2571 = vld [vmem:[#allocation2 + $0xf0] sm:$0xff]
      %v2572 = vld [vmem:[#allocation2 + $0xf8] sm:$0xff]
      %v2573 = vld [vmem:[#allocation2 + $0x100] sm:$0xff]
      %v2574 = vld [vmem:[#allocation2 + $0x108] sm:$0xff]
      %v2575 = vld [vmem:[#allocation2 + $0x110] sm:$0xff]
      %v2576 = vld [vmem:[#allocation2 + $0x118] sm:$0xff]
      %v2577 = vld [vmem:[#allocation2 + $0x120] sm:$0xff]
      %v2578 = vld [vmem:[#allocation2 + $0x128] sm:$0xff]
      %v2579 = vld [vmem:[#allocation2 + $0x130] sm:$0xff]
      %v2580 = vld [vmem:[#allocation2 + $0x138] sm:$0xff]
      %v2581 = vld [vmem:[#allocation2 + $0x140] sm:$0xff]
      %v2582 = vld [vmem:[#allocation2 + $0x148] sm:$0xff]
      %v2583 = vld [vmem:[#allocation2 + $0x150] sm:$0xff]
      %v2584 = vld [vmem:[#allocation2 + $0x158] sm:$0xff]
      %v2585 = vld [vmem:[#allocation2 + $0x160] sm:$0xff]
      %v2586 = vld [vmem:[#allocation2 + $0x168] sm:$0xff]
      %v2587 = vld [vmem:[#allocation2 + $0x170] sm:$0xff]
      %v2588 = vld [vmem:[#allocation2 + $0x178] sm:$0xff]
      %v2589 = vld [vmem:[#allocation2 + $0x180] sm:$0xff]
      %v2590 = vld [vmem:[#allocation2 + $0x188] sm:$0xff]
      %v2591 = vld [vmem:[#allocation2 + $0x190] sm:$0xff]
      %v2592 = vld [vmem:[#allocation2 + $0x198] sm:$0xff]
      %v2593 = vld [vmem:[#allocation2 + $0x1a0] sm:$0xff]
      %v2594 = vld [vmem:[#allocation2 + $0x1a8] sm:$0xff]
      %v2595 = vld [vmem:[#allocation2 + $0x1b0] sm:$0xff]
      %v2596 = vld [vmem:[#allocation2 + $0x1b8] sm:$0xff]
      %v2597 = vld [vmem:[#allocation2 + $0x1c0] sm:$0xff]
      %v2598 = vld [vmem:[#allocation2 + $0x1c8] sm:$0xff]
      %v2599 = vld [vmem:[#allocation2 + $0x1d0] sm:$0xff]
      %v2600 = vld [vmem:[#allocation2 + $0x1d8] sm:$0xff]
      %v2601 = vld [vmem:[#allocation2 + $0x1e0] sm:$0xff]
      %v2602 = vld [vmem:[#allocation2 + $0x1e8] sm:$0xff]
      %v2603 = vld [vmem:[#allocation2 + $0x1f0] sm:$0xff]
      %v2604 = vld [vmem:[#allocation2 + $0x1f8] sm:$0xff]
      %v2605 = vld [vmem:[#allocation2 + $0x200] sm:$0xff]
      %v2606 = vld [vmem:[#allocation2 + $0x208] sm:$0xff]
      %v2607 = vld [vmem:[#allocation2 + $0x210] sm:$0xff]
      %v2608 = vld [vmem:[#allocation2 + $0x218] sm:$0xff]
      %v2609 = vld [vmem:[#allocation2 + $0x220] sm:$0xff]
      %v2610 = vld [vmem:[#allocation2 + $0x228] sm:$0xff]
      %v2611 = vld [vmem:[#allocation2 + $0x230] sm:$0xff]
      %v2612 = vld [vmem:[#allocation2 + $0x238] sm:$0xff]
      %v2613 = vld [vmem:[#allocation2 + $0x240] sm:$0xff]
      %v2614 = vld [vmem:[#allocation2 + $0x248] sm:$0xff]
      %v2615 = vld [vmem:[#allocation2 + $0x250] sm:$0xff]
      %v2616 = vld [vmem:[#allocation2 + $0x258] sm:$0xff]
      %v2617 = vld [vmem:[#allocation2 + $0x260] sm:$0xff]
      %v2618 = vld [vmem:[#allocation2 + $0x268] sm:$0xff]
      %v2619 = vld [vmem:[#allocation2 + $0x270] sm:$0xff]
      %v2620 = vld [vmem:[#allocation2 + $0x278] sm:$0xff]
      %v2621 = vld [vmem:[#allocation2 + $0x280] sm:$0xff]
      %v2622 = vld [vmem:[#allocation2 + $0x288] sm:$0xff]
      %v2623 = vld [vmem:[#allocation2 + $0x290] sm:$0xff]
      %v2624 = vld [vmem:[#allocation2 + $0x298] sm:$0xff]
      %v2625 = vld [vmem:[#allocation2 + $0x2a0] sm:$0xff]
      %v2626 = vld [vmem:[#allocation2 + $0x2a8] sm:$0xff]
      %v2627 = vld [vmem:[#allocation2 + $0x2b0] sm:$0xff]
      %v2628 = vld [vmem:[#allocation2 + $0x2b8] sm:$0xff]
      %v2629 = vld [vmem:[#allocation2 + $0x2c0] sm:$0xff]
      %v2630 = vld [vmem:[#allocation2 + $0x2c8] sm:$0xff]
      %v2631 = vld [vmem:[#allocation2 + $0x2d0] sm:$0xff]
      %v2632 = vld [vmem:[#allocation2 + $0x2d8] sm:$0xff]
      %v2633 = vld [vmem:[#allocation2 + $0x2e0] sm:$0xff]
      %v2634 = vld [vmem:[#allocation2 + $0x2e8] sm:$0xff]
      %v2635 = vld [vmem:[#allocation2 + $0x2f0] sm:$0xff]
      %v2636 = vld [vmem:[#allocation2 + $0x2f8] sm:$0xff]
      %v2637 = vld [vmem:[#allocation2 + $0x300] sm:$0xff]
      %v2638 = vld [vmem:[#allocation2 + $0x308] sm:$0xff]
      %v2639 = vld [vmem:[#allocation2 + $0x310] sm:$0xff]
      %v2640 = vld [vmem:[#allocation2 + $0x318] sm:$0xff]
      %v2641 = vld [vmem:[#allocation2 + $0x320] sm:$0xff]
      %v2642 = vld [vmem:[#allocation2 + $0x328] sm:$0xff]
      %v2643 = vld [vmem:[#allocation2 + $0x330] sm:$0xff]
      %v2644 = vld [vmem:[#allocation2 + $0x338] sm:$0xff]
      %v2645 = vld [vmem:[#allocation2 + $0x340] sm:$0xff]
      %v2646 = vld [vmem:[#allocation2 + $0x348] sm:$0xff]
      %v2647 = vld [vmem:[#allocation2 + $0x350] sm:$0xff]
      %v2648 = vld [vmem:[#allocation2 + $0x358] sm:$0xff]
      %s2649 = scalar_lea.vmem %s1, 768
      %v2650 = vld [vmem:[%s2649] sm:$0xff]
      %v2651 = vld [vmem:[%s2649 + $0x8] sm:$0xff]
      %v2652 = vld [vmem:[%s2649 + $0x10] sm:$0xff]
      %v2653 = vld [vmem:[%s2649 + $0x18] sm:$0xff]
      %v2654 = vld [vmem:[%s2649 + $0x20] sm:$0xff]
      %v2655 = vld [vmem:[%s2649 + $0x28] sm:$0xff]
      %v2656 = vld [vmem:[%s2649 + $0x30] sm:$0xff]
      %v2657 = vld [vmem:[%s2649 + $0x38] sm:$0xff]
      %v2658 = vld [vmem:[%s2649 + $0x40] sm:$0xff]
      %v2659 = vld [vmem:[%s2649 + $0x48] sm:$0xff]
      %v2660 = vld [vmem:[%s2649 + $0x50] sm:$0xff]
      %v2661 = vld [vmem:[%s2649 + $0x58] sm:$0xff]
      %v2662 = vld [vmem:[%s2649 + $0x60] sm:$0xff]
      %v2663 = vld [vmem:[%s2649 + $0x68] sm:$0xff]
      %v2664 = vld [vmem:[%s2649 + $0x70] sm:$0xff]
      %v2665 = vld [vmem:[%s2649 + $0x78] sm:$0xff]
      %v2666 = vld [vmem:[%s2649 + $0x80] sm:$0xff]
      %v2667 = vld [vmem:[%s2649 + $0x88] sm:$0xff]
      %v2668 = vld [vmem:[%s2649 + $0x90] sm:$0xff]
      %v2669 = vld [vmem:[%s2649 + $0x98] sm:$0xff]
      %v2670 = vld [vmem:[%s2649 + $0xa0] sm:$0xff]
      %v2671 = vld [vmem:[%s2649 + $0xa8] sm:$0xff]
      %v2672 = vld [vmem:[%s2649 + $0xb0] sm:$0xff]
      %v2673 = vld [vmem:[%s2649 + $0xb8] sm:$0xff]
      %v2674 = vld [vmem:[%s2649 + $0xc0] sm:$0xff]
      %v2675 = vld [vmem:[%s2649 + $0xc8] sm:$0xff]
      %v2676 = vld [vmem:[%s2649 + $0xd0] sm:$0xff]
      %v2677 = vld [vmem:[%s2649 + $0xd8] sm:$0xff]
      %v2678 = vld [vmem:[%s2649 + $0xe0] sm:$0xff]
      %v2679 = vld [vmem:[%s2649 + $0xe8] sm:$0xff]
      %v2680 = vld [vmem:[%s2649 + $0xf0] sm:$0xff]
      %v2681 = vld [vmem:[%s2649 + $0xf8] sm:$0xff]
      %v2682 = vld [vmem:[%s2649 + $0x100] sm:$0xff]
      %v2683 = vld [vmem:[%s2649 + $0x108] sm:$0xff]
      %v2684 = vld [vmem:[%s2649 + $0x110] sm:$0xff]
      %v2685 = vld [vmem:[%s2649 + $0x118] sm:$0xff]
      %v2686 = vld [vmem:[%s2649 + $0x120] sm:$0xff]
      %v2687 = vld [vmem:[%s2649 + $0x128] sm:$0xff]
      %v2688 = vld [vmem:[%s2649 + $0x130] sm:$0xff]
      %v2689 = vld [vmem:[%s2649 + $0x138] sm:$0xff]
      %v2690 = vld [vmem:[%s2649 + $0x140] sm:$0xff]
      %v2691 = vld [vmem:[%s2649 + $0x148] sm:$0xff]
      %v2692 = vld [vmem:[%s2649 + $0x150] sm:$0xff]
      %v2693 = vld [vmem:[%s2649 + $0x158] sm:$0xff]
      %v2694 = vld [vmem:[%s2649 + $0x160] sm:$0xff]
      %v2695 = vld [vmem:[%s2649 + $0x168] sm:$0xff]
      %v2696 = vld [vmem:[%s2649 + $0x170] sm:$0xff]
      %v2697 = vld [vmem:[%s2649 + $0x178] sm:$0xff]
      %2698 = vmatprep.subr.mxu0 0.0
      %2699 = vmatpush1.msra.mxu0 %v2665
      %2700 = vmatprep.subr.mxu0 0.0
      %2701 = vmatpush1.msra.mxu0 %v2664
      %2702 = vmatprep.subr.mxu0 0.0
      %2703 = vmatpush1.msra.mxu0 %v2663
      %2704 = vmatprep.subr.mxu0 0.0
      %2705 = vmatpush1.msra.mxu0 %v2662
      %2706 = vmatprep.subr.mxu0 0.0
      %2707 = vmatpush1.msra.mxu0 %v2661
      %2708 = vmatprep.subr.mxu0 0.0
      %2709 = vmatpush1.msra.mxu0 %v2660
      %2710 = vmatprep.subr.mxu0 0.0
      %2711 = vmatpush1.msra.mxu0 %v2659
      %2712 = vmatprep.subr.mxu0 0.0
      %2713 = vmatpush1.msra.mxu0 %v2658
      %2714 = vmatprep.subr.mxu0 0.0
      %2715 = vmatpush1.msra.mxu0 %v2657
      %2716 = vmatprep.subr.mxu0 0.0
      %2717 = vmatpush1.msra.mxu0 %v2656
      %2718 = vmatprep.subr.mxu0 0.0
      %2719 = vmatpush1.msra.mxu0 %v2655
      %2720 = vmatprep.subr.mxu0 0.0
      %2721 = vmatpush1.msra.mxu0 %v2654
      %2722 = vmatprep.subr.mxu0 0.0
      %2723 = vmatpush1.msra.mxu0 %v2653
      %2724 = vmatprep.subr.mxu0 0.0
      %2725 = vmatpush1.msra.mxu0 %v2652
      %2726 = vmatprep.subr.mxu0 0.0
      %2727 = vmatpush1.msra.mxu0 %v2651
      %2728 = vmatprep.subr.mxu0 0.0
      %2729 = vmatpush1.msra.mxu0 %v2650
      %2730 = vmatprep.subr.mxu0 0.0
      %2731 = vmatpush2.msra.mxu0 %v2681
      %2732 = vmatprep.subr.mxu0 0.0
      %2733 = vmatpush2.msra.mxu0 %v2680
      %2734 = vmatprep.subr.mxu0 0.0
      %2735 = vmatpush2.msra.mxu0 %v2679
      %2736 = vmatprep.subr.mxu0 0.0
      %2737 = vmatpush2.msra.mxu0 %v2678
      %2738 = vmatprep.subr.mxu0 0.0
      %2739 = vmatpush2.msra.mxu0 %v2677
      %2740 = vmatprep.subr.mxu0 0.0
      %2741 = vmatpush2.msra.mxu0 %v2676
      %2742 = vmatprep.subr.mxu0 0.0
      %2743 = vmatpush2.msra.mxu0 %v2675
      %2744 = vmatprep.subr.mxu0 0.0
      %2745 = vmatpush2.msra.mxu0 %v2674
      %2746 = vmatprep.subr.mxu0 0.0
      %2747 = vmatpush2.msra.mxu0 %v2673
      %2748 = vmatprep.subr.mxu0 0.0
      %2749 = vmatpush2.msra.mxu0 %v2672
      %2750 = vmatprep.subr.mxu0 0.0
      %2751 = vmatpush2.msra.mxu0 %v2671
      %2752 = vmatprep.subr.mxu0 0.0
      %2753 = vmatpush2.msra.mxu0 %v2670
      %2754 = vmatprep.subr.mxu0 0.0
      %2755 = vmatpush2.msra.mxu0 %v2669
      %2756 = vmatprep.subr.mxu0 0.0
      %2757 = vmatpush2.msra.mxu0 %v2668
      %2758 = vmatprep.subr.mxu0 0.0
      %2759 = vmatpush2.msra.mxu0 %v2667
      %2760 = vmatprep.subr.mxu0 0.0
      %2761 = vmatpush2.msra.mxu0 %v2666
      %2762 = vmatprep.mubr.f32.mxu0 %v2554
      %2763 = vmatmul.mubr.f32.gmra.mxu0 %v2553
      %v2764 = vpop.f32.mrf.mxu0
      %v2765 = vadd.f32 0.0, %v2764
      %v2766 = vpop.f32.mrf.mxu0
      %2767 = vmatprep.mubr.f32.mxu0 %v2557
      %2768 = vmatmul.mubr.f32.gmra.mxu0 %v2556
      %v2769 = vpop.f32.mrf.mxu0
      %v2770 = vadd.f32 0.0, %v2769
      %v2771 = vpop.f32.mrf.mxu0
      %2772 = vmatprep.mubr.f32.mxu0 %v2560
      %2773 = vmatmul.mubr.f32.gmra.mxu0 %v2559
      %v2774 = vpop.f32.mrf.mxu0
      %v2775 = vadd.f32 0.0, %v2774
      %v2776 = vpop.f32.mrf.mxu0
      %2777 = vmatprep.mubr.f32.mxu0 %v2563
      %2778 = vmatmul.mubr.f32.gmra.mxu0 %v2562
      %v2779 = vpop.f32.mrf.mxu0
      %v2780 = vadd.f32 0.0, %v2779
      %v2781 = vpop.f32.mrf.mxu0
      %2782 = vmatprep.mubr.f32.mxu0 %v2566
      %2783 = vmatmul.mubr.f32.gmra.mxu0 %v2565
      %v2784 = vpop.f32.mrf.mxu0
      %v2785 = vadd.f32 0.0, %v2784
      %v2786 = vpop.f32.mrf.mxu0
      %2787 = vmatprep.mubr.f32.mxu0 %v2569
      %2788 = vmatmul.mubr.f32.gmra.mxu0 %v2568
      %v2789 = vpop.f32.mrf.mxu0
      %v2790 = vadd.f32 0.0, %v2789
      %v2791 = vpop.f32.mrf.mxu0
      %2792 = vmatprep.mubr.f32.mxu0 %v2572
      %2793 = vmatmul.mubr.f32.gmra.mxu0 %v2571
      %v2794 = vpop.f32.mrf.mxu0
      %v2795 = vadd.f32 0.0, %v2794
      %v2796 = vpop.f32.mrf.mxu0
      %2797 = vmatprep.mubr.f32.mxu0 %v2575
      %2798 = vmatmul.mubr.f32.gmra.mxu0 %v2574
      %v2799 = vpop.f32.mrf.mxu0
      %v2800 = vadd.f32 0.0, %v2799
      %v2801 = vpop.f32.mrf.mxu0
      %2802 = vmatprep.mubr.f32.mxu0 %v2578
      %2803 = vmatmul.mubr.f32.gmra.mxu0 %v2577
      %v2804 = vpop.f32.mrf.mxu0
      %v2805 = vadd.f32 0.0, %v2804
      %v2806 = vpop.f32.mrf.mxu0
      %2807 = vmatprep.mubr.f32.mxu0 %v2581
      %2808 = vmatmul.mubr.f32.gmra.mxu0 %v2580
      %v2809 = vpop.f32.mrf.mxu0
      %v2810 = vadd.f32 0.0, %v2809
      %v2811 = vpop.f32.mrf.mxu0
      %2812 = vmatprep.mubr.f32.mxu0 %v2584
      %2813 = vmatmul.mubr.f32.gmra.mxu0 %v2583
      %v2814 = vpop.f32.mrf.mxu0
      %v2815 = vadd.f32 0.0, %v2814
      %v2816 = vpop.f32.mrf.mxu0
      %2817 = vmatprep.mubr.f32.mxu0 %v2587
      %2818 = vmatmul.mubr.f32.gmra.mxu0 %v2586
      %v2819 = vpop.f32.mrf.mxu0
      %v2820 = vadd.f32 0.0, %v2819
      %v2821 = vpop.f32.mrf.mxu0
      %2822 = vmatprep.mubr.f32.mxu0 %v2590
      %2823 = vmatmul.mubr.f32.gmra.mxu0 %v2589
      %v2824 = vpop.f32.mrf.mxu0
      %v2825 = vadd.f32 0.0, %v2824
      %v2826 = vpop.f32.mrf.mxu0
      %2827 = vmatprep.mubr.f32.mxu0 %v2593
      %2828 = vmatmul.mubr.f32.gmra.mxu0 %v2592
      %v2829 = vpop.f32.mrf.mxu0
      %v2830 = vadd.f32 0.0, %v2829
      %v2831 = vpop.f32.mrf.mxu0
      %2832 = vmatprep.mubr.f32.mxu0 %v2596
      %2833 = vmatmul.mubr.f32.gmra.mxu0 %v2595
      %v2834 = vpop.f32.mrf.mxu0
      %v2835 = vadd.f32 0.0, %v2834
      %v2836 = vpop.f32.mrf.mxu0
      %2837 = vmatprep.mubr.f32.mxu0 %v2599
      %2838 = vmatmul.mubr.f32.gmra.mxu0 %v2598
      %v2839 = vpop.f32.mrf.mxu0
      %v2840 = vadd.f32 0.0, %v2839
      %v2841 = vpop.f32.mrf.mxu0
      %2842 = vmatprep.mubr.f32.mxu0 %v2602
      %2843 = vmatmul.mubr.f32.gmra.mxu0 %v2601
      %v2844 = vpop.f32.mrf.mxu0
      %v2845 = vadd.f32 0.0, %v2844
      %v2846 = vpop.f32.mrf.mxu0
      %2847 = vmatprep.mubr.f32.mxu0 %v2605
      %2848 = vmatmul.mubr.f32.gmra.mxu0 %v2604
      %v2849 = vpop.f32.mrf.mxu0
      %v2850 = vadd.f32 0.0, %v2849
      %v2851 = vpop.f32.mrf.mxu0
      %2852 = vmatprep.mubr.f32.mxu0 %v2608
      %2853 = vmatmul.mubr.f32.gmra.mxu0 %v2607
      %v2854 = vpop.f32.mrf.mxu0
      %v2855 = vadd.f32 0.0, %v2854
      %v2856 = vpop.f32.mrf.mxu0
      %2857 = vmatprep.mubr.f32.mxu0 %v2611
      %2858 = vmatmul.mubr.f32.gmra.mxu0 %v2610
      %v2859 = vpop.f32.mrf.mxu0
      %v2860 = vadd.f32 0.0, %v2859
      %v2861 = vpop.f32.mrf.mxu0
      %2862 = vmatprep.mubr.f32.mxu0 %v2614
      %2863 = vmatmul.mubr.f32.gmra.mxu0 %v2613
      %v2864 = vpop.f32.mrf.mxu0
      %v2865 = vadd.f32 0.0, %v2864
      %v2866 = vpop.f32.mrf.mxu0
      %2867 = vmatprep.mubr.f32.mxu0 %v2617
      %2868 = vmatmul.mubr.f32.gmra.mxu0 %v2616
      %v2869 = vpop.f32.mrf.mxu0
      %v2870 = vadd.f32 0.0, %v2869
      %v2871 = vpop.f32.mrf.mxu0
      %2872 = vmatprep.mubr.f32.mxu0 %v2620
      %2873 = vmatmul.mubr.f32.gmra.mxu0 %v2619
      %v2874 = vpop.f32.mrf.mxu0
      %v2875 = vadd.f32 0.0, %v2874
      %v2876 = vpop.f32.mrf.mxu0
      %2877 = vmatprep.mubr.f32.mxu0 %v2623
      %2878 = vmatmul.mubr.f32.gmra.mxu0 %v2622
      %v2879 = vpop.f32.mrf.mxu0
      %v2880 = vadd.f32 0.0, %v2879
      %v2881 = vpop.f32.mrf.mxu0
      %2882 = vmatprep.mubr.f32.mxu0 %v2626
      %2883 = vmatmul.mubr.f32.gmra.mxu0 %v2625
      %v2884 = vpop.f32.mrf.mxu0
      %v2885 = vadd.f32 0.0, %v2884
      %v2886 = vpop.f32.mrf.mxu0
      %2887 = vmatprep.mubr.f32.mxu0 %v2629
      %2888 = vmatmul.mubr.f32.gmra.mxu0 %v2628
      %v2889 = vpop.f32.mrf.mxu0
      %v2890 = vadd.f32 0.0, %v2889
      %v2891 = vpop.f32.mrf.mxu0
      %2892 = vmatprep.mubr.f32.mxu0 %v2632
      %2893 = vmatmul.mubr.f32.gmra.mxu0 %v2631
      %v2894 = vpop.f32.mrf.mxu0
      %v2895 = vadd.f32 0.0, %v2894
      %v2896 = vpop.f32.mrf.mxu0
      %2897 = vmatprep.mubr.f32.mxu0 %v2635
      %2898 = vmatmul.mubr.f32.gmra.mxu0 %v2634
      %v2899 = vpop.f32.mrf.mxu0
      %v2900 = vadd.f32 0.0, %v2899
      %v2901 = vpop.f32.mrf.mxu0
      %2902 = vmatprep.mubr.f32.mxu0 %v2638
      %2903 = vmatmul.mubr.f32.gmra.mxu0 %v2637
      %v2904 = vpop.f32.mrf.mxu0
      %v2905 = vadd.f32 0.0, %v2904
      %v2906 = vpop.f32.mrf.mxu0
      %2907 = vmatprep.mubr.f32.mxu0 %v2641
      %2908 = vmatmul.mubr.f32.gmra.mxu0 %v2640
      %v2909 = vpop.f32.mrf.mxu0
      %v2910 = vadd.f32 0.0, %v2909
      %v2911 = vpop.f32.mrf.mxu0
      %2912 = vmatprep.mubr.f32.mxu0 %v2644
      %2913 = vmatmul.mubr.f32.gmra.mxu0 %v2643
      %v2914 = vpop.f32.mrf.mxu0
      %v2915 = vadd.f32 0.0, %v2914
      %v2916 = vpop.f32.mrf.mxu0
      %2917 = vmatprep.mubr.f32.mxu0 %v2647
      %2918 = vmatmul.mubr.f32.gmra.mxu0 %v2646
      %v2919 = vpop.f32.mrf.mxu0
      %v2920 = vadd.f32 0.0, %v2919
      %v2921 = vpop.f32.mrf.mxu0
      %2922 = vdwg.mxu0
      %2923 = vmatprep.subr.mxu0 0.0
      %2924 = vmatpush1.msra.mxu0 %v2697
      %2925 = vmatprep.subr.mxu0 0.0
      %2926 = vmatpush1.msra.mxu0 %v2696
      %2927 = vmatprep.subr.mxu0 0.0
      %2928 = vmatpush1.msra.mxu0 %v2695
      %2929 = vmatprep.subr.mxu0 0.0
      %2930 = vmatpush1.msra.mxu0 %v2694
      %2931 = vmatprep.subr.mxu0 0.0
      %2932 = vmatpush1.msra.mxu0 %v2693
      %2933 = vmatprep.subr.mxu0 0.0
      %2934 = vmatpush1.msra.mxu0 %v2692
      %2935 = vmatprep.subr.mxu0 0.0
      %2936 = vmatpush1.msra.mxu0 %v2691
      %2937 = vmatprep.subr.mxu0 0.0
      %2938 = vmatpush1.msra.mxu0 %v2690
      %2939 = vmatprep.subr.mxu0 0.0
      %2940 = vmatpush1.msra.mxu0 %v2689
      %2941 = vmatprep.subr.mxu0 0.0
      %2942 = vmatpush1.msra.mxu0 %v2688
      %2943 = vmatprep.subr.mxu0 0.0
      %2944 = vmatpush1.msra.mxu0 %v2687
      %2945 = vmatprep.subr.mxu0 0.0
      %2946 = vmatpush1.msra.mxu0 %v2686
      %2947 = vmatprep.subr.mxu0 0.0
      %2948 = vmatpush1.msra.mxu0 %v2685
      %2949 = vmatprep.subr.mxu0 0.0
      %2950 = vmatpush1.msra.mxu0 %v2684
      %2951 = vmatprep.subr.mxu0 0.0
      %2952 = vmatpush1.msra.mxu0 %v2683
      %2953 = vmatprep.subr.mxu0 0.0
      %2954 = vmatpush1.msra.mxu0 %v2682
      %2955 = vmatprep.subr.mxu0 0.0
      %2956 = vmatpush2.msra.mxu0 0.0
      %2957 = vmatprep.subr.mxu0 0.0
      %2958 = vmatpush2.msra.mxu0 0.0
      %2959 = vmatprep.subr.mxu0 0.0
      %2960 = vmatpush2.msra.mxu0 0.0
      %2961 = vmatprep.subr.mxu0 0.0
      %2962 = vmatpush2.msra.mxu0 0.0
      %2963 = vmatprep.subr.mxu0 0.0
      %2964 = vmatpush2.msra.mxu0 0.0
      %2965 = vmatprep.subr.mxu0 0.0
      %2966 = vmatpush2.msra.mxu0 0.0
      %2967 = vmatprep.subr.mxu0 0.0
      %2968 = vmatpush2.msra.mxu0 0.0
      %2969 = vmatprep.subr.mxu0 0.0
      %2970 = vmatpush2.msra.mxu0 0.0
      %2971 = vmatprep.subr.mxu0 0.0
      %2972 = vmatpush2.msra.mxu0 0.0
      %2973 = vmatprep.subr.mxu0 0.0
      %2974 = vmatpush2.msra.mxu0 0.0
      %2975 = vmatprep.subr.mxu0 0.0
      %2976 = vmatpush2.msra.mxu0 0.0
      %2977 = vmatprep.subr.mxu0 0.0
      %2978 = vmatpush2.msra.mxu0 0.0
      %2979 = vmatprep.subr.mxu0 0.0
      %2980 = vmatpush2.msra.mxu0 0.0
      %2981 = vmatprep.subr.mxu0 0.0
      %2982 = vmatpush2.msra.mxu0 0.0
      %2983 = vmatprep.subr.mxu0 0.0
      %2984 = vmatpush2.msra.mxu0 0.0
      %2985 = vmatprep.subr.mxu0 0.0
      %2986 = vmatpush2.msra.mxu0 0.0
      %2987 = vmatprep.mubr.f32.mxu0 0.0
      %2988 = vmatmul.mubr.f32.gmra.mxu0 %v2555
      %v2989 = vpop.f32.mrf.mxu0
      %v2990 = vadd.f32 %v2765, %v2989
      %v2991 = vpop.f32.mrf.mxu0
      %2992 = vmatprep.mubr.f32.mxu0 0.0
      %2993 = vmatmul.mubr.f32.gmra.mxu0 %v2558
      %v2994 = vpop.f32.mrf.mxu0
      %v2995 = vadd.f32 %v2770, %v2994
      %v2996 = vpop.f32.mrf.mxu0
      %2997 = vmatprep.mubr.f32.mxu0 0.0
      %2998 = vmatmul.mubr.f32.gmra.mxu0 %v2561
      %v2999 = vpop.f32.mrf.mxu0
      %v3000 = vadd.f32 %v2775, %v2999
      %v3001 = vpop.f32.mrf.mxu0
      %3002 = vmatprep.mubr.f32.mxu0 0.0
      %3003 = vmatmul.mubr.f32.gmra.mxu0 %v2564
      %v3004 = vpop.f32.mrf.mxu0
      %v3005 = vadd.f32 %v2780, %v3004
      %v3006 = vpop.f32.mrf.mxu0
      %3007 = vmatprep.mubr.f32.mxu0 0.0
      %3008 = vmatmul.mubr.f32.gmra.mxu0 %v2567
      %v3009 = vpop.f32.mrf.mxu0
      %v3010 = vadd.f32 %v2785, %v3009
      %v3011 = vpop.f32.mrf.mxu0
      %3012 = vmatprep.mubr.f32.mxu0 0.0
      %3013 = vmatmul.mubr.f32.gmra.mxu0 %v2570
      %v3014 = vpop.f32.mrf.mxu0
      %v3015 = vadd.f32 %v2790, %v3014
      %v3016 = vpop.f32.mrf.mxu0
      %3017 = vmatprep.mubr.f32.mxu0 0.0
      %3018 = vmatmul.mubr.f32.gmra.mxu0 %v2573
      %v3019 = vpop.f32.mrf.mxu0
      %v3020 = vadd.f32 %v2795, %v3019
      %v3021 = vpop.f32.mrf.mxu0
      %3022 = vmatprep.mubr.f32.mxu0 0.0
      %3023 = vmatmul.mubr.f32.gmra.mxu0 %v2576
      %v3024 = vpop.f32.mrf.mxu0
      %v3025 = vadd.f32 %v2800, %v3024
      %v3026 = vpop.f32.mrf.mxu0
      %3027 = vmatprep.mubr.f32.mxu0 0.0
      %3028 = vmatmul.mubr.f32.gmra.mxu0 %v2579
      %v3029 = vpop.f32.mrf.mxu0
      %v3030 = vadd.f32 %v2805, %v3029
      %v3031 = vpop.f32.mrf.mxu0
      %3032 = vmatprep.mubr.f32.mxu0 0.0
      %3033 = vmatmul.mubr.f32.gmra.mxu0 %v2582
      %v3034 = vpop.f32.mrf.mxu0
      %v3035 = vadd.f32 %v2810, %v3034
      %v3036 = vpop.f32.mrf.mxu0
      %3037 = vmatprep.mubr.f32.mxu0 0.0
      %3038 = vmatmul.mubr.f32.gmra.mxu0 %v2585
      %v3039 = vpop.f32.mrf.mxu0
      %v3040 = vadd.f32 %v2815, %v3039
      %v3041 = vpop.f32.mrf.mxu0
      %3042 = vmatprep.mubr.f32.mxu0 0.0
      %3043 = vmatmul.mubr.f32.gmra.mxu0 %v2588
      %v3044 = vpop.f32.mrf.mxu0
      %v3045 = vadd.f32 %v2820, %v3044
      %v3046 = vpop.f32.mrf.mxu0
      %3047 = vmatprep.mubr.f32.mxu0 0.0
      %3048 = vmatmul.mubr.f32.gmra.mxu0 %v2591
      %v3049 = vpop.f32.mrf.mxu0
      %v3050 = vadd.f32 %v2825, %v3049
      %v3051 = vpop.f32.mrf.mxu0
      %3052 = vmatprep.mubr.f32.mxu0 0.0
      %3053 = vmatmul.mubr.f32.gmra.mxu0 %v2594
      %v3054 = vpop.f32.mrf.mxu0
      %v3055 = vadd.f32 %v2830, %v3054
      %v3056 = vpop.f32.mrf.mxu0
      %3057 = vmatprep.mubr.f32.mxu0 0.0
      %3058 = vmatmul.mubr.f32.gmra.mxu0 %v2597
      %v3059 = vpop.f32.mrf.mxu0
      %v3060 = vadd.f32 %v2835, %v3059
      %v3061 = vpop.f32.mrf.mxu0
      %3062 = vmatprep.mubr.f32.mxu0 0.0
      %3063 = vmatmul.mubr.f32.gmra.mxu0 %v2600
      %v3064 = vpop.f32.mrf.mxu0
      %v3065 = vadd.f32 %v2840, %v3064
      %v3066 = vpop.f32.mrf.mxu0
      %3067 = vmatprep.mubr.f32.mxu0 0.0
      %3068 = vmatmul.mubr.f32.gmra.mxu0 %v2603
      %v3069 = vpop.f32.mrf.mxu0
      %v3070 = vadd.f32 %v2845, %v3069
      %v3071 = vpop.f32.mrf.mxu0
      %3072 = vmatprep.mubr.f32.mxu0 0.0
      %3073 = vmatmul.mubr.f32.gmra.mxu0 %v2606
      %v3074 = vpop.f32.mrf.mxu0
      %v3075 = vadd.f32 %v2850, %v3074
      %v3076 = vpop.f32.mrf.mxu0
      %3077 = vmatprep.mubr.f32.mxu0 0.0
      %3078 = vmatmul.mubr.f32.gmra.mxu0 %v2609
      %v3079 = vpop.f32.mrf.mxu0
      %v3080 = vadd.f32 %v2855, %v3079
      %v3081 = vpop.f32.mrf.mxu0
      %3082 = vmatprep.mubr.f32.mxu0 0.0
      %3083 = vmatmul.mubr.f32.gmra.mxu0 %v2612
      %v3084 = vpop.f32.mrf.mxu0
      %v3085 = vadd.f32 %v2860, %v3084
      %v3086 = vpop.f32.mrf.mxu0
      %3087 = vmatprep.mubr.f32.mxu0 0.0
      %3088 = vmatmul.mubr.f32.gmra.mxu0 %v2615
      %v3089 = vpop.f32.mrf.mxu0
      %v3090 = vadd.f32 %v2865, %v3089
      %v3091 = vpop.f32.mrf.mxu0
      %3092 = vmatprep.mubr.f32.mxu0 0.0
      %3093 = vmatmul.mubr.f32.gmra.mxu0 %v2618
      %v3094 = vpop.f32.mrf.mxu0
      %v3095 = vadd.f32 %v2870, %v3094
      %v3096 = vpop.f32.mrf.mxu0
      %3097 = vmatprep.mubr.f32.mxu0 0.0
      %3098 = vmatmul.mubr.f32.gmra.mxu0 %v2621
      %v3099 = vpop.f32.mrf.mxu0
      %v3100 = vadd.f32 %v2875, %v3099
      %v3101 = vpop.f32.mrf.mxu0
      %3102 = vmatprep.mubr.f32.mxu0 0.0
      %3103 = vmatmul.mubr.f32.gmra.mxu0 %v2624
      %v3104 = vpop.f32.mrf.mxu0
      %v3105 = vadd.f32 %v2880, %v3104
      %v3106 = vpop.f32.mrf.mxu0
      %3107 = vmatprep.mubr.f32.mxu0 0.0
      %3108 = vmatmul.mubr.f32.gmra.mxu0 %v2627
      %v3109 = vpop.f32.mrf.mxu0
      %v3110 = vadd.f32 %v2885, %v3109
      %v3111 = vpop.f32.mrf.mxu0
      %3112 = vmatprep.mubr.f32.mxu0 0.0
      %3113 = vmatmul.mubr.f32.gmra.mxu0 %v2630
      %v3114 = vpop.f32.mrf.mxu0
      %v3115 = vadd.f32 %v2890, %v3114
      %v3116 = vpop.f32.mrf.mxu0
      %3117 = vmatprep.mubr.f32.mxu0 0.0
      %3118 = vmatmul.mubr.f32.gmra.mxu0 %v2633
      %v3119 = vpop.f32.mrf.mxu0
      %v3120 = vadd.f32 %v2895, %v3119
      %v3121 = vpop.f32.mrf.mxu0
      %3122 = vmatprep.mubr.f32.mxu0 0.0
      %3123 = vmatmul.mubr.f32.gmra.mxu0 %v2636
      %v3124 = vpop.f32.mrf.mxu0
      %v3125 = vadd.f32 %v2900, %v3124
      %v3126 = vpop.f32.mrf.mxu0
      %3127 = vmatprep.mubr.f32.mxu0 0.0
      %3128 = vmatmul.mubr.f32.gmra.mxu0 %v2639
      %v3129 = vpop.f32.mrf.mxu0
      %v3130 = vadd.f32 %v2905, %v3129
      %v3131 = vpop.f32.mrf.mxu0
      %3132 = vmatprep.mubr.f32.mxu0 0.0
      %3133 = vmatmul.mubr.f32.gmra.mxu0 %v2642
      %v3134 = vpop.f32.mrf.mxu0
      %v3135 = vadd.f32 %v2910, %v3134
      %v3136 = vpop.f32.mrf.mxu0
      %3137 = vmatprep.mubr.f32.mxu0 0.0
      %3138 = vmatmul.mubr.f32.gmra.mxu0 %v2645
      %v3139 = vpop.f32.mrf.mxu0
      %v3140 = vadd.f32 %v2915, %v3139
      %v3141 = vpop.f32.mrf.mxu0
      %3142 = vmatprep.mubr.f32.mxu0 0.0
      %3143 = vmatmul.mubr.f32.gmra.mxu0 %v2648
      %v3144 = vpop.f32.mrf.mxu0
      %v3145 = vadd.f32 %v2920, %v3144
      %v3146 = vpop.f32.mrf.mxu0
      %3147 = vdwg.mxu0
      %v3148 = vld [vmem:[#allocation3] sm:$0xff]
      %v3149 = vld [vmem:[#allocation3 + $0x8] sm:$0xff]
      %v3150 = vld [vmem:[#allocation3 + $0x10] sm:$0xff]
      %v3151 = vld [vmem:[#allocation3 + $0x18] sm:$0xff]
      %v3152 = vld [vmem:[#allocation3 + $0x20] sm:$0xff]
      %v3153 = vld [vmem:[#allocation3 + $0x28] sm:$0xff]
      %v3154 = vld [vmem:[#allocation3 + $0x30] sm:$0xff]
      %v3155 = vld [vmem:[#allocation3 + $0x38] sm:$0xff]
      %v3156 = vld [vmem:[#allocation3 + $0x40] sm:$0xff]
      %v3157 = vld [vmem:[#allocation3 + $0x48] sm:$0xff]
      %v3158 = vld [vmem:[#allocation3 + $0x50] sm:$0xff]
      %v3159 = vld [vmem:[#allocation3 + $0x58] sm:$0xff]
      %v3160 = vld [vmem:[#allocation3 + $0x60] sm:$0xff]
      %v3161 = vld [vmem:[#allocation3 + $0x68] sm:$0xff]
      %v3162 = vld [vmem:[#allocation3 + $0x70] sm:$0xff]
      %v3163 = vld [vmem:[#allocation3 + $0x78] sm:$0xff]
      %v3164 = vld [vmem:[#allocation3 + $0x80] sm:$0xff]
      %v3165 = vld [vmem:[#allocation3 + $0x88] sm:$0xff]
      %v3166 = vld [vmem:[#allocation3 + $0x90] sm:$0xff]
      %v3167 = vld [vmem:[#allocation3 + $0x98] sm:$0xff]
      %v3168 = vld [vmem:[#allocation3 + $0xa0] sm:$0xff]
      %v3169 = vld [vmem:[#allocation3 + $0xa8] sm:$0xff]
      %v3170 = vld [vmem:[#allocation3 + $0xb0] sm:$0xff]
      %v3171 = vld [vmem:[#allocation3 + $0xb8] sm:$0xff]
      %v3172 = vld [vmem:[#allocation3 + $0xc0] sm:$0xff]
      %v3173 = vld [vmem:[#allocation3 + $0xc8] sm:$0xff]
      %v3174 = vld [vmem:[#allocation3 + $0xd0] sm:$0xff]
      %v3175 = vld [vmem:[#allocation3 + $0xd8] sm:$0xff]
      %v3176 = vld [vmem:[#allocation3 + $0xe0] sm:$0xff]
      %v3177 = vld [vmem:[#allocation3 + $0xe8] sm:$0xff]
      %v3178 = vld [vmem:[#allocation3 + $0xf0] sm:$0xff]
      %v3179 = vld [vmem:[#allocation3 + $0xf8] sm:$0xff]
      %v3180 = vadd.f32 %v3148, %v2990
      %v3181 = vadd.f32 %v3149, %v2995
      %v3182 = vadd.f32 %v3150, %v3000
      %v3183 = vadd.f32 %v3151, %v3005
      %v3184 = vadd.f32 %v3152, %v3010
      %v3185 = vadd.f32 %v3153, %v3015
      %v3186 = vadd.f32 %v3154, %v3020
      %v3187 = vadd.f32 %v3155, %v3025
      %v3188 = vadd.f32 %v3156, %v3030
      %v3189 = vadd.f32 %v3157, %v3035
      %v3190 = vadd.f32 %v3158, %v3040
      %v3191 = vadd.f32 %v3159, %v3045
      %v3192 = vadd.f32 %v3160, %v3050
      %v3193 = vadd.f32 %v3161, %v3055
      %v3194 = vadd.f32 %v3162, %v3060
      %v3195 = vadd.f32 %v3163, %v3065
      %v3196 = vadd.f32 %v3164, %v3070
      %v3197 = vadd.f32 %v3165, %v3075
      %v3198 = vadd.f32 %v3166, %v3080
      %v3199 = vadd.f32 %v3167, %v3085
      %v3200 = vadd.f32 %v3168, %v3090
      %v3201 = vadd.f32 %v3169, %v3095
      %v3202 = vadd.f32 %v3170, %v3100
      %v3203 = vadd.f32 %v3171, %v3105
      %v3204 = vadd.f32 %v3172, %v3110
      %v3205 = vadd.f32 %v3173, %v3115
      %v3206 = vadd.f32 %v3174, %v3120
      %v3207 = vadd.f32 %v3175, %v3125
      %v3208 = vadd.f32 %v3176, %v3130
      %v3209 = vadd.f32 %v3177, %v3135
      %v3210 = vadd.f32 %v3178, %v3140
      %v3211 = vadd.f32 %v3179, %v3145
      %3212 = vst [vmem:[#allocation3] sm:$0xff] %v3180
      %3213 = vst [vmem:[#allocation3 + $0x8] sm:$0xff] %v3181
      %3214 = vst [vmem:[#allocation3 + $0x10] sm:$0xff] %v3182
      %3215 = vst [vmem:[#allocation3 + $0x18] sm:$0xff] %v3183
      %3216 = vst [vmem:[#allocation3 + $0x20] sm:$0xff] %v3184
      %3217 = vst [vmem:[#allocation3 + $0x28] sm:$0xff] %v3185
      %3218 = vst [vmem:[#allocation3 + $0x30] sm:$0xff] %v3186
      %3219 = vst [vmem:[#allocation3 + $0x38] sm:$0xff] %v3187
      %3220 = vst [vmem:[#allocation3 + $0x40] sm:$0xff] %v3188
      %3221 = vst [vmem:[#allocation3 + $0x48] sm:$0xff] %v3189
      %3222 = vst [vmem:[#allocation3 + $0x50] sm:$0xff] %v3190
      %3223 = vst [vmem:[#allocation3 + $0x58] sm:$0xff] %v3191
      %3224 = vst [vmem:[#allocation3 + $0x60] sm:$0xff] %v3192
      %3225 = vst [vmem:[#allocation3 + $0x68] sm:$0xff] %v3193
      %3226 = vst [vmem:[#allocation3 + $0x70] sm:$0xff] %v3194
      %3227 = vst [vmem:[#allocation3 + $0x78] sm:$0xff] %v3195
      %3228 = vst [vmem:[#allocation3 + $0x80] sm:$0xff] %v3196
      %3229 = vst [vmem:[#allocation3 + $0x88] sm:$0xff] %v3197
      %3230 = vst [vmem:[#allocation3 + $0x90] sm:$0xff] %v3198
      %3231 = vst [vmem:[#allocation3 + $0x98] sm:$0xff] %v3199
      %3232 = vst [vmem:[#allocation3 + $0xa0] sm:$0xff] %v3200
      %3233 = vst [vmem:[#allocation3 + $0xa8] sm:$0xff] %v3201
      %3234 = vst [vmem:[#allocation3 + $0xb0] sm:$0xff] %v3202
      %3235 = vst [vmem:[#allocation3 + $0xb8] sm:$0xff] %v3203
      %3236 = vst [vmem:[#allocation3 + $0xc0] sm:$0xff] %v3204
      %3237 = vst [vmem:[#allocation3 + $0xc8] sm:$0xff] %v3205
      %3238 = vst [vmem:[#allocation3 + $0xd0] sm:$0xff] %v3206
      %3239 = vst [vmem:[#allocation3 + $0xd8] sm:$0xff] %v3207
      %3240 = vst [vmem:[#allocation3 + $0xe0] sm:$0xff] %v3208
      %3241 = vst [vmem:[#allocation3 + $0xe8] sm:$0xff] %v3209
      %3242 = vst [vmem:[#allocation3 + $0xf0] sm:$0xff] %v3210
      %3243 = vst [vmem:[#allocation3 + $0xf8] sm:$0xff] %v3211
      %v3244 = vld [vmem:[#allocation3] sm:$0xff]
      %v3245 = vld [vmem:[#allocation3 + $0x8] sm:$0xff]
      %v3246 = vld [vmem:[#allocation3 + $0x10] sm:$0xff]
      %v3247 = vld [vmem:[#allocation3 + $0x18] sm:$0xff]
      %v3248 = vld [vmem:[#allocation3 + $0x20] sm:$0xff]
      %v3249 = vld [vmem:[#allocation3 + $0x28] sm:$0xff]
      %v3250 = vld [vmem:[#allocation3 + $0x30] sm:$0xff]
      %v3251 = vld [vmem:[#allocation3 + $0x38] sm:$0xff]
      %v3252 = vld [vmem:[#allocation3 + $0x40] sm:$0xff]
      %v3253 = vld [vmem:[#allocation3 + $0x48] sm:$0xff]
      %v3254 = vld [vmem:[#allocation3 + $0x50] sm:$0xff]
      %v3255 = vld [vmem:[#allocation3 + $0x58] sm:$0xff]
      %v3256 = vld [vmem:[#allocation3 + $0x60] sm:$0xff]
      %v3257 = vld [vmem:[#allocation3 + $0x68] sm:$0xff]
      %v3258 = vld [vmem:[#allocation3 + $0x70] sm:$0xff]
      %v3259 = vld [vmem:[#allocation3 + $0x78] sm:$0xff]
      %v3260 = vld [vmem:[#allocation3 + $0x80] sm:$0xff]
      %v3261 = vld [vmem:[#allocation3 + $0x88] sm:$0xff]
      %v3262 = vld [vmem:[#allocation3 + $0x90] sm:$0xff]
      %v3263 = vld [vmem:[#allocation3 + $0x98] sm:$0xff]
      %v3264 = vld [vmem:[#allocation3 + $0xa0] sm:$0xff]
      %v3265 = vld [vmem:[#allocation3 + $0xa8] sm:$0xff]
      %v3266 = vld [vmem:[#allocation3 + $0xb0] sm:$0xff]
      %v3267 = vld [vmem:[#allocation3 + $0xb8] sm:$0xff]
      %v3268 = vld [vmem:[#allocation3 + $0xc0] sm:$0xff]
      %v3269 = vld [vmem:[#allocation3 + $0xc8] sm:$0xff]
      %v3270 = vld [vmem:[#allocation3 + $0xd0] sm:$0xff]
      %v3271 = vld [vmem:[#allocation3 + $0xd8] sm:$0xff]
      %v3272 = vld [vmem:[#allocation3 + $0xe0] sm:$0xff]
      %v3273 = vld [vmem:[#allocation3 + $0xe8] sm:$0xff]
      %v3274 = vld [vmem:[#allocation3 + $0xf0] sm:$0xff]
      %v3275 = vld [vmem:[#allocation3 + $0xf8] sm:$0xff]
      %3276 = vst [vmem:[%s264] sm:$0xff] %v3244
      %3277 = vst [vmem:[%s264 + $0x8] sm:$0xff] %v3245
      %3278 = vst [vmem:[%s264 + $0x10] sm:$0xff] %v3246
      %3279 = vst [vmem:[%s264 + $0x18] sm:$0xff] %v3247
      %3280 = vst [vmem:[%s264 + $0x20] sm:$0xff] %v3248
      %3281 = vst [vmem:[%s264 + $0x28] sm:$0xff] %v3249
      %3282 = vst [vmem:[%s264 + $0x30] sm:$0xff] %v3250
      %3283 = vst [vmem:[%s264 + $0x38] sm:$0xff] %v3251
      %3284 = vst [vmem:[%s264 + $0x40] sm:$0xff] %v3252
      %3285 = vst [vmem:[%s264 + $0x48] sm:$0xff] %v3253
      %3286 = vst [vmem:[%s264 + $0x50] sm:$0xff] %v3254
      %3287 = vst [vmem:[%s264 + $0x58] sm:$0xff] %v3255
      %3288 = vst [vmem:[%s264 + $0x60] sm:$0xff] %v3256
      %3289 = vst [vmem:[%s264 + $0x68] sm:$0xff] %v3257
      %3290 = vst [vmem:[%s264 + $0x70] sm:$0xff] %v3258
      %3291 = vst [vmem:[%s264 + $0x78] sm:$0xff] %v3259
      %3292 = vst [vmem:[%s264 + $0x80] sm:$0xff] %v3260
      %3293 = vst [vmem:[%s264 + $0x88] sm:$0xff] %v3261
      %3294 = vst [vmem:[%s264 + $0x90] sm:$0xff] %v3262
      %3295 = vst [vmem:[%s264 + $0x98] sm:$0xff] %v3263
      %3296 = vst [vmem:[%s264 + $0xa0] sm:$0xff] %v3264
      %3297 = vst [vmem:[%s264 + $0xa8] sm:$0xff] %v3265
      %3298 = vst [vmem:[%s264 + $0xb0] sm:$0xff] %v3266
      %3299 = vst [vmem:[%s264 + $0xb8] sm:$0xff] %v3267
      %3300 = vst [vmem:[%s264 + $0xc0] sm:$0xff] %v3268
      %3301 = vst [vmem:[%s264 + $0xc8] sm:$0xff] %v3269
      %3302 = vst [vmem:[%s264 + $0xd0] sm:$0xff] %v3270
      %3303 = vst [vmem:[%s264 + $0xd8] sm:$0xff] %v3271
      %3304 = vst [vmem:[%s264 + $0xe0] sm:$0xff] %v3272
      %3305 = vst [vmem:[%s264 + $0xe8] sm:$0xff] %v3273
      %3306 = vst [vmem:[%s264 + $0xf0] sm:$0xff] %v3274
      %3307 = vst [vmem:[%s264 + $0xf8] sm:$0xff] %v3275
      %v3308 = vadd.f32 %v3244, %v3245
      %v3309 = vadd.f32 %v3308, %v3246
      %v3310 = vadd.f32 %v3309, %v3247
      %v3311 = vadd.f32 %v3310, %v3248
      %v3312 = vadd.f32 %v3311, %v3249
      %v3313 = vadd.f32 %v3312, %v3250
      %v3314 = vadd.f32 %v3313, %v3251
      %v3315 = vadd.f32 %v3314, %v3252
      %v3316 = vadd.f32 %v3315, %v3253
      %v3317 = vadd.f32 %v3316, %v3254
      %v3318 = vadd.f32 %v3317, %v3255
      %v3319 = vadd.f32 %v3318, %v3256
      %v3320 = vadd.f32 %v3319, %v3257
      %v3321 = vadd.f32 %v3320, %v3258
      %v3322 = vadd.f32 %v3321, %v3259
      %v3323 = vadd.f32 %v3322, %v3260
      %v3324 = vadd.f32 %v3323, %v3261
      %v3325 = vadd.f32 %v3324, %v3262
      %v3326 = vadd.f32 %v3325, %v3263
      %v3327 = vadd.f32 %v3326, %v3264
      %v3328 = vadd.f32 %v3327, %v3265
      %v3329 = vadd.f32 %v3328, %v3266
      %v3330 = vadd.f32 %v3329, %v3267
      %v3331 = vadd.f32 %v3330, %v3268
      %v3332 = vadd.f32 %v3331, %v3269
      %v3333 = vadd.f32 %v3332, %v3270
      %v3334 = vadd.f32 %v3333, %v3271
      %v3335 = vadd.f32 %v3334, %v3272
      %v3336 = vadd.f32 %v3335, %v3273
      %v3337 = vadd.f32 %v3336, %v3274
      %v3338 = vadd.f32 %v3337, %v3275
      %v3339 = vrot.slane %v3338, 4
      %v3340 = vadd.f32 %v3338, %v3339
      %v3341 = vrot.slane %v3340, 2
      %v3342 = vadd.f32 %v3340, %v3341
      %v3343 = vrot.slane %v3342, 1
      %v3344 = vadd.f32 %v3342, %v3343
      %v3345 = vmul.f32 %v3244, %v3244
      %v3346 = vmul.f32 %v3245, %v3245
      %v3347 = vmul.f32 %v3246, %v3246
      %v3348 = vmul.f32 %v3247, %v3247
      %v3349 = vmul.f32 %v3248, %v3248
      %v3350 = vmul.f32 %v3249, %v3249
      %v3351 = vmul.f32 %v3250, %v3250
      %v3352 = vmul.f32 %v3251, %v3251
      %v3353 = vmul.f32 %v3252, %v3252
      %v3354 = vmul.f32 %v3253, %v3253
      %v3355 = vmul.f32 %v3254, %v3254
      %v3356 = vmul.f32 %v3255, %v3255
      %v3357 = vmul.f32 %v3256, %v3256
      %v3358 = vmul.f32 %v3257, %v3257
      %v3359 = vmul.f32 %v3258, %v3258
      %v3360 = vmul.f32 %v3259, %v3259
      %v3361 = vmul.f32 %v3260, %v3260
      %v3362 = vmul.f32 %v3261, %v3261
      %v3363 = vmul.f32 %v3262, %v3262
      %v3364 = vmul.f32 %v3263, %v3263
      %v3365 = vmul.f32 %v3264, %v3264
      %v3366 = vmul.f32 %v3265, %v3265
      %v3367 = vmul.f32 %v3266, %v3266
      %v3368 = vmul.f32 %v3267, %v3267
      %v3369 = vmul.f32 %v3268, %v3268
      %v3370 = vmul.f32 %v3269, %v3269
      %v3371 = vmul.f32 %v3270, %v3270
      %v3372 = vmul.f32 %v3271, %v3271
      %v3373 = vmul.f32 %v3272, %v3272
      %v3374 = vmul.f32 %v3273, %v3273
      %v3375 = vmul.f32 %v3274, %v3274
      %v3376 = vmul.f32 %v3275, %v3275
      %v3377 = vadd.f32 %v3345, %v3346
      %v3378 = vadd.f32 %v3377, %v3347
      %v3379 = vadd.f32 %v3378, %v3348
      %v3380 = vadd.f32 %v3379, %v3349
      %v3381 = vadd.f32 %v3380, %v3350
      %v3382 = vadd.f32 %v3381, %v3351
      %v3383 = vadd.f32 %v3382, %v3352
      %v3384 = vadd.f32 %v3383, %v3353
      %v3385 = vadd.f32 %v3384, %v3354
      %v3386 = vadd.f32 %v3385, %v3355
      %v3387 = vadd.f32 %v3386, %v3356
      %v3388 = vadd.f32 %v3387, %v3357
      %v3389 = vadd.f32 %v3388, %v3358
      %v3390 = vadd.f32 %v3389, %v3359
      %v3391 = vadd.f32 %v3390, %v3360
      %v3392 = vadd.f32 %v3391, %v3361
      %v3393 = vadd.f32 %v3392, %v3362
      %v3394 = vadd.f32 %v3393, %v3363
      %v3395 = vadd.f32 %v3394, %v3364
      %v3396 = vadd.f32 %v3395, %v3365
      %v3397 = vadd.f32 %v3396, %v3366
      %v3398 = vadd.f32 %v3397, %v3367
      %v3399 = vadd.f32 %v3398, %v3368
      %v3400 = vadd.f32 %v3399, %v3369
      %v3401 = vadd.f32 %v3400, %v3370
      %v3402 = vadd.f32 %v3401, %v3371
      %v3403 = vadd.f32 %v3402, %v3372
      %v3404 = vadd.f32 %v3403, %v3373
      %v3405 = vadd.f32 %v3404, %v3374
      %v3406 = vadd.f32 %v3405, %v3375
      %v3407 = vadd.f32 %v3406, %v3376
      %v3408 = vrot.slane %v3407, 4
      %v3409 = vadd.f32 %v3407, %v3408
      %v3410 = vrot.slane %v3409, 2
      %v3411 = vadd.f32 %v3409, %v3410
      %v3412 = vrot.slane %v3411, 1
      %v3413 = vadd.f32 %v3411, %v3412
      %3414 = vst [vmem:[%s268] sm:$0xff] %v3344
      %3415 = vst [vmem:[%s272] sm:$0xff] %v3413
      %p3416 = scmp.lt.s32.totalorder %s18, 1
      %s3417 = scalar_select %p3416, %s18, 1
      %s3418 = smul.addr %s3417, 32
      %s3419 = smul.addr %s3418, 8
      %s3420 = scalar_lea.vmem %s4, %s3419
      %p3421 = scmp.lt.s32.totalorder %s18, 1
      %s3422 = scalar_select %p3421, %s18, 1
      %s3423 = smul.addr %s3422, 8
      %s3424 = scalar_lea.vmem %s5, %s3423
      %p3425 = scmp.lt.s32.totalorder %s18, 1
      %s3426 = scalar_select %p3425, %s18, 1
      %s3427 = smul.addr %s3426, 8
      %s3428 = scalar_lea.vmem %s6, %s3427
      // Predicated region
      $region37: #{dark_residual_block.4} parent=35 // pred_check
        %p3429 = pneg %p125
      $region38: #{dark_residual_block.4} parent=35 // pred_check_branch
        %3431 = sbr.rel (%p3429) target = $region40
      $region39: #{dark_residual_block.4} parent=35 // pred_region
        _
      $region40: #{dark_residual_block.4} parent=35 // pred_fallthru
        _
      // Predicated region
      $region41: #{dark_residual_block.4} parent=35 // pred_check
        %p3432 = pneg %p151
      $region42: #{dark_residual_block.4} parent=35 // pred_check_branch
        %3434 = sbr.rel (%p3432) target = $region44
      $region43: #{dark_residual_block.4} parent=35 // pred_region
        _
      $region44: #{dark_residual_block.4} parent=35 // pred_fallthru
        _
      // Predicated region
      $region45: #{dark_residual_block.4} parent=35 // pred_check
        %p3435 = pneg %p177
      $region46: #{dark_residual_block.4} parent=35 // pred_check_branch
        %3437 = sbr.rel (%p3435) target = $region48
      $region47: #{dark_residual_block.4} parent=35 // pred_region
        _
      $region48: #{dark_residual_block.4} parent=35 // pred_fallthru
        _
    $region36: #{dark_residual_block.4} parent=5 // pred_fallthru
      _
    %p3438 = scmp.le.s32.totalorder 2, %s13
    // Predicated region
    $region49: #{dark_residual_block.4} parent=5 // pred_check
      %p3439 = pneg %p3438
    $region50: #{dark_residual_block.4} parent=5 // pred_check_branch
      %3441 = sbr.rel (%p3439) target = $region52
    $region51: #{dark_residual_block.4} parent=5 // pred_region
      %s3442 = ssub.s32 %s13, 2
      // Predicated region
      $region53: #{dark_residual_block.4} parent=51 // pred_check
        %p3443 = pneg %p131
      $region54: #{dark_residual_block.4} parent=51 // pred_check_branch
        %3445 = sbr.rel (%p3443) target = $region56
      $region55: #{dark_residual_block.4} parent=51 // pred_region
        %p3446 = scmp.lt.s32.totalorder %s19, 1
        %s3447 = scalar_select %p3446, %s19, 1
        %s3448 = smul.addr %s3447, 32
        %s3449 = smul.addr %s3448, 8
        %s3450 = scalar_lea.vmem %s4, %s3449
      $region56: #{dark_residual_block.4} parent=51 // pred_fallthru
        _
      // Predicated region
      $region57: #{dark_residual_block.4} parent=51 // pred_check
        %p3451 = pneg %p157
      $region58: #{dark_residual_block.4} parent=51 // pred_check_branch
        %3453 = sbr.rel (%p3451) target = $region60
      $region59: #{dark_residual_block.4} parent=51 // pred_region
        %p3454 = scmp.lt.s32.totalorder %s19, 1
        %s3455 = scalar_select %p3454, %s19, 1
        %s3456 = smul.addr %s3455, 8
        %s3457 = scalar_lea.vmem %s5, %s3456
      $region60: #{dark_residual_block.4} parent=51 // pred_fallthru
        _
      // Predicated region
      $region61: #{dark_residual_block.4} parent=51 // pred_check
        %p3458 = pneg %p183
      $region62: #{dark_residual_block.4} parent=51 // pred_check_branch
        %3460 = sbr.rel (%p3458) target = $region64
      $region63: #{dark_residual_block.4} parent=51 // pred_region
        %p3461 = scmp.lt.s32.totalorder %s19, 1
        %s3462 = scalar_select %p3461, %s19, 1
        %s3463 = smul.addr %s3462, 8
        %s3464 = scalar_lea.vmem %s6, %s3463
      $region64: #{dark_residual_block.4} parent=51 // pred_fallthru
        _
    $region52: #{dark_residual_block.4} parent=5 // pred_fallthru
      _
  $region6: #{dark_residual_block.4} parent=0 // loop_footer
    %s17 = sadd.s32 1, %s13
  $region7: #{dark_residual_block.4} parent=0 // loop_footer_branch
    %12 = sbr.rel target = $region3
  $region8: #{dark_residual_block.4} parent=0 // loop_exit
    _

</llo_original>
